<compile_context>
chip_gen: v5e
topology: v5e:2x2
jax: 0.10.0
libtpu: 0.0.40
codegen_flags: <defaults>
</compile_context>

<pallas_src>
import functools

import jax
import jax.numpy as jnp
from jax.experimental import pallas as pl
from jax.experimental.pallas import tpu as pltpu

LANE = 128      # lane tile (last dim)
SUBLANE = 8     # sublane tile (second-to-last dim, f32)
NEG_BIG = -1e30


def _round_up(n, m):
    return ((n + m - 1) // m) * m


# ---------------------------------------------------------------------------
# Kernel. grid = (batch_blocks, t_chunks). Batch axis "parallel", T axis is an
# online-softmax reduction ("arbitrary"). The GRU cell + query projection run
# once per batch block (t == 0); each T chunk streams a bf16 annotation tile,
# recomputes its annotation projection on the MXU and updates the online
# softmax + context accumulator; the final chunk normalizes and writes out.
# ---------------------------------------------------------------------------
def _attention_rnn_kernel(
    # inputs
    mem_ref, ctxin_ref, h_ref, annot_ref,
    w_gm_ref, w_gc_ref, w_gh_ref, b_g_ref,
    w_q_ref, b_q_ref, w_a_ref, b_a_ref, w_v_ref,
    # outputs
    rnn_out_ref, ctx_ref, align_ref,
    # scratch
    pq_sc, m_sc, l_sc, acc_sc, scores_sc,
    *, h_pad, t_actual,
):
    f32 = jnp.float32
    mxu = w_gm_ref.dtype                        # bf16 (f32 fallback also works)
    t_idx = pl.program_id(1)
    n_t = pl.num_programs(1)
    bb, t_chunk, a_pad = annot_ref.shape

    # ---- once per batch block: GRU cell + processed query + softmax state.
    @pl.when(t_idx == 0)
    def _init():
        h_prev = h_ref[...]                                       # (Bb, Hp) f32
        # Fused gate matmuls: bf16 MXU operands, f32 accumulation. Gate column
        # blocks (each Hp wide): [r, z, i_n, h_n]; r/z biases pre-summed.
        gates = jnp.dot(mem_ref[...].astype(mxu), w_gm_ref[...],
                        preferred_element_type=f32)
        gates = gates + jnp.dot(ctxin_ref[...].astype(mxu), w_gc_ref[...],
                                preferred_element_type=f32)
        gates = gates + jnp.dot(h_prev.astype(mxu), w_gh_ref[...],
                                preferred_element_type=f32)
        gates = gates + b_g_ref[...]                              # (Bb, 4*Hp)
        r = jax.nn.sigmoid(gates[:, 0 * h_pad:1 * h_pad])
        z = jax.nn.sigmoid(gates[:, 1 * h_pad:2 * h_pad])
        n = jnp.tanh(gates[:, 2 * h_pad:3 * h_pad]
                     + r * gates[:, 3 * h_pad:4 * h_pad])
        h_new = (1.0 - z) * n + z * h_prev                        # (Bb, Hp)
        rnn_out_ref[...] = h_new                                  # lane-dense

        # processed query; both attention biases folded in once per step
        pq_sc[...] = (jnp.dot(h_new.astype(mxu), w_q_ref[...],
                              preferred_element_type=f32)
                      + b_q_ref[...] + b_a_ref[...])
        # online-softmax / fused-context accumulator state
        m_sc[...] = jnp.full_like(m_sc, -jnp.inf)
        l_sc[...] = jnp.zeros_like(l_sc)
        acc_sc[...] = jnp.zeros_like(acc_sc)

    # ---- per T chunk: recompute pa on the MXU from the resident bf16 chunk.
    annot = annot_ref[...]                                        # (Bb, Tt, Ap) bf16
    pa = jnp.dot(annot.reshape(bb * t_chunk, a_pad), w_a_ref[...],
                 preferred_element_type=f32).reshape(bb, t_chunk, h_pad)
    # TODO(synk): on v6e/v7x the add + tanh below can run in bf16 (bf16 EUP/VPU
    # doubles throughput); kept f32 so the same kernel stays correct/fast on v5e.
    e = jnp.tanh(pq_sc[...][:, None, :] + pa)                     # (Bb, Tt, Hp)
    scores = jnp.sum(e * w_v_ref[...].reshape(1, 1, h_pad), axis=-1)   # (Bb, Tt)

    # mask T padding, stash raw scores for the final alignment write
    t_ids = t_idx * t_chunk + jax.lax.broadcasted_iota(jnp.int32, scores.shape, 1)
    scores = jnp.where(t_ids < t_actual, scores, NEG_BIG)
    col0 = pl.multiple_of(t_idx * t_chunk, LANE)
    scores_sc[:, pl.ds(col0, t_chunk)] = scores

    # online softmax + fused (VPU multiply + sublane reduce) context accumulation
    m_prev = m_sc[...]
    m_new = jnp.maximum(m_prev, jnp.max(scores, axis=-1, keepdims=True))
    alpha = jnp.exp(m_prev - m_new)                               # (Bb, 1)
    p = jnp.exp(scores - m_new)                                   # (Bb, Tt)
    l_sc[...] = alpha * l_sc[...] + jnp.sum(p, axis=-1, keepdims=True)
    ctx_part = jnp.sum(p[:, :, None] * annot.astype(f32), axis=1)  # (Bb, Ap)
    acc_sc[...] = alpha * acc_sc[...] + ctx_part
    m_sc[...] = m_new

    # ---- after the last T chunk: normalize once and write context + alignment.
    @pl.when(t_idx == n_t - 1)
    def _finalize():
        inv_l = pl.reciprocal(l_sc[...], approx=True)             # EUP slot
        ctx_ref[...] = acc_sc[...] * inv_l                        # lane-dense (Ap)
        align_ref[...] = jnp.exp(scores_sc[...] - m_sc[...]) * inv_l  # (Bb, Tp)


# ---------------------------------------------------------------------------
# One-time parameter packing (once per model): split the GRU weight by input
# source (memory / context / hidden), pad every feature dim to a lane multiple,
# and store MXU operands in bf16.
# ---------------------------------------------------------------------------
def pack_params(params, out_dim, annot_dim, memory_dim, *, mxu_dtype=jnp.bfloat16):
    H, A, M = out_dim, annot_dim, memory_dim
    Hp, Ap, Mp = _round_up(H, LANE), _round_up(A, LANE), _round_up(M, LANE)
    f32 = jnp.float32

    wih, whh = params["w_ih_t"], params["w_hh_t"]          # (M+A, 3H), (H, 3H)
    bih, bhh = params["b_ih"], params["b_hh"]               # (1, 3H)
    wih_m, wih_c = wih[:M], wih[M:M + A]

    # gate column blocks (each Hp wide): [r, z, i_n, h_n]
    w_gm = jnp.zeros((Mp, 4 * Hp), f32)
    w_gc = jnp.zeros((Ap, 4 * Hp), f32)
    w_gh = jnp.zeros((Hp, 4 * Hp), f32)
    for g in range(3):                                       # r, z, n (input part)
        w_gm = w_gm.at[:M, g * Hp:g * Hp + H].set(wih_m[:, g * H:(g + 1) * H])
        w_gc = w_gc.at[:A, g * Hp:g * Hp + H].set(wih_c[:, g * H:(g + 1) * H])
    w_gh = w_gh.at[:H, 0 * Hp:0 * Hp + H].set(whh[:, 0 * H:1 * H])   # r
    w_gh = w_gh.at[:H, 1 * Hp:1 * Hp + H].set(whh[:, 1 * H:2 * H])   # z
    w_gh = w_gh.at[:H, 3 * Hp:3 * Hp + H].set(whh[:, 2 * H:3 * H])   # h_n

    b_gru = jnp.zeros((1, 4 * Hp), f32)
    b_gru = b_gru.at[:, 0 * Hp:0 * Hp + H].set(bih[:, 0 * H:1 * H] + bhh[:, 0 * H:1 * H])
    b_gru = b_gru.at[:, 1 * Hp:1 * Hp + H].set(bih[:, 1 * H:2 * H] + bhh[:, 1 * H:2 * H])
    b_gru = b_gru.at[:, 2 * Hp:2 * Hp + H].set(bih[:, 2 * H:3 * H])
    b_gru = b_gru.at[:, 3 * Hp:3 * Hp + H].set(bhh[:, 2 * H:3 * H])

    w_q = jnp.zeros((Hp, Hp), f32).at[:H, :H].set(params["w_q_t"])
    b_q = jnp.zeros((1, Hp), f32).at[:, :H].set(params["b_q"])
    w_a = jnp.zeros((Ap, Hp), f32).at[:A, :H].set(params["w_a_t"])
    b_a = jnp.zeros((1, Hp), f32).at[:, :H].set(params["b_a"])
    w_v = jnp.zeros((1, Hp), f32).at[:, :H].set(params["w_v"])

    return {
        "w_gm": w_gm.astype(mxu_dtype), "w_gc": w_gc.astype(mxu_dtype),
        "w_gh": w_gh.astype(mxu_dtype), "b_gru": b_gru,
        "w_q": w_q.astype(mxu_dtype), "b_q": b_q,
        "w_a": w_a.astype(mxu_dtype), "b_a": b_a, "w_v": w_v,
        "dims": (H, A, M, Hp, Ap, Mp),
    }


# ---------------------------------------------------------------------------
# Once-per-utterance preparation: pad annotations to a lane-aligned bf16 slab.
# Hoisted out of the per-decoder-step path (annotations are constant across
# decoder steps).
# ---------------------------------------------------------------------------
def prepare_attention_inputs(annotations, packed, *, batch_block=64, t_chunk=128,
                             stream_dtype=jnp.bfloat16):
    H, A, M, Hp, Ap, Mp = packed["dims"]
    B, T, a_in = annotations.shape
    assert a_in == A
    Tt = _round_up(max(t_chunk, LANE), LANE)
    Tp = _round_up(T, Tt)
    # batch_block=64 so B >= 128 gives >= 2 (even) batch blocks: engages the
    # second v7x TensorCore and the software pipeline.
    Bb = _round_up(min(batch_block, _round_up(B, SUBLANE)), SUBLANE)
    Bp = _round_up(B, Bb)
    annot_p = jnp.zeros((Bp, Tp, Ap), stream_dtype)
    annot_p = annot_p.at[:B, :T, :A].set(annotations.astype(stream_dtype))
    return {"annot": annot_p, "B": B, "T": T, "Bb": Bb, "Tt": Tt}


# ---------------------------------------------------------------------------
# One AttentionRNN decoder step (the module's mask=None path).
# ---------------------------------------------------------------------------
def attention_rnn(memory, context, rnn_state, prep, packed, *, interpret=False):
    H, A, M, Hp, Ap, Mp = packed["dims"]
    annot_p = prep["annot"]
    B, T, Bb, Tt = prep["B"], prep["T"], prep["Bb"], prep["Tt"]
    Bp, Tp = annot_p.shape[0], annot_p.shape[1]
    n_b, n_t = Bp // Bb, Tp // Tt
    f32 = jnp.float32

    # per-step activations: three small lane-padded refs (no (B, Dx+H) rebuild)
    # TODO(synk): in a full decoder loop keep these buffers persistent and use
    # input_output_aliases to avoid re-padding rnn_state/context every step.
    mem_p = jnp.zeros((Bp, Mp), f32).at[:B, :M].set(memory.astype(f32))
    cin_p = jnp.zeros((Bp, Ap), f32).at[:B, :A].set(context.astype(f32))
    h_p = jnp.zeros((Bp, Hp), f32).at[:B, :H].set(rnn_state.astype(f32))

    kernel = functools.partial(_attention_rnn_kernel, h_pad=Hp, t_actual=T)

    bmap2 = lambda i, t: (i, 0)
    amap = lambda i, t: (i, t, 0)
    wmap = lambda i, t: (0, 0)
    # TODO(synk): mark the constant-index weight specs pipeline_mode=pl.Buffered(1)
    # (single-buffered) once that path is universally supported; frees ~0.5-1 MiB.

    grid_spec = pltpu.PrefetchScalarGridSpec(
        num_scalar_prefetch=0,
        grid=(n_b, n_t),
        in_specs=[
            pl.BlockSpec((Bb, Mp), bmap2),                  # memory
            pl.BlockSpec((Bb, Ap), bmap2),                  # previous context
            pl.BlockSpec((Bb, Hp), bmap2),                  # previous rnn state
            pl.BlockSpec((Bb, Tt, Ap), amap),               # annotations (bf16 stream)
            pl.BlockSpec((Mp, 4 * Hp), wmap),               # GRU weight (memory rows)
            pl.BlockSpec((Ap, 4 * Hp), wmap),               # GRU weight (context rows)
            pl.BlockSpec((Hp, 4 * Hp), wmap),               # GRU weight (hidden rows)
            pl.BlockSpec((1, 4 * Hp), wmap),                # fused GRU bias
            pl.BlockSpec((Hp, Hp), wmap),                   # W_q
            pl.BlockSpec((1, Hp), wmap),                    # b_q
            pl.BlockSpec((Ap, Hp), wmap),                   # W_a
            pl.BlockSpec((1, Hp), wmap),                    # b_a
            pl.BlockSpec((1, Hp), wmap),                    # v
        ],
        out_specs=(
            pl.BlockSpec((Bb, Hp), bmap2),                  # rnn_output
            pl.BlockSpec((Bb, Ap), bmap2),                  # new context
            pl.BlockSpec((Bb, Tp), bmap2),                  # alignment
        ),
        scratch_shapes=[
            pltpu.VMEM((Bb, Hp), f32),                      # processed query
            pltpu.VMEM((Bb, 1), f32),                       # running max
            pltpu.VMEM((Bb, 1), f32),                       # running denominator
            pltpu.VMEM((Bb, Ap), f32),                      # context accumulator
            pltpu.VMEM((Bb, Tp), f32),                      # raw scores
        ],
    )

    # Scoped-VMEM budget: double-buffered streams + resident ins/outs + weights
    # + scratch + in-kernel temporaries (tanh intermediate, ctx temp), capped
    # at 48 MiB (v7x headroom). Reduce t_chunk/batch_block if this saturates.
    bf16_b, f32_b = 2, 4
    annot_stream = 2 * Bb * Tt * Ap * bf16_b
    io_resident = 2 * f32_b * (Bb * (Mp + Ap + Hp) + Bb * (Hp + Ap + Tp))
    weight_bytes = 2 * (bf16_b * ((Mp + Ap + Hp) * 4 * Hp + Hp * Hp + Ap * Hp)
                        + f32_b * (4 * Hp + 3 * Hp))
    scratch_bytes = f32_b * (Bb * Hp + 2 * Bb + Bb * Ap + Bb * Tp)
    temp_bytes = f32_b * Bb * Tt * (Hp + Ap + 4)
    vmem_limit = int(min(max(annot_stream + io_resident + weight_bytes
                             + scratch_bytes + temp_bytes + (4 << 20),
                             16 << 20), 48 << 20))

    cost = pl.CostEstimate(
        flops=int(2 * Bp * ((Mp + Ap + Hp) * 4 * Hp + Hp * Hp)
                  + 2 * Bp * Tp * Ap * Hp
                  + 2 * Bp * Tp * Hp + 2 * Bp * Tp * Ap),
        transcendentals=int(Bp * (Tp * Hp + 3 * Hp + 3 * Tp)),
        bytes_accessed=int(bf16_b * Bp * Tp * Ap
                           + f32_b * Bp * (Mp + 2 * Ap + 2 * Hp + Tp)
                           + n_b * (weight_bytes // 2)),
    )

    rnn_out_p, ctx_out_p, align_p = pl.pallas_call(
        kernel,
        out_shape=(
            jax.ShapeDtypeStruct((Bp, Hp), f32),
            jax.ShapeDtypeStruct((Bp, Ap), f32),
            jax.ShapeDtypeStruct((Bp, Tp), f32),
        ),
        grid_spec=grid_spec,
        compiler_params=pltpu.CompilerParams(
            dimension_semantics=("parallel", "arbitrary"),
            vmem_limit_bytes=vmem_limit,
        ),
        cost_estimate=cost,
        interpret=interpret,
    )(mem_p, cin_p, h_p, annot_p,
      packed["w_gm"], packed["w_gc"], packed["w_gh"], packed["b_gru"],
      packed["w_q"], packed["b_q"], packed["w_a"], packed["b_a"], packed["w_v"])

    return rnn_out_p[:B, :H], ctx_out_p[:B, :A], align_p[:B, :T]


# ---------------------------------------------------------------------------
# Synthetic parameters (PyTorch-default-like uniform init) and references.
# ---------------------------------------------------------------------------
def init_params(key, out_dim, annot_dim, memory_dim):
    gru_in = out_dim + memory_dim   # == memory_dim + context_dim (context = annot)

    def u(k, shape, fan_in):
        bound = 1.0 / jnp.sqrt(float(fan_in))
        return jax.random.uniform(k, shape, jnp.float32, -bound, bound)

    ks = jax.random.split(key, 9)
    return {
        # GRUCell weights stored transposed: (in, 3H); gate order [r, z, n]
        "w_ih_t": u(ks[0], (gru_in, 3 * out_dim), out_dim),
        "w_hh_t": u(ks[1], (out_dim, 3 * out_dim), out_dim),
        "b_ih": u(ks[2], (1, 3 * out_dim), out_dim),
        "b_hh": u(ks[3], (1, 3 * out_dim), out_dim),
        # Attention: query_layer, annot_layer, v
        "w_q_t": u(ks[4], (out_dim, out_dim), out_dim),
        "b_q": u(ks[5], (1, out_dim), out_dim),
        "w_a_t": u(ks[6], (annot_dim, out_dim), annot_dim),
        "b_a": u(ks[7], (1, out_dim), annot_dim),
        "w_v": u(ks[8], (1, out_dim), out_dim),
    }


def reference_forward(memory, context, rnn_state, annotations, p):
    """Pure-f32 equivalent of the PyTorch module's forward (mask=None)."""
    x = jnp.concatenate([memory, context], axis=-1)
    H = rnn_state.shape[-1]
    gi = x @ p["w_ih_t"] + p["b_ih"]
    gh = rnn_state @ p["w_hh_t"] + p["b_hh"]
    r = jax.nn.sigmoid(gi[:, :H] + gh[:, :H])
    z = jax.nn.sigmoid(gi[:, H:2 * H] + gh[:, H:2 * H])
    n = jnp.tanh(gi[:, 2 * H:] + r * gh[:, 2 * H:])
    h_new = (1.0 - z) * n + z * rnn_state
    pq = h_new @ p["w_q_t"] + p["b_q"]
    pa = annotations @ p["w_a_t"] + p["b_a"]
    scores = jnp.sum(jnp.tanh(pq[:, None, :] + pa) * p["w_v"], axis=-1)
    alignment = jax.nn.softmax(scores, axis=-1)
    new_ctx = jnp.einsum("bt,bta->ba", alignment, annotations)
    return h_new, new_ctx, alignment


def reference_forward_kernel_precision(memory, context, rnn_state, annotations, p,
                                       mxu_dtype=jnp.bfloat16):
    """Same math, with the exact rounding the kernel applies (bf16 MXU operands
    and bf16 annotation stream, f32 accumulation everywhere)."""
    c = lambda v: v.astype(mxu_dtype).astype(jnp.float32)
    H = rnn_state.shape[-1]
    x = c(jnp.concatenate([memory, context], axis=-1))
    ann = c(annotations)
    gi = x @ c(p["w_ih_t"]) + p["b_ih"]
    gh = c(rnn_state) @ c(p["w_hh_t"]) + p["b_hh"]
    r = jax.nn.sigmoid(gi[:, :H] + gh[:, :H])
    z = jax.nn.sigmoid(gi[:, H:2 * H] + gh[:, H:2 * H])
    n = jnp.tanh(gi[:, 2 * H:] + r * gh[:, 2 * H:])
    h_new = (1.0 - z) * n + z * rnn_state
    pq = c(h_new) @ c(p["w_q_t"]) + p["b_q"]
    pa = ann @ c(p["w_a_t"]) + p["b_a"]
    scores = jnp.sum(jnp.tanh(pq[:, None, :] + pa) * p["w_v"], axis=-1)
    alignment = jax.nn.softmax(scores, axis=-1)
    new_ctx = jnp.einsum("bt,bta->ba", alignment, ann)
    return h_new, new_ctx, alignment


if __name__ == "__main__":
    # out_dim == annot_dim so the recurrent context feeds back into the GRU
    # with the width GRUCell(input_size=out_dim + memory_dim) expects.
    B, T = 2, 8
    out_dim, annot_dim, memory_dim = 32, 32, 16

    key = jax.random.PRNGKey(0)
    k_mem, k_ctx, k_h, k_ann, k_par = jax.random.split(key, 5)

    memory = jax.random.normal(k_mem, (B, memory_dim), jnp.float32)
    context = jax.random.normal(k_ctx, (B, annot_dim), jnp.float32)
    rnn_state = jax.random.normal(k_h, (B, out_dim), jnp.float32)
    annotations = jax.random.normal(k_ann, (B, T, annot_dim), jnp.float32)

    params = init_params(k_par, out_dim, annot_dim, memory_dim)
    packed = pack_params(params, out_dim, annot_dim, memory_dim)
    prep = prepare_attention_inputs(annotations, packed)

    rnn_out, new_ctx, alignment = attention_rnn(
        memory, context, rnn_state, prep, packed)
    jax.block_until_ready((rnn_out, new_ctx, alignment))

    assert rnn_out.shape == (B, out_dim)
    assert new_ctx.shape == (B, annot_dim)
    assert alignment.shape == (B, T)

    got = (rnn_out, new_ctx, alignment)
    names = ("rnn_output", "context", "alignment")

    # Precision-matched reference (bf16 operands, f32 accumulation): remaining
    # diffs are the approx softmax reciprocal (~2^-12 rel) and accumulation order.
    want_q = reference_forward_kernel_precision(
        memory, context, rnn_state, annotations, params)
    for name, g, w in zip(names, got, want_q):
        assert jnp.allclose(g, w, atol=2e-3, rtol=2e-3), (
            f"{name} mismatch vs precision-matched reference")

    # Full-f32 module reference: loose bound documenting the bf16-stream error.
    want_f32 = reference_forward(memory, context, rnn_state, annotations, params)
    for name, g, w in zip(names, got, want_f32):
        assert jnp.allclose(g, w, atol=1e-1, rtol=1e-1), (
            f"{name} mismatch vs f32 reference")

    print("KERNEL_OK")
</pallas_src>

<mosaic_0001>
module attributes {stable_mosaic.version = 11 : i64} {
  func.func @_attention_rnn_kernel(%arg0: i32, %arg1: i32, %arg2: memref<8x128xf32, #tpu.memory_space<vmem>>, %arg3: memref<8x128xf32, #tpu.memory_space<vmem>>, %arg4: memref<8x128xf32, #tpu.memory_space<vmem>>, %arg5: memref<8x128x128xbf16, #tpu.memory_space<vmem>>, %arg6: memref<128x512xbf16, #tpu.memory_space<vmem>>, %arg7: memref<128x512xbf16, #tpu.memory_space<vmem>>, %arg8: memref<128x512xbf16, #tpu.memory_space<vmem>>, %arg9: memref<1x512xf32, #tpu.memory_space<vmem>>, %arg10: memref<128x128xbf16, #tpu.memory_space<vmem>>, %arg11: memref<1x128xf32, #tpu.memory_space<vmem>>, %arg12: memref<128x128xbf16, #tpu.memory_space<vmem>>, %arg13: memref<1x128xf32, #tpu.memory_space<vmem>>, %arg14: memref<1x128xf32, #tpu.memory_space<vmem>>, %arg15: memref<8x128xf32, #tpu.memory_space<vmem>>, %arg16: memref<8x128xf32, #tpu.memory_space<vmem>>, %arg17: memref<8x128xf32, #tpu.memory_space<vmem>>, %arg18: memref<8x128xf32, #tpu.memory_space<vmem>>, %arg19: memref<8x1xf32, #tpu.memory_space<vmem>>, %arg20: memref<8x1xf32, #tpu.memory_space<vmem>>, %arg21: memref<8x128xf32, #tpu.memory_space<vmem>>, %arg22: memref<8x128xf32, #tpu.memory_space<vmem>>) attributes {dimension_semantics = [#tpu.dimension_semantics<parallel>, #tpu.dimension_semantics<arbitrary>], iteration_bounds = array<i64: 1, 1>, scalar_prefetch = 0 : i64, scratch_operands = 5 : i64, tpu.core_type = #tpu.core_type<tc>, window_params = [{transform_indices = @transform_0, window_bounds = array<i64: 8, 128>}, {transform_indices = @transform_1, window_bounds = array<i64: 8, 128>}, {transform_indices = @transform_2, window_bounds = array<i64: 8, 128>}, {transform_indices = @transform_3, window_bounds = array<i64: 8, 128, 128>}, {pipeline_mode = #tpu.pipeline_mode<synchronous>, transform_indices = @transform_4, window_bounds = array<i64: 128, 512>}, {pipeline_mode = #tpu.pipeline_mode<synchronous>, transform_indices = @transform_5, window_bounds = array<i64: 128, 512>}, {pipeline_mode = #tpu.pipeline_mode<synchronous>, transform_indices = @transform_6, window_bounds = array<i64: 128, 512>}, {pipeline_mode = #tpu.pipeline_mode<synchronous>, transform_indices = @transform_7, window_bounds = array<i64: 1, 512>}, {pipeline_mode = #tpu.pipeline_mode<synchronous>, transform_indices = @transform_8, window_bounds = array<i64: 128, 128>}, {pipeline_mode = #tpu.pipeline_mode<synchronous>, transform_indices = @transform_9, window_bounds = array<i64: 1, 128>}, {pipeline_mode = #tpu.pipeline_mode<synchronous>, transform_indices = @transform_10, window_bounds = array<i64: 128, 128>}, {pipeline_mode = #tpu.pipeline_mode<synchronous>, transform_indices = @transform_11, window_bounds = array<i64: 1, 128>}, {pipeline_mode = #tpu.pipeline_mode<synchronous>, transform_indices = @transform_12, window_bounds = array<i64: 1, 128>}, {transform_indices = @transform_13, window_bounds = array<i64: 8, 128>}, {transform_indices = @transform_14, window_bounds = array<i64: 8, 128>}, {transform_indices = @transform_15, window_bounds = array<i64: 8, 128>}]} {
    %c0_i32 = arith.constant 0 : i32
    %0 = arith.cmpi eq, %arg1, %c0_i32 : i32
    %1 = arith.extui %0 : i1 to i32
    %c0_i32_0 = arith.constant 0 : i32
    %2 = arith.cmpi ne, %1, %c0_i32_0 : i32
    scf.if %2 {
      %c0_30 = arith.constant 0 : index
      %c0_31 = arith.constant 0 : index
      %59 = vector.load %arg4[%c0_30, %c0_31] : memref<8x128xf32, #tpu.memory_space<vmem>>, vector<8x128xf32>
      %c0_32 = arith.constant 0 : index
      %c0_33 = arith.constant 0 : index
      %60 = vector.load %arg2[%c0_32, %c0_33] : memref<8x128xf32, #tpu.memory_space<vmem>>, vector<8x128xf32>
      %61 = arith.truncf %60 : vector<8x128xf32> to vector<8x128xbf16>
      %c0_34 = arith.constant 0 : index
      %c0_35 = arith.constant 0 : index
      %62 = vector.load %arg6[%c0_34, %c0_35] : memref<128x512xbf16, #tpu.memory_space<vmem>>, vector<128x512xbf16>
      %cst_36 = arith.constant dense<0.000000e+00> : vector<8x512xf32>
      %63 = tpu.matmul %61, %62, %cst_36 {dimension_numbers = #tpu.dot_dimension_numbers<[1], [0], [0], [1], [0, 0, 1, 1], [], []>} : vector<8x128xbf16>, vector<128x512xbf16>, vector<8x512xf32> -> vector<8x512xf32>
      %c0_37 = arith.constant 0 : index
      %c0_38 = arith.constant 0 : index
      %64 = vector.load %arg3[%c0_37, %c0_38] : memref<8x128xf32, #tpu.memory_space<vmem>>, vector<8x128xf32>
      %65 = arith.truncf %64 : vector<8x128xf32> to vector<8x128xbf16>
      %c0_39 = arith.constant 0 : index
      %c0_40 = arith.constant 0 : index
      %66 = vector.load %arg7[%c0_39, %c0_40] : memref<128x512xbf16, #tpu.memory_space<vmem>>, vector<128x512xbf16>
      %cst_41 = arith.constant dense<0.000000e+00> : vector<8x512xf32>
      %67 = tpu.matmul %65, %66, %cst_41 {dimension_numbers = #tpu.dot_dimension_numbers<[1], [0], [0], [1], [0, 0, 1, 1], [], []>} : vector<8x128xbf16>, vector<128x512xbf16>, vector<8x512xf32> -> vector<8x512xf32>
      %68 = arith.addf %63, %67 : vector<8x512xf32>
      %69 = arith.truncf %59 : vector<8x128xf32> to vector<8x128xbf16>
      %c0_42 = arith.constant 0 : index
      %c0_43 = arith.constant 0 : index
      %70 = vector.load %arg8[%c0_42, %c0_43] : memref<128x512xbf16, #tpu.memory_space<vmem>>, vector<128x512xbf16>
      %cst_44 = arith.constant dense<0.000000e+00> : vector<8x512xf32>
      %71 = tpu.matmul %69, %70, %cst_44 {dimension_numbers = #tpu.dot_dimension_numbers<[1], [0], [0], [1], [0, 0, 1, 1], [], []>} : vector<8x128xbf16>, vector<128x512xbf16>, vector<8x512xf32> -> vector<8x512xf32>
      %72 = arith.addf %68, %71 : vector<8x512xf32>
      %c0_45 = arith.constant 0 : index
      %c0_46 = arith.constant 0 : index
      %73 = vector.load %arg9[%c0_45, %c0_46] : memref<1x512xf32, #tpu.memory_space<vmem>>, vector<1x512xf32>
      %74 = vector.broadcast %73 : vector<1x512xf32> to vector<8x512xf32>
      %75 = arith.addf %72, %74 : vector<8x512xf32>
      %76 = vector.extract_strided_slice %75 {offsets = [0, 0], sizes = [8, 128], strides = [1, 1]} : vector<8x512xf32> to vector<8x128xf32>
      %77 = arith.negf %76 : vector<8x128xf32>
      %78 = math.exp %77 : vector<8x128xf32>
      %cst_47 = arith.constant 1.000000e+00 : f32
      %79 = vector.broadcast %cst_47 : f32 to vector<8x128xf32>
      %80 = arith.addf %79, %78 : vector<8x128xf32>
      %81 = arith.divf %79, %80 : vector<8x128xf32>
      %82 = vector.extract_strided_slice %75 {offsets = [0, 128], sizes = [8, 128], strides = [1, 1]} : vector<8x512xf32> to vector<8x128xf32>
      %83 = arith.negf %82 : vector<8x128xf32>
      %84 = math.exp %83 : vector<8x128xf32>
      %cst_48 = arith.constant 1.000000e+00 : f32
      %85 = vector.broadcast %cst_48 : f32 to vector<8x128xf32>
      %86 = arith.addf %85, %84 : vector<8x128xf32>
      %87 = arith.divf %85, %86 : vector<8x128xf32>
      %88 = vector.extract_strided_slice %75 {offsets = [0, 256], sizes = [8, 128], strides = [1, 1]} : vector<8x512xf32> to vector<8x128xf32>
      %89 = vector.extract_strided_slice %75 {offsets = [0, 384], sizes = [8, 128], strides = [1, 1]} : vector<8x512xf32> to vector<8x128xf32>
      %90 = arith.mulf %81, %89 : vector<8x128xf32>
      %91 = arith.addf %88, %90 : vector<8x128xf32>
      %92 = math.tanh %91 : vector<8x128xf32>
      %cst_49 = arith.constant 1.000000e+00 : f32
      %93 = vector.broadcast %cst_49 : f32 to vector<8x128xf32>
      %94 = arith.subf %93, %87 : vector<8x128xf32>
      %95 = arith.mulf %94, %92 : vector<8x128xf32>
      %96 = arith.mulf %87, %59 : vector<8x128xf32>
      %97 = arith.addf %95, %96 : vector<8x128xf32>
      %c0_50 = arith.constant 0 : index
      %c0_51 = arith.constant 0 : index
      %98 = vector.load %arg15[%c0_50, %c0_51] : memref<8x128xf32, #tpu.memory_space<vmem>>, vector<8x128xf32>
      tpu.vector_store %arg15[%c0_50, %c0_51], %97 {strides = array<i32>} : memref<8x128xf32, #tpu.memory_space<vmem>>, vector<8x128xf32>,
      %99 = arith.truncf %97 : vector<8x128xf32> to vector<8x128xbf16>
      %c0_52 = arith.constant 0 : index
      %c0_53 = arith.constant 0 : index
      %100 = vector.load %arg10[%c0_52, %c0_53] : memref<128x128xbf16, #tpu.memory_space<vmem>>, vector<128x128xbf16>
      %cst_54 = arith.constant dense<0.000000e+00> : vector<8x128xf32>
      %101 = tpu.matmul %99, %100, %cst_54 {dimension_numbers = #tpu.dot_dimension_numbers<[1], [0], [0], [1], [0, 0, 1, 1], [], []>} : vector<8x128xbf16>, vector<128x128xbf16>, vector<8x128xf32> -> vector<8x128xf32>
      %c0_55 = arith.constant 0 : index
      %c0_56 = arith.constant 0 : index
      %102 = vector.load %arg11[%c0_55, %c0_56] : memref<1x128xf32, #tpu.memory_space<vmem>>, vector<1x128xf32>
      %103 = vector.broadcast %102 : vector<1x128xf32> to vector<8x128xf32>
      %104 = arith.addf %101, %103 : vector<8x128xf32>
      %c0_57 = arith.constant 0 : index
      %c0_58 = arith.constant 0 : index
      %105 = vector.load %arg13[%c0_57, %c0_58] : memref<1x128xf32, #tpu.memory_space<vmem>>, vector<1x128xf32>
      %106 = vector.broadcast %105 : vector<1x128xf32> to vector<8x128xf32>
      %107 = arith.addf %104, %106 : vector<8x128xf32>
      %c0_59 = arith.constant 0 : index
      %c0_60 = arith.constant 0 : index
      %108 = vector.load %arg18[%c0_59, %c0_60] : memref<8x128xf32, #tpu.memory_space<vmem>>, vector<8x128xf32>
      tpu.vector_store %arg18[%c0_59, %c0_60], %107 {strides = array<i32>} : memref<8x128xf32, #tpu.memory_space<vmem>>, vector<8x128xf32>,
      %cst_61 = arith.constant 0xFF800000 : f32
      %109 = vector.broadcast %cst_61 : f32 to vector<8x1xf32>
      %c0_62 = arith.constant 0 : index
      %c0_63 = arith.constant 0 : index
      %110 = vector.load %arg19[%c0_62, %c0_63] : memref<8x1xf32, #tpu.memory_space<vmem>>, vector<8x1xf32>
      tpu.vector_store %arg19[%c0_62, %c0_63], %109 {strides = array<i32>} : memref<8x1xf32, #tpu.memory_space<vmem>>, vector<8x1xf32>,
      %cst_64 = arith.constant 0.000000e+00 : f32
      %111 = vector.broadcast %cst_64 : f32 to vector<8x1xf32>
      %c0_65 = arith.constant 0 : index
      %c0_66 = arith.constant 0 : index
      %112 = vector.load %arg20[%c0_65, %c0_66] : memref<8x1xf32, #tpu.memory_space<vmem>>, vector<8x1xf32>
      tpu.vector_store %arg20[%c0_65, %c0_66], %111 {strides = array<i32>} : memref<8x1xf32, #tpu.memory_space<vmem>>, vector<8x1xf32>,
      %cst_67 = arith.constant 0.000000e+00 : f32
      %113 = vector.broadcast %cst_67 : f32 to vector<8x128xf32>
      %c0_68 = arith.constant 0 : index
      %c0_69 = arith.constant 0 : index
      %114 = vector.load %arg21[%c0_68, %c0_69] : memref<8x128xf32, #tpu.memory_space<vmem>>, vector<8x128xf32>
      tpu.vector_store %arg21[%c0_68, %c0_69], %113 {strides = array<i32>} : memref<8x128xf32, #tpu.memory_space<vmem>>, vector<8x128xf32>,
    } else {
    }
    %c0 = arith.constant 0 : index
    %c0_1 = arith.constant 0 : index
    %c0_2 = arith.constant 0 : index
    %3 = vector.load %arg5[%c0, %c0_1, %c0_2] : memref<8x128x128xbf16, #tpu.memory_space<vmem>>, vector<8x128x128xbf16>
    %4 = vector.shape_cast %3 : vector<8x128x128xbf16> to vector<1024x128xbf16>
    %c0_3 = arith.constant 0 : index
    %c0_4 = arith.constant 0 : index
    %5 = vector.load %arg12[%c0_3, %c0_4] : memref<128x128xbf16, #tpu.memory_space<vmem>>, vector<128x128xbf16>
    %cst = arith.constant dense<0.000000e+00> : vector<1024x128xf32>
    %6 = tpu.matmul %4, %5, %cst {dimension_numbers = #tpu.dot_dimension_numbers<[1], [0], [0], [1], [0, 0, 1, 1], [], []>} : vector<1024x128xbf16>, vector<128x128xbf16>, vector<1024x128xf32> -> vector<1024x128xf32>
    %7 = vector.shape_cast %6 : vector<1024x128xf32> to vector<8x128x128xf32>
    %c0_5 = arith.constant 0 : index
    %c0_6 = arith.constant 0 : index
    %8 = vector.load %arg18[%c0_5, %c0_6] : memref<8x128xf32, #tpu.memory_space<vmem>>, vector<8x128xf32>
    %9 = vector.shape_cast %8 : vector<8x128xf32> to vector<8x1x128xf32>
    %10 = vector.broadcast %9 : vector<8x1x128xf32> to vector<8x128x128xf32>
    %11 = arith.addf %10, %7 : vector<8x128x128xf32>
    %12 = math.tanh %11 : vector<8x128x128xf32>
    %c0_7 = arith.constant 0 : index
    %c0_8 = arith.constant 0 : index
    %13 = vector.load %arg14[%c0_7, %c0_8] : memref<1x128xf32, #tpu.memory_space<vmem>>, vector<1x128xf32>
    %14 = vector.shape_cast %13 : vector<1x128xf32> to vector<1x1x128xf32>
    %15 = vector.broadcast %14 : vector<1x1x128xf32> to vector<8x128x128xf32>
    %16 = arith.mulf %12, %15 : vector<8x128x128xf32>
    %cst_9 = arith.constant dense<0.000000e+00> : vector<8x128xf32>
    %17 = vector.multi_reduction <add>, %16, %cst_9 [2] : vector<8x128x128xf32> to vector<8x128xf32>
    %c128_i32 = arith.constant 128 : i32
    %18 = arith.muli %arg1, %c128_i32 : i32
    %19 = tpu.iota {dimensions = array<i32: 1>} : vector<8x128xi32>
    %20 = vector.broadcast %18 : i32 to vector<8x128xi32>
    %21 = arith.addi %20, %19 : vector<8x128xi32>
    %c8_i32 = arith.constant 8 : i32
    %22 = vector.broadcast %c8_i32 : i32 to vector<8x128xi32>
    %23 = arith.cmpi slt, %21, %22 : vector<8x128xi32>
    %cst_10 = arith.constant -1.000000e+30 : f32
    %24 = vector.broadcast %cst_10 : f32 to vector<8x128xf32>
    %25 = arith.select %23, %17, %24 : vector<8x128xi1>, vector<8x128xf32>
    %c128_i32_11 = arith.constant 128 : i32
    %26 = arith.muli %arg1, %c128_i32_11 : i32
    %27 = tpu.assume_multiple %26, 128 : i32
    %c0_12 = arith.constant 0 : index
    %28 = arith.index_cast %27 : i32 to index
    %29 = vector.load %arg22[%c0_12, %28] : memref<8x128xf32, #tpu.memory_space<vmem>>, vector<8x128xf32>
    tpu.vector_store %arg22[%c0_12, %28], %25 {strides = array<i32>} : memref<8x128xf32, #tpu.memory_space<vmem>>, vector<8x128xf32>,
    %c0_13 = arith.constant 0 : index
    %c0_14 = arith.constant 0 : index
    %30 = vector.load %arg19[%c0_13, %c0_14] : memref<8x1xf32, #tpu.memory_space<vmem>>, vector<8x1xf32>
    %cst_15 = arith.constant dense<0xFF800000> : vector<8xf32>
    %31 = vector.multi_reduction <maximumf>, %25, %cst_15 [1] : vector<8x128xf32> to vector<8xf32>
    %32 = vector.shape_cast %31 : vector<8xf32> to vector<8x1xf32>
    %33 = arith.maximumf %30, %32 : vector<8x1xf32>
    %34 = arith.subf %30, %33 : vector<8x1xf32>
    %35 = math.exp %34 : vector<8x1xf32>
    %36 = vector.broadcast %33 : vector<8x1xf32> to vector<8x128xf32>
    %37 = arith.subf %25, %36 : vector<8x128xf32>
    %38 = math.exp %37 : vector<8x128xf32>
    %c0_16 = arith.constant 0 : index
    %c0_17 = arith.constant 0 : index
    %39 = vector.load %arg20[%c0_16, %c0_17] : memref<8x1xf32, #tpu.memory_space<vmem>>, vector<8x1xf32>
    %40 = arith.mulf %35, %39 : vector<8x1xf32>
    %cst_18 = arith.constant dense<0.000000e+00> : vector<8xf32>
    %41 = vector.multi_reduction <add>, %38, %cst_18 [1] : vector<8x128xf32> to vector<8xf32>
    %42 = vector.shape_cast %41 : vector<8xf32> to vector<8x1xf32>
    %43 = arith.addf %40, %42 : vector<8x1xf32>
    %c0_19 = arith.constant 0 : index
    %c0_20 = arith.constant 0 : index
    %44 = vector.load %arg20[%c0_19, %c0_20] : memref<8x1xf32, #tpu.memory_space<vmem>>, vector<8x1xf32>
    tpu.vector_store %arg20[%c0_19, %c0_20], %43 {strides = array<i32>} : memref<8x1xf32, #tpu.memory_space<vmem>>, vector<8x1xf32>,
    %45 = vector.shape_cast %38 : vector<8x128xf32> to vector<8x128x1xf32>
    %46 = arith.extf %3 : vector<8x128x128xbf16> to vector<8x128x128xf32>
    %47 = vector.broadcast %45 : vector<8x128x1xf32> to vector<8x128x128xf32>
    %48 = arith.mulf %47, %46 : vector<8x128x128xf32>
    %cst_21 = arith.constant dense<0.000000e+00> : vector<8x128xf32>
    %49 = vector.multi_reduction <add>, %48, %cst_21 [1] : vector<8x128x128xf32> to vector<8x128xf32>
    %c0_22 = arith.constant 0 : index
    %c0_23 = arith.constant 0 : index
    %50 = vector.load %arg21[%c0_22, %c0_23] : memref<8x128xf32, #tpu.memory_space<vmem>>, vector<8x128xf32>
    %51 = vector.broadcast %35 : vector<8x1xf32> to vector<8x128xf32>
    %52 = arith.mulf %51, %50 : vector<8x128xf32>
    %53 = arith.addf %52, %49 : vector<8x128xf32>
    %c0_24 = arith.constant 0 : index
    %c0_25 = arith.constant 0 : index
    %54 = vector.load %arg21[%c0_24, %c0_25] : memref<8x128xf32, #tpu.memory_space<vmem>>, vector<8x128xf32>
    tpu.vector_store %arg21[%c0_24, %c0_25], %53 {strides = array<i32>} : memref<8x128xf32, #tpu.memory_space<vmem>>, vector<8x128xf32>,
    %c0_26 = arith.constant 0 : index
    %c0_27 = arith.constant 0 : index
    %55 = vector.load %arg19[%c0_26, %c0_27] : memref<8x1xf32, #tpu.memory_space<vmem>>, vector<8x1xf32>
    tpu.vector_store %arg19[%c0_26, %c0_27], %33 {strides = array<i32>} : memref<8x1xf32, #tpu.memory_space<vmem>>, vector<8x1xf32>,
    %c0_i32_28 = arith.constant 0 : i32
    %56 = arith.cmpi eq, %arg1, %c0_i32_28 : i32
    %57 = arith.extui %56 : i1 to i32
    %c0_i32_29 = arith.constant 0 : i32
    %58 = arith.cmpi ne, %57, %c0_i32_29 : i32
    scf.if %58 {
      %c0_30 = arith.constant 0 : index
      %c0_31 = arith.constant 0 : index
      %59 = vector.load %arg20[%c0_30, %c0_31] : memref<8x1xf32, #tpu.memory_space<vmem>>, vector<8x1xf32>
      %60 = tpu.reciprocal %59 {approx = true} : vector<8x1xf32> -> vector<8x1xf32>
      %c0_32 = arith.constant 0 : index
      %c0_33 = arith.constant 0 : index
      %61 = vector.load %arg21[%c0_32, %c0_33] : memref<8x128xf32, #tpu.memory_space<vmem>>, vector<8x128xf32>
      %62 = vector.broadcast %60 : vector<8x1xf32> to vector<8x128xf32>
      %63 = arith.mulf %61, %62 : vector<8x128xf32>
      %c0_34 = arith.constant 0 : index
      %c0_35 = arith.constant 0 : index
      %64 = vector.load %arg16[%c0_34, %c0_35] : memref<8x128xf32, #tpu.memory_space<vmem>>, vector<8x128xf32>
      tpu.vector_store %arg16[%c0_34, %c0_35], %63 {strides = array<i32>} : memref<8x128xf32, #tpu.memory_space<vmem>>, vector<8x128xf32>,
      %c0_36 = arith.constant 0 : index
      %c0_37 = arith.constant 0 : index
      %65 = vector.load %arg22[%c0_36, %c0_37] : memref<8x128xf32, #tpu.memory_space<vmem>>, vector<8x128xf32>
      %c0_38 = arith.constant 0 : index
      %c0_39 = arith.constant 0 : index
      %66 = vector.load %arg19[%c0_38, %c0_39] : memref<8x1xf32, #tpu.memory_space<vmem>>, vector<8x1xf32>
      %67 = vector.broadcast %66 : vector<8x1xf32> to vector<8x128xf32>
      %68 = arith.subf %65, %67 : vector<8x128xf32>
      %69 = math.exp %68 : vector<8x128xf32>
      %70 = vector.broadcast %60 : vector<8x1xf32> to vector<8x128xf32>
      %71 = arith.mulf %69, %70 : vector<8x128xf32>
      %c0_40 = arith.constant 0 : index
      %c0_41 = arith.constant 0 : index
      %72 = vector.load %arg17[%c0_40, %c0_41] : memref<8x128xf32, #tpu.memory_space<vmem>>, vector<8x128xf32>
      tpu.vector_store %arg17[%c0_40, %c0_41], %71 {strides = array<i32>} : memref<8x128xf32, #tpu.memory_space<vmem>>, vector<8x128xf32>,
    } else {
    }
    return
  }
  func.func @transform_0(%arg0: i32, %arg1: i32) -> (i32, i32) {
    %c0_i32 = arith.constant 0 : i32
    %c0_i32_0 = arith.constant 0 : i32
    return %arg0, %c0_i32 : i32, i32
  }
  func.func @transform_1(%arg0: i32, %arg1: i32) -> (i32, i32) {
    %c0_i32 = arith.constant 0 : i32
    %c0_i32_0 = arith.constant 0 : i32
    return %arg0, %c0_i32 : i32, i32
  }
  func.func @transform_2(%arg0: i32, %arg1: i32) -> (i32, i32) {
    %c0_i32 = arith.constant 0 : i32
    %c0_i32_0 = arith.constant 0 : i32
    return %arg0, %c0_i32 : i32, i32
  }
  func.func @transform_3(%arg0: i32, %arg1: i32) -> (i32, i32, i32) {
    %c0_i32 = arith.constant 0 : i32
    %c0_i32_0 = arith.constant 0 : i32
    return %arg0, %arg1, %c0_i32 : i32, i32, i32
  }
  func.func @transform_4(%arg0: i32, %arg1: i32) -> (i32, i32) {
    %c0_i32 = arith.constant 0 : i32
    %c0_i32_0 = arith.constant 0 : i32
    %c0_i32_1 = arith.constant 0 : i32
    return %c0_i32, %c0_i32_0 : i32, i32
  }
  func.func @transform_5(%arg0: i32, %arg1: i32) -> (i32, i32) {
    %c0_i32 = arith.constant 0 : i32
    %c0_i32_0 = arith.constant 0 : i32
    %c0_i32_1 = arith.constant 0 : i32
    return %c0_i32, %c0_i32_0 : i32, i32
  }
  func.func @transform_6(%arg0: i32, %arg1: i32) -> (i32, i32) {
    %c0_i32 = arith.constant 0 : i32
    %c0_i32_0 = arith.constant 0 : i32
    %c0_i32_1 = arith.constant 0 : i32
    return %c0_i32, %c0_i32_0 : i32, i32
  }
  func.func @transform_7(%arg0: i32, %arg1: i32) -> (i32, i32) {
    %c0_i32 = arith.constant 0 : i32
    %c0_i32_0 = arith.constant 0 : i32
    %c0_i32_1 = arith.constant 0 : i32
    return %c0_i32, %c0_i32_0 : i32, i32
  }
  func.func @transform_8(%arg0: i32, %arg1: i32) -> (i32, i32) {
    %c0_i32 = arith.constant 0 : i32
    %c0_i32_0 = arith.constant 0 : i32
    %c0_i32_1 = arith.constant 0 : i32
    return %c0_i32, %c0_i32_0 : i32, i32
  }
  func.func @transform_9(%arg0: i32, %arg1: i32) -> (i32, i32) {
    %c0_i32 = arith.constant 0 : i32
    %c0_i32_0 = arith.constant 0 : i32
    %c0_i32_1 = arith.constant 0 : i32
    return %c0_i32, %c0_i32_0 : i32, i32
  }
  func.func @transform_10(%arg0: i32, %arg1: i32) -> (i32, i32) {
    %c0_i32 = arith.constant 0 : i32
    %c0_i32_0 = arith.constant 0 : i32
    %c0_i32_1 = arith.constant 0 : i32
    return %c0_i32, %c0_i32_0 : i32, i32
  }
  func.func @transform_11(%arg0: i32, %arg1: i32) -> (i32, i32) {
    %c0_i32 = arith.constant 0 : i32
    %c0_i32_0 = arith.constant 0 : i32
    %c0_i32_1 = arith.constant 0 : i32
    return %c0_i32, %c0_i32_0 : i32, i32
  }
  func.func @transform_12(%arg0: i32, %arg1: i32) -> (i32, i32) {
    %c0_i32 = arith.constant 0 : i32
    %c0_i32_0 = arith.constant 0 : i32
    %c0_i32_1 = arith.constant 0 : i32
    return %c0_i32, %c0_i32_0 : i32, i32
  }
  func.func @transform_13(%arg0: i32, %arg1: i32) -> (i32, i32) {
    %c0_i32 = arith.constant 0 : i32
    %c0_i32_0 = arith.constant 0 : i32
    return %arg0, %c0_i32 : i32, i32
  }
  func.func @transform_14(%arg0: i32, %arg1: i32) -> (i32, i32) {
    %c0_i32 = arith.constant 0 : i32
    %c0_i32_0 = arith.constant 0 : i32
    return %arg0, %c0_i32 : i32, i32
  }
  func.func @transform_15(%arg0: i32, %arg1: i32) -> (i32, i32) {
    %c0_i32 = arith.constant 0 : i32
    %c0_i32_0 = arith.constant 0 : i32
    return %arg0, %c0_i32 : i32, i32
  }
}

</mosaic_0001>

<llo_original>
// kernel: tpu_custom_call.1
$region0: #{tpu_custom_call.1}
  #allocation0 [shape = 'u32[]', space=smem, size = 0x4, offset = 0x4, fixed_abs, tag = 'smem constant byte address 0x4 - core index']
  #allocation1 [shape = 'u32[72,128]{1,0:T(1,128)}', space=vmem, size = 0x9000, scoped, tag = 'internal scratch']
  #allocation2 [shape = 'f32[8,128]{1,0:T(8,128)}', space=vmem, size = 0x1000, scoped, tag = 'scratch operand']
  #allocation3 [shape = 'f32[8,1]{1,0:T(8,128)}', space=vmem, size = 0x1000, scoped, tag = 'scratch operand']
  #allocation4 [shape = 'f32[8,1]{1,0:T(8,128)}', space=vmem, size = 0x1000, scoped, tag = 'scratch operand']
  #allocation5 [shape = 'f32[8,128]{1,0:T(8,128)}', space=vmem, size = 0x1000, scoped, tag = 'scratch operand']
  #allocation6 [shape = 'f32[8,128]{1,0:T(8,128)}', space=vmem, size = 0x1000, scoped, tag = 'scratch operand']
  %s0 = inlined_call_operand.hbm [shape: f32[8,128], index: 0, kind: input, shape index: {}]
  %s1 = inlined_call_operand.hbm [shape: f32[8,128], index: 1, kind: input, shape index: {}]
  %s2 = inlined_call_operand.hbm [shape: f32[8,128], index: 2, kind: input, shape index: {}]
  %s3 = inlined_call_operand.hbm [shape: bf16[8,128,128], index: 3, kind: input, shape index: {}]
  %s4 = inlined_call_operand.hbm [shape: bf16[128,512], index: 4, kind: input, shape index: {}]
  %s5 = inlined_call_operand.hbm [shape: bf16[128,512], index: 5, kind: input, shape index: {}]
  %s6 = inlined_call_operand.hbm [shape: bf16[128,512], index: 6, kind: input, shape index: {}]
  %s7 = inlined_call_operand.vmem [shape: f32[1,512], index: 7, kind: input, shape index: {}]
  %s8 = inlined_call_operand.hbm [shape: bf16[128,128], index: 8, kind: input, shape index: {}]
  %s9 = inlined_call_operand.vmem [shape: f32[1,128], index: 9, kind: input, shape index: {}]
  %s10 = inlined_call_operand.hbm [shape: bf16[128,128], index: 10, kind: input, shape index: {}]
  %s11 = inlined_call_operand.vmem [shape: f32[1,128], index: 11, kind: input, shape index: {}]
  %s12 = inlined_call_operand.vmem [shape: f32[1,128], index: 12, kind: input, shape index: {}]
  %s13 = inlined_call_operand.hbm [shape: f32[8,128], index: 13, kind: output, shape index: {0}]
  %s14 = inlined_call_operand.hbm [shape: f32[8,128], index: 14, kind: output, shape index: {1}]
  %s15 = inlined_call_operand.hbm [shape: f32[8,128], index: 15, kind: output, shape index: {2}]
  %16 = xla_tuple %s13, %s14, %s15
  %s17 = sld [smem:[#allocation0]]
  $region122: #{tpu_custom_call.1} parent=0
    _
  %s19 = ssub.s32 1, %s17
  %s20 = scalar_select 0, %s19, %s17
  $region1: #{tpu_custom_call.1} parent=0
    #allocation7 [shape = 'u8[4096]{0}', space=vmem, size = 0x1000, scoped, tag = 'input window, operand 0, single buffered']
    #allocation8 [shape = 's32[1]{0}', space=sflag, size = 0x4, scoped, tag = 'scoped memory for tpu_custom_call.1']
    #allocation9 [shape = 's32[1]{0}', space=sflag, size = 0x4, scoped, tag = 'scoped memory for tpu_custom_call.1']
    #allocation10 [shape = 'u8[4096]{0}', space=vmem, size = 0x1000, scoped, tag = 'input window, operand 1, single buffered']
    #allocation11 [shape = 's32[1]{0}', space=sflag, size = 0x4, scoped, tag = 'scoped memory for tpu_custom_call.1']
    #allocation12 [shape = 'u8[4096]{0}', space=vmem, size = 0x1000, scoped, tag = 'input window, operand 2, single buffered']
    #allocation13 [shape = 'u8[262144]{0}', space=vmem, size = 0x40000, scoped, tag = 'input window, operand 3, single buffered']
    #allocation14 [shape = 's32[1]{0}', space=sflag, size = 0x4, scoped, tag = 'scoped memory for tpu_custom_call.1']
    #allocation15 [shape = 'u8[131072]{0}', space=vmem, size = 0x20000, scoped, tag = 'input window, operand 4, single buffered']
    #allocation16 [shape = 'u8[131072]{0}', space=vmem, size = 0x20000, scoped, tag = 'input window, operand 5, single buffered']
    #allocation17 [shape = 's32[1]{0}', space=sflag, size = 0x4, scoped, tag = 'scoped memory for tpu_custom_call.1']
    #allocation18 [shape = 'u8[131072]{0}', space=vmem, size = 0x20000, scoped, tag = 'input window, operand 6, single buffered']
    #allocation19 [shape = 'u8[32768]{0}', space=vmem, size = 0x8000, scoped, tag = 'input window, operand 8, single buffered']
    #allocation20 [shape = 's32[1]{0}', space=sflag, size = 0x4, scoped, tag = 'scoped memory for tpu_custom_call.1']
    #allocation21 [shape = 'u8[32768]{0}', space=vmem, size = 0x8000, scoped, tag = 'input window, operand 10, single buffered']
    #allocation22 [shape = 'u8[4096]{0}', space=vmem, size = 0x1000, scoped, tag = 'output window, operand 0, single buffered']
    #allocation23 [shape = 'u8[4096]{0}', space=vmem, size = 0x1000, scoped, tag = 'output window, operand 1, single buffered']
    #allocation24 [shape = 's32[1]{0}', space=sflag, size = 0x4, scoped, tag = 'scoped memory for tpu_custom_call.1']
    #allocation25 [shape = 'u8[4096]{0}', space=vmem, size = 0x1000, scoped, tag = 'output window, operand 2, single buffered']
    %21 = vsyncpa [#allocation8], 0
    %22 = vsyncpa [#allocation11], 0
    %23 = vsyncpa [#allocation14], 0
    %24 = vsyncpa [#allocation17], 0
    %25 = vsyncpa [#allocation20], 0
    %26 = vsyncpa [#allocation9], 0
    %27 = vsyncpa [#allocation24], 0
    // Predicated region
    $region2: #{tpu_custom_call.1} parent=1 // pred_check
      _
    $region3: #{tpu_custom_call.1} parent=1 // pred_check_branch
      %29 = sbr.rel (0) target = $region5
    $region4: #{tpu_custom_call.1} parent=1 // pred_region
      %31 = vsyncadd [#allocation8], 0
      %s33 = sshll.u32 %s0, 4
      %s34 = int_to_ptr.hbm [resolvable:$true] %s33
      %s35 = sshll.u32 [#allocation7], 4
      %s36 = int_to_ptr.vmem [resolvable:$true] %s35
      %38 = dma.hbm_to_vmem [thread:$0]  %s34, 128, %s36, [#allocation8]
    $region5: #{tpu_custom_call.1} parent=1 // pred_fallthru
      _
    // Predicated region
    $region6: #{tpu_custom_call.1} parent=1 // pred_check
      _
    $region7: #{tpu_custom_call.1} parent=1 // pred_check_branch
      %40 = sbr.rel (0) target = $region9
    $region8: #{tpu_custom_call.1} parent=1 // pred_region
      %42 = vsyncadd [#allocation11], 0
      %s44 = sshll.u32 %s1, 4
      %s45 = int_to_ptr.hbm [resolvable:$true] %s44
      %s46 = sshll.u32 [#allocation10], 4
      %s47 = int_to_ptr.vmem [resolvable:$true] %s46
      %49 = dma.hbm_to_vmem [thread:$0]  %s45, 128, %s47, [#allocation11]
    $region9: #{tpu_custom_call.1} parent=1 // pred_fallthru
      _
    // Predicated region
    $region10: #{tpu_custom_call.1} parent=1 // pred_check
      _
    $region11: #{tpu_custom_call.1} parent=1 // pred_check_branch
      %51 = sbr.rel (0) target = $region13
    $region12: #{tpu_custom_call.1} parent=1 // pred_region
      %53 = vsyncadd [#allocation11], 0
      %s55 = sshll.u32 %s2, 4
      %s56 = int_to_ptr.hbm [resolvable:$true] %s55
      %s57 = sshll.u32 [#allocation12], 4
      %s58 = int_to_ptr.vmem [resolvable:$true] %s57
      %60 = dma.hbm_to_vmem [thread:$0]  %s56, 128, %s58, [#allocation11]
    $region13: #{tpu_custom_call.1} parent=1 // pred_fallthru
      _
    // Predicated region
    $region14: #{tpu_custom_call.1} parent=1 // pred_check
      _
    $region15: #{tpu_custom_call.1} parent=1 // pred_check_branch
      %62 = sbr.rel (0) target = $region17
    $region16: #{tpu_custom_call.1} parent=1 // pred_region
      %64 = vsyncadd [#allocation14], 0
      %s65 = sshll.u32 %s3, 4
      %s66 = int_to_ptr.hbm [resolvable:$true] %s65
      %s67 = sshll.u32 [#allocation13], 4
      %s68 = int_to_ptr.vmem [resolvable:$true] %s67
      %73 = dma.hbm_to_vmem [thread:$0]  %s66, 8192, %s68, [#allocation14], 64, 64, 4
    $region17: #{tpu_custom_call.1} parent=1 // pred_fallthru
      _
    // Predicated region
    $region18: #{tpu_custom_call.1} parent=1 // pred_check
      _
    $region19: #{tpu_custom_call.1} parent=1 // pred_check_branch
      %75 = sbr.rel (0) target = $region21
    $region20: #{tpu_custom_call.1} parent=1 // pred_region
      %77 = vsyncadd [#allocation14], 0
      %s78 = sshll.u32 %s4, 4
      %s79 = int_to_ptr.hbm [resolvable:$true] %s78
      %s80 = sshll.u32 [#allocation15], 4
      %s81 = int_to_ptr.vmem [resolvable:$true] %s80
      %86 = dma.hbm_to_vmem [thread:$0]  %s79, 4096, %s81, [#allocation14], 256, 256, 16
    $region21: #{tpu_custom_call.1} parent=1 // pred_fallthru
      _
    // Predicated region
    $region22: #{tpu_custom_call.1} parent=1 // pred_check
      _
    $region23: #{tpu_custom_call.1} parent=1 // pred_check_branch
      %88 = sbr.rel (0) target = $region25
    $region24: #{tpu_custom_call.1} parent=1 // pred_region
      %90 = vsyncadd [#allocation17], 0
      %s91 = sshll.u32 %s5, 4
      %s92 = int_to_ptr.hbm [resolvable:$true] %s91
      %s93 = sshll.u32 [#allocation16], 4
      %s94 = int_to_ptr.vmem [resolvable:$true] %s93
      %99 = dma.hbm_to_vmem [thread:$0]  %s92, 4096, %s94, [#allocation17], 256, 256, 16
    $region25: #{tpu_custom_call.1} parent=1 // pred_fallthru
      _
    // Predicated region
    $region26: #{tpu_custom_call.1} parent=1 // pred_check
      _
    $region27: #{tpu_custom_call.1} parent=1 // pred_check_branch
      %101 = sbr.rel (0) target = $region29
    $region28: #{tpu_custom_call.1} parent=1 // pred_region
      %103 = vsyncadd [#allocation17], 0
      %s104 = sshll.u32 %s6, 4
      %s105 = int_to_ptr.hbm [resolvable:$true] %s104
      %s106 = sshll.u32 [#allocation18], 4
      %s107 = int_to_ptr.vmem [resolvable:$true] %s106
      %112 = dma.hbm_to_vmem [thread:$0]  %s105, 4096, %s107, [#allocation17], 256, 256, 16
    $region29: #{tpu_custom_call.1} parent=1 // pred_fallthru
      _
    // Predicated region
    $region30: #{tpu_custom_call.1} parent=1 // pred_check
      _
    $region31: #{tpu_custom_call.1} parent=1 // pred_check_branch
      %114 = sbr.rel (0) target = $region33
    $region32: #{tpu_custom_call.1} parent=1 // pred_region
      _
    $region33: #{tpu_custom_call.1} parent=1 // pred_fallthru
      _
    // Predicated region
    $region34: #{tpu_custom_call.1} parent=1 // pred_check
      _
    $region35: #{tpu_custom_call.1} parent=1 // pred_check_branch
      %116 = sbr.rel (0) target = $region37
    $region36: #{tpu_custom_call.1} parent=1 // pred_region
      %118 = vsyncadd [#allocation20], 0
      %s119 = sshll.u32 %s8, 4
      %s120 = int_to_ptr.hbm [resolvable:$true] %s119
      %s121 = sshll.u32 [#allocation19], 4
      %s122 = int_to_ptr.vmem [resolvable:$true] %s121
      %127 = dma.hbm_to_vmem [thread:$0]  %s120, 1024, %s122, [#allocation20], 64, 64, 4
    $region37: #{tpu_custom_call.1} parent=1 // pred_fallthru
      _
    // Predicated region
    $region38: #{tpu_custom_call.1} parent=1 // pred_check
      _
    $region39: #{tpu_custom_call.1} parent=1 // pred_check_branch
      %129 = sbr.rel (0) target = $region41
    $region40: #{tpu_custom_call.1} parent=1 // pred_region
      _
    $region41: #{tpu_custom_call.1} parent=1 // pred_fallthru
      _
    // Predicated region
    $region42: #{tpu_custom_call.1} parent=1 // pred_check
      _
    $region43: #{tpu_custom_call.1} parent=1 // pred_check_branch
      %131 = sbr.rel (0) target = $region45
    $region44: #{tpu_custom_call.1} parent=1 // pred_region
      %133 = vsyncadd [#allocation20], 0
      %s134 = sshll.u32 %s10, 4
      %s135 = int_to_ptr.hbm [resolvable:$true] %s134
      %s136 = sshll.u32 [#allocation21], 4
      %s137 = int_to_ptr.vmem [resolvable:$true] %s136
      %142 = dma.hbm_to_vmem [thread:$0]  %s135, 1024, %s137, [#allocation20], 64, 64, 4
    $region45: #{tpu_custom_call.1} parent=1 // pred_fallthru
      _
    // Predicated region
    $region46: #{tpu_custom_call.1} parent=1 // pred_check
      _
    $region47: #{tpu_custom_call.1} parent=1 // pred_check_branch
      %144 = sbr.rel (0) target = $region49
    $region48: #{tpu_custom_call.1} parent=1 // pred_region
      _
    $region49: #{tpu_custom_call.1} parent=1 // pred_fallthru
      _
    // Predicated region
    $region50: #{tpu_custom_call.1} parent=1 // pred_check
      _
    $region51: #{tpu_custom_call.1} parent=1 // pred_check_branch
      %146 = sbr.rel (0) target = $region53
    $region52: #{tpu_custom_call.1} parent=1 // pred_region
      _
    $region53: #{tpu_custom_call.1} parent=1 // pred_fallthru
      _
    // Predicated region
    $region54: #{tpu_custom_call.1} parent=1 // pred_check
      _
    $region55: #{tpu_custom_call.1} parent=1 // pred_check_branch
      %148 = sbr.rel (0) target = $region57
    $region56: #{tpu_custom_call.1} parent=1 // pred_region
      %150 = dma.done [#allocation8], 128
    $region57: #{tpu_custom_call.1} parent=1 // pred_fallthru
      _
    // Predicated region
    $region58: #{tpu_custom_call.1} parent=1 // pred_check
      _
    $region59: #{tpu_custom_call.1} parent=1 // pred_check_branch
      %152 = sbr.rel (0) target = $region61
    $region60: #{tpu_custom_call.1} parent=1 // pred_region
      %154 = dma.done [#allocation11], 128
    $region61: #{tpu_custom_call.1} parent=1 // pred_fallthru
      _
    // Predicated region
    $region62: #{tpu_custom_call.1} parent=1 // pred_check
      _
    $region63: #{tpu_custom_call.1} parent=1 // pred_check_branch
      %156 = sbr.rel (0) target = $region65
    $region64: #{tpu_custom_call.1} parent=1 // pred_region
      %158 = dma.done [#allocation11], 128
    $region65: #{tpu_custom_call.1} parent=1 // pred_fallthru
      _
    // Predicated region
    $region66: #{tpu_custom_call.1} parent=1 // pred_check
      _
    $region67: #{tpu_custom_call.1} parent=1 // pred_check_branch
      %160 = sbr.rel (0) target = $region69
    $region68: #{tpu_custom_call.1} parent=1 // pred_region
      %162 = dma.done [#allocation14], 8192
    $region69: #{tpu_custom_call.1} parent=1 // pred_fallthru
      _
    // Predicated region
    $region70: #{tpu_custom_call.1} parent=1 // pred_check
      _
    $region71: #{tpu_custom_call.1} parent=1 // pred_check_branch
      %164 = sbr.rel (0) target = $region73
    $region72: #{tpu_custom_call.1} parent=1 // pred_region
      %166 = dma.done [#allocation14], 4096
    $region73: #{tpu_custom_call.1} parent=1 // pred_fallthru
      _
    // Predicated region
    $region74: #{tpu_custom_call.1} parent=1 // pred_check
      _
    $region75: #{tpu_custom_call.1} parent=1 // pred_check_branch
      %168 = sbr.rel (0) target = $region77
    $region76: #{tpu_custom_call.1} parent=1 // pred_region
      %170 = dma.done [#allocation17], 4096
    $region77: #{tpu_custom_call.1} parent=1 // pred_fallthru
      _
    // Predicated region
    $region78: #{tpu_custom_call.1} parent=1 // pred_check
      _
    $region79: #{tpu_custom_call.1} parent=1 // pred_check_branch
      %172 = sbr.rel (0) target = $region81
    $region80: #{tpu_custom_call.1} parent=1 // pred_region
      %174 = dma.done [#allocation17], 4096
    $region81: #{tpu_custom_call.1} parent=1 // pred_fallthru
      _
    // Predicated region
    $region82: #{tpu_custom_call.1} parent=1 // pred_check
      _
    $region83: #{tpu_custom_call.1} parent=1 // pred_check_branch
      %176 = sbr.rel (0) target = $region85
    $region84: #{tpu_custom_call.1} parent=1 // pred_region
      %178 = dma.done [#allocation20], 1024
    $region85: #{tpu_custom_call.1} parent=1 // pred_fallthru
      _
    // Predicated region
    $region86: #{tpu_custom_call.1} parent=1 // pred_check
      _
    $region87: #{tpu_custom_call.1} parent=1 // pred_check_branch
      %180 = sbr.rel (0) target = $region89
    $region88: #{tpu_custom_call.1} parent=1 // pred_region
      %182 = dma.done [#allocation20], 1024
    $region89: #{tpu_custom_call.1} parent=1 // pred_fallthru
      _
    %p183 = scmp.eq.s32.totalorder 0, 0
    // Predicated region
    $region90: #{tpu_custom_call.1} parent=1 // pred_check
      %p184 = pneg %p183
    $region91: #{tpu_custom_call.1} parent=1 // pred_check_branch
      %186 = sbr.rel (%p184) target = $region93
    $region92: #{tpu_custom_call.1} parent=1 // pred_region
      %v187 = vld [vmem:[#allocation12] sm:$0xff]
      %v188 = vld [vmem:[#allocation7] sm:$0xff]
      %v189 = vpack.c.bf16 %v188, %v188
      %v190 = vld [vmem:[#allocation15] sm:$0xff]
      %v191 = vld [vmem:[#allocation15 + $0x8] sm:$0xff]
      %v192 = vld [vmem:[#allocation15 + $0x10] sm:$0xff]
      %v193 = vld [vmem:[#allocation15 + $0x18] sm:$0xff]
      %v194 = vld [vmem:[#allocation15 + $0x20] sm:$0xff]
      %v195 = vld [vmem:[#allocation15 + $0x28] sm:$0xff]
      %v196 = vld [vmem:[#allocation15 + $0x30] sm:$0xff]
      %v197 = vld [vmem:[#allocation15 + $0x38] sm:$0xff]
      %v198 = vld [vmem:[#allocation15 + $0x40] sm:$0xff]
      %v199 = vld [vmem:[#allocation15 + $0x48] sm:$0xff]
      %v200 = vld [vmem:[#allocation15 + $0x50] sm:$0xff]
      %v201 = vld [vmem:[#allocation15 + $0x58] sm:$0xff]
      %v202 = vld [vmem:[#allocation15 + $0x60] sm:$0xff]
      %v203 = vld [vmem:[#allocation15 + $0x68] sm:$0xff]
      %v204 = vld [vmem:[#allocation15 + $0x70] sm:$0xff]
      %v205 = vld [vmem:[#allocation15 + $0x78] sm:$0xff]
      %v206 = vld [vmem:[#allocation15 + $0x80] sm:$0xff]
      %v207 = vld [vmem:[#allocation15 + $0x88] sm:$0xff]
      %v208 = vld [vmem:[#allocation15 + $0x90] sm:$0xff]
      %v209 = vld [vmem:[#allocation15 + $0x98] sm:$0xff]
      %v210 = vld [vmem:[#allocation15 + $0xa0] sm:$0xff]
      %v211 = vld [vmem:[#allocation15 + $0xa8] sm:$0xff]
      %v212 = vld [vmem:[#allocation15 + $0xb0] sm:$0xff]
      %v213 = vld [vmem:[#allocation15 + $0xb8] sm:$0xff]
      %v214 = vld [vmem:[#allocation15 + $0xc0] sm:$0xff]
      %v215 = vld [vmem:[#allocation15 + $0xc8] sm:$0xff]
      %v216 = vld [vmem:[#allocation15 + $0xd0] sm:$0xff]
      %v217 = vld [vmem:[#allocation15 + $0xd8] sm:$0xff]
      %v218 = vld [vmem:[#allocation15 + $0xe0] sm:$0xff]
      %v219 = vld [vmem:[#allocation15 + $0xe8] sm:$0xff]
      %v220 = vld [vmem:[#allocation15 + $0xf0] sm:$0xff]
      %v221 = vld [vmem:[#allocation15 + $0xf8] sm:$0xff]
      %v222 = vld [vmem:[#allocation10] sm:$0xff]
      %v223 = vpack.c.bf16 %v222, %v222
      %v224 = vld [vmem:[#allocation16] sm:$0xff]
      %v225 = vld [vmem:[#allocation16 + $0x8] sm:$0xff]
      %v226 = vld [vmem:[#allocation16 + $0x10] sm:$0xff]
      %v227 = vld [vmem:[#allocation16 + $0x18] sm:$0xff]
      %v228 = vld [vmem:[#allocation16 + $0x20] sm:$0xff]
      %v229 = vld [vmem:[#allocation16 + $0x28] sm:$0xff]
      %v230 = vld [vmem:[#allocation16 + $0x30] sm:$0xff]
      %v231 = vld [vmem:[#allocation16 + $0x38] sm:$0xff]
      %v232 = vld [vmem:[#allocation16 + $0x40] sm:$0xff]
      %v233 = vld [vmem:[#allocation16 + $0x48] sm:$0xff]
      %v234 = vld [vmem:[#allocation16 + $0x50] sm:$0xff]
      %v235 = vld [vmem:[#allocation16 + $0x58] sm:$0xff]
      %v236 = vld [vmem:[#allocation16 + $0x60] sm:$0xff]
      %v237 = vld [vmem:[#allocation16 + $0x68] sm:$0xff]
      %v238 = vld [vmem:[#allocation16 + $0x70] sm:$0xff]
      %v239 = vld [vmem:[#allocation16 + $0x78] sm:$0xff]
      %v240 = vld [vmem:[#allocation16 + $0x80] sm:$0xff]
      %v241 = vld [vmem:[#allocation16 + $0x88] sm:$0xff]
      %v242 = vld [vmem:[#allocation16 + $0x90] sm:$0xff]
      %v243 = vld [vmem:[#allocation16 + $0x98] sm:$0xff]
      %v244 = vld [vmem:[#allocation16 + $0xa0] sm:$0xff]
      %v245 = vld [vmem:[#allocation16 + $0xa8] sm:$0xff]
      %v246 = vld [vmem:[#allocation16 + $0xb0] sm:$0xff]
      %v247 = vld [vmem:[#allocation16 + $0xb8] sm:$0xff]
      %v248 = vld [vmem:[#allocation16 + $0xc0] sm:$0xff]
      %v249 = vld [vmem:[#allocation16 + $0xc8] sm:$0xff]
      %v250 = vld [vmem:[#allocation16 + $0xd0] sm:$0xff]
      %v251 = vld [vmem:[#allocation16 + $0xd8] sm:$0xff]
      %v252 = vld [vmem:[#allocation16 + $0xe0] sm:$0xff]
      %v253 = vld [vmem:[#allocation16 + $0xe8] sm:$0xff]
      %v254 = vld [vmem:[#allocation16 + $0xf0] sm:$0xff]
      %v255 = vld [vmem:[#allocation16 + $0xf8] sm:$0xff]
      %v288 = vunpack.c.l.b16 %v224
      %v289 = vunpack.c.h.b16 %v224
      %v290 = vunpack.c.l.b16 %v225
      %v291 = vunpack.c.h.b16 %v225
      %v292 = vunpack.c.l.b16 %v226
      %v293 = vunpack.c.h.b16 %v226
      %v294 = vunpack.c.l.b16 %v227
      %v295 = vunpack.c.h.b16 %v227
      %v296 = vunpack.c.l.b16 %v228
      %v297 = vunpack.c.h.b16 %v228
      %v298 = vunpack.c.l.b16 %v229
      %v299 = vunpack.c.h.b16 %v229
      %v300 = vunpack.c.l.b16 %v230
      %v301 = vunpack.c.h.b16 %v230
      %v302 = vunpack.c.l.b16 %v231
      %v303 = vunpack.c.h.b16 %v231
      %v304 = vunpack.c.l.b16 %v232
      %v305 = vunpack.c.h.b16 %v232
      %v306 = vunpack.c.l.b16 %v233
      %v307 = vunpack.c.h.b16 %v233
      %v308 = vunpack.c.l.b16 %v234
      %v309 = vunpack.c.h.b16 %v234
      %v310 = vunpack.c.l.b16 %v235
      %v311 = vunpack.c.h.b16 %v235
      %v312 = vunpack.c.l.b16 %v236
      %v313 = vunpack.c.h.b16 %v236
      %v314 = vunpack.c.l.b16 %v237
      %v315 = vunpack.c.h.b16 %v237
      %v316 = vunpack.c.l.b16 %v238
      %v317 = vunpack.c.h.b16 %v238
      %v318 = vunpack.c.l.b16 %v239
      %v319 = vunpack.c.h.b16 %v239
      %v320 = vunpack.c.l.b16 %v240
      %v321 = vunpack.c.h.b16 %v240
      %v322 = vunpack.c.l.b16 %v241
      %v323 = vunpack.c.h.b16 %v241
      %v324 = vunpack.c.l.b16 %v242
      %v325 = vunpack.c.h.b16 %v242
      %v326 = vunpack.c.l.b16 %v243
      %v327 = vunpack.c.h.b16 %v243
      %v328 = vunpack.c.l.b16 %v244
      %v329 = vunpack.c.h.b16 %v244
      %v330 = vunpack.c.l.b16 %v245
      %v331 = vunpack.c.h.b16 %v245
      %v332 = vunpack.c.l.b16 %v246
      %v333 = vunpack.c.h.b16 %v246
      %v334 = vunpack.c.l.b16 %v247
      %v335 = vunpack.c.h.b16 %v247
      %v336 = vunpack.c.l.b16 %v248
      %v337 = vunpack.c.h.b16 %v248
      %v338 = vunpack.c.l.b16 %v249
      %v339 = vunpack.c.h.b16 %v249
      %v340 = vunpack.c.l.b16 %v250
      %v341 = vunpack.c.h.b16 %v250
      %v342 = vunpack.c.l.b16 %v251
      %v343 = vunpack.c.h.b16 %v251
      %v344 = vunpack.c.l.b16 %v252
      %v345 = vunpack.c.h.b16 %v252
      %v346 = vunpack.c.l.b16 %v253
      %v347 = vunpack.c.h.b16 %v253
      %v348 = vunpack.c.l.b16 %v254
      %v349 = vunpack.c.h.b16 %v254
      %v350 = vunpack.c.l.b16 %v255
      %v351 = vunpack.c.h.b16 %v255
      %v352 = vpack.c.b16 %v292, %v288
      %v353 = vpack.c.b16 %v293, %v289
      %v354 = vpack.c.b16 %v294, %v290
      %v355 = vpack.c.b16 %v295, %v291
      %v356 = vpack.c.b16 %v300, %v296
      %v357 = vpack.c.b16 %v301, %v297
      %v358 = vpack.c.b16 %v302, %v298
      %v359 = vpack.c.b16 %v303, %v299
      %v360 = vpack.c.b16 %v308, %v304
      %v361 = vpack.c.b16 %v309, %v305
      %v362 = vpack.c.b16 %v310, %v306
      %v363 = vpack.c.b16 %v311, %v307
      %v364 = vpack.c.b16 %v316, %v312
      %v365 = vpack.c.b16 %v317, %v313
      %v366 = vpack.c.b16 %v318, %v314
      %v367 = vpack.c.b16 %v319, %v315
      %v368 = vpack.c.b16 %v324, %v320
      %v369 = vpack.c.b16 %v325, %v321
      %v370 = vpack.c.b16 %v326, %v322
      %v371 = vpack.c.b16 %v327, %v323
      %v372 = vpack.c.b16 %v332, %v328
      %v373 = vpack.c.b16 %v333, %v329
      %v374 = vpack.c.b16 %v334, %v330
      %v375 = vpack.c.b16 %v335, %v331
      %v376 = vpack.c.b16 %v340, %v336
      %v377 = vpack.c.b16 %v341, %v337
      %v378 = vpack.c.b16 %v342, %v338
      %v379 = vpack.c.b16 %v343, %v339
      %v380 = vpack.c.b16 %v348, %v344
      %v381 = vpack.c.b16 %v349, %v345
      %v382 = vpack.c.b16 %v350, %v346
      %v383 = vpack.c.b16 %v351, %v347
      %416 = vmatpush.bf16.msra.mxu0 %v380
      %417 = vmatpush.bf16.msra.mxu0 %v376
      %418 = vmatpush.bf16.msra.mxu0 %v372
      %419 = vmatpush.bf16.msra.mxu0 %v368
      %420 = vmatpush.bf16.msra.mxu0 %v364
      %421 = vmatpush.bf16.msra.mxu0 %v360
      %422 = vmatpush.bf16.msra.mxu0 %v356
      %423 = vmatpush.bf16.msra.mxu0 %v352
      %424 = vmatmul.bf16.gmra.mxu0 %v223
      %v425 = vpop.f32.mrf.mxu0
      %v426 = vadd.f32 0.0, %v425
      %v427 = vpop.f32.mrf.mxu0
      %428 = vdwg.mxu0
      %429 = vmatpush.bf16.msra.mxu0 %v381
      %430 = vmatpush.bf16.msra.mxu0 %v377
      %431 = vmatpush.bf16.msra.mxu0 %v373
      %432 = vmatpush.bf16.msra.mxu0 %v369
      %433 = vmatpush.bf16.msra.mxu0 %v365
      %434 = vmatpush.bf16.msra.mxu0 %v361
      %435 = vmatpush.bf16.msra.mxu0 %v357
      %436 = vmatpush.bf16.msra.mxu0 %v353
      %437 = vmatmul.bf16.gmra.mxu0 %v223
      %v438 = vpop.f32.mrf.mxu0
      %v439 = vadd.f32 0.0, %v438
      %v440 = vpop.f32.mrf.mxu0
      %441 = vdwg.mxu0
      %442 = vmatpush.bf16.msra.mxu0 %v382
      %443 = vmatpush.bf16.msra.mxu0 %v378
      %444 = vmatpush.bf16.msra.mxu0 %v374
      %445 = vmatpush.bf16.msra.mxu0 %v370
      %446 = vmatpush.bf16.msra.mxu0 %v366
      %447 = vmatpush.bf16.msra.mxu0 %v362
      %448 = vmatpush.bf16.msra.mxu0 %v358
      %449 = vmatpush.bf16.msra.mxu0 %v354
      %450 = vmatmul.bf16.gmra.mxu0 %v223
      %v451 = vpop.f32.mrf.mxu0
      %v452 = vadd.f32 0.0, %v451
      %v453 = vpop.f32.mrf.mxu0
      %454 = vdwg.mxu0
      %455 = vmatpush.bf16.msra.mxu0 %v383
      %456 = vmatpush.bf16.msra.mxu0 %v379
      %457 = vmatpush.bf16.msra.mxu0 %v375
      %458 = vmatpush.bf16.msra.mxu0 %v371
      %459 = vmatpush.bf16.msra.mxu0 %v367
      %460 = vmatpush.bf16.msra.mxu0 %v363
      %461 = vmatpush.bf16.msra.mxu0 %v359
      %462 = vmatpush.bf16.msra.mxu0 %v355
      %463 = vmatmul.bf16.gmra.mxu0 %v223
      %v464 = vpop.f32.mrf.mxu0
      %v465 = vadd.f32 0.0, %v464
      %v466 = vpop.f32.mrf.mxu0
      %467 = vdwg.mxu0
      %v500 = vunpack.c.l.b16 %v190
      %v501 = vunpack.c.h.b16 %v190
      %v502 = vunpack.c.l.b16 %v191
      %v503 = vunpack.c.h.b16 %v191
      %v504 = vunpack.c.l.b16 %v192
      %v505 = vunpack.c.h.b16 %v192
      %v506 = vunpack.c.l.b16 %v193
      %v507 = vunpack.c.h.b16 %v193
      %v508 = vunpack.c.l.b16 %v194
      %v509 = vunpack.c.h.b16 %v194
      %v510 = vunpack.c.l.b16 %v195
      %v511 = vunpack.c.h.b16 %v195
      %v512 = vunpack.c.l.b16 %v196
      %v513 = vunpack.c.h.b16 %v196
      %v514 = vunpack.c.l.b16 %v197
      %v515 = vunpack.c.h.b16 %v197
      %v516 = vunpack.c.l.b16 %v198
      %v517 = vunpack.c.h.b16 %v198
      %v518 = vunpack.c.l.b16 %v199
      %v519 = vunpack.c.h.b16 %v199
      %v520 = vunpack.c.l.b16 %v200
      %v521 = vunpack.c.h.b16 %v200
      %v522 = vunpack.c.l.b16 %v201
      %v523 = vunpack.c.h.b16 %v201
      %v524 = vunpack.c.l.b16 %v202
      %v525 = vunpack.c.h.b16 %v202
      %v526 = vunpack.c.l.b16 %v203
      %v527 = vunpack.c.h.b16 %v203
      %v528 = vunpack.c.l.b16 %v204
      %v529 = vunpack.c.h.b16 %v204
      %v530 = vunpack.c.l.b16 %v205
      %v531 = vunpack.c.h.b16 %v205
      %v532 = vunpack.c.l.b16 %v206
      %v533 = vunpack.c.h.b16 %v206
      %v534 = vunpack.c.l.b16 %v207
      %v535 = vunpack.c.h.b16 %v207
      %v536 = vunpack.c.l.b16 %v208
      %v537 = vunpack.c.h.b16 %v208
      %v538 = vunpack.c.l.b16 %v209
      %v539 = vunpack.c.h.b16 %v209
      %v540 = vunpack.c.l.b16 %v210
      %v541 = vunpack.c.h.b16 %v210
      %v542 = vunpack.c.l.b16 %v211
      %v543 = vunpack.c.h.b16 %v211
      %v544 = vunpack.c.l.b16 %v212
      %v545 = vunpack.c.h.b16 %v212
      %v546 = vunpack.c.l.b16 %v213
      %v547 = vunpack.c.h.b16 %v213
      %v548 = vunpack.c.l.b16 %v214
      %v549 = vunpack.c.h.b16 %v214
      %v550 = vunpack.c.l.b16 %v215
      %v551 = vunpack.c.h.b16 %v215
      %v552 = vunpack.c.l.b16 %v216
      %v553 = vunpack.c.h.b16 %v216
      %v554 = vunpack.c.l.b16 %v217
      %v555 = vunpack.c.h.b16 %v217
      %v556 = vunpack.c.l.b16 %v218
      %v557 = vunpack.c.h.b16 %v218
      %v558 = vunpack.c.l.b16 %v219
      %v559 = vunpack.c.h.b16 %v219
      %v560 = vunpack.c.l.b16 %v220
      %v561 = vunpack.c.h.b16 %v220
      %v562 = vunpack.c.l.b16 %v221
      %v563 = vunpack.c.h.b16 %v221
      %v564 = vpack.c.b16 %v504, %v500
      %v565 = vpack.c.b16 %v505, %v501
      %v566 = vpack.c.b16 %v506, %v502
      %v567 = vpack.c.b16 %v507, %v503
      %v568 = vpack.c.b16 %v512, %v508
      %v569 = vpack.c.b16 %v513, %v509
      %v570 = vpack.c.b16 %v514, %v510
      %v571 = vpack.c.b16 %v515, %v511
      %v572 = vpack.c.b16 %v520, %v516
      %v573 = vpack.c.b16 %v521, %v517
      %v574 = vpack.c.b16 %v522, %v518
      %v575 = vpack.c.b16 %v523, %v519
      %v576 = vpack.c.b16 %v528, %v524
      %v577 = vpack.c.b16 %v529, %v525
      %v578 = vpack.c.b16 %v530, %v526
      %v579 = vpack.c.b16 %v531, %v527
      %v580 = vpack.c.b16 %v536, %v532
      %v581 = vpack.c.b16 %v537, %v533
      %v582 = vpack.c.b16 %v538, %v534
      %v583 = vpack.c.b16 %v539, %v535
      %v584 = vpack.c.b16 %v544, %v540
      %v585 = vpack.c.b16 %v545, %v541
      %v586 = vpack.c.b16 %v546, %v542
      %v587 = vpack.c.b16 %v547, %v543
      %v588 = vpack.c.b16 %v552, %v548
      %v589 = vpack.c.b16 %v553, %v549
      %v590 = vpack.c.b16 %v554, %v550
      %v591 = vpack.c.b16 %v555, %v551
      %v592 = vpack.c.b16 %v560, %v556
      %v593 = vpack.c.b16 %v561, %v557
      %v594 = vpack.c.b16 %v562, %v558
      %v595 = vpack.c.b16 %v563, %v559
      %628 = vmatpush.bf16.msra.mxu0 %v592
      %629 = vmatpush.bf16.msra.mxu0 %v588
      %630 = vmatpush.bf16.msra.mxu0 %v584
      %631 = vmatpush.bf16.msra.mxu0 %v580
      %632 = vmatpush.bf16.msra.mxu0 %v576
      %633 = vmatpush.bf16.msra.mxu0 %v572
      %634 = vmatpush.bf16.msra.mxu0 %v568
      %635 = vmatpush.bf16.msra.mxu0 %v564
      %636 = vmatmul.bf16.gmra.mxu0 %v189
      %v637 = vpop.f32.mrf.mxu0
      %v638 = vadd.f32 %v426, %v637
      %v639 = vpop.f32.mrf.mxu0
      %640 = vdwg.mxu0
      %641 = vmatpush.bf16.msra.mxu0 %v593
      %642 = vmatpush.bf16.msra.mxu0 %v589
      %643 = vmatpush.bf16.msra.mxu0 %v585
      %644 = vmatpush.bf16.msra.mxu0 %v581
      %645 = vmatpush.bf16.msra.mxu0 %v577
      %646 = vmatpush.bf16.msra.mxu0 %v573
      %647 = vmatpush.bf16.msra.mxu0 %v569
      %648 = vmatpush.bf16.msra.mxu0 %v565
      %649 = vmatmul.bf16.gmra.mxu0 %v189
      %v650 = vpop.f32.mrf.mxu0
      %v651 = vadd.f32 %v439, %v650
      %v652 = vpop.f32.mrf.mxu0
      %653 = vdwg.mxu0
      %654 = vmatpush.bf16.msra.mxu0 %v594
      %655 = vmatpush.bf16.msra.mxu0 %v590
      %656 = vmatpush.bf16.msra.mxu0 %v586
      %657 = vmatpush.bf16.msra.mxu0 %v582
      %658 = vmatpush.bf16.msra.mxu0 %v578
      %659 = vmatpush.bf16.msra.mxu0 %v574
      %660 = vmatpush.bf16.msra.mxu0 %v570
      %661 = vmatpush.bf16.msra.mxu0 %v566
      %662 = vmatmul.bf16.gmra.mxu0 %v189
      %v663 = vpop.f32.mrf.mxu0
      %v664 = vadd.f32 %v452, %v663
      %v665 = vpop.f32.mrf.mxu0
      %666 = vdwg.mxu0
      %667 = vmatpush.bf16.msra.mxu0 %v595
      %668 = vmatpush.bf16.msra.mxu0 %v591
      %669 = vmatpush.bf16.msra.mxu0 %v587
      %670 = vmatpush.bf16.msra.mxu0 %v583
      %671 = vmatpush.bf16.msra.mxu0 %v579
      %672 = vmatpush.bf16.msra.mxu0 %v575
      %673 = vmatpush.bf16.msra.mxu0 %v571
      %674 = vmatpush.bf16.msra.mxu0 %v567
      %675 = vmatmul.bf16.gmra.mxu0 %v189
      %v676 = vpop.f32.mrf.mxu0
      %v677 = vadd.f32 %v465, %v676
      %v678 = vpop.f32.mrf.mxu0
      %679 = vdwg.mxu0
      %v680 = vpack.c.bf16 %v187, %v187
      %v681 = vld [vmem:[#allocation18] sm:$0xff]
      %v682 = vld [vmem:[#allocation18 + $0x8] sm:$0xff]
      %v683 = vld [vmem:[#allocation18 + $0x10] sm:$0xff]
      %v684 = vld [vmem:[#allocation18 + $0x18] sm:$0xff]
      %v685 = vld [vmem:[#allocation18 + $0x20] sm:$0xff]
      %v686 = vld [vmem:[#allocation18 + $0x28] sm:$0xff]
      %v687 = vld [vmem:[#allocation18 + $0x30] sm:$0xff]
      %v688 = vld [vmem:[#allocation18 + $0x38] sm:$0xff]
      %v689 = vld [vmem:[#allocation18 + $0x40] sm:$0xff]
      %v690 = vld [vmem:[#allocation18 + $0x48] sm:$0xff]
      %v691 = vld [vmem:[#allocation18 + $0x50] sm:$0xff]
      %v692 = vld [vmem:[#allocation18 + $0x58] sm:$0xff]
      %v693 = vld [vmem:[#allocation18 + $0x60] sm:$0xff]
      %v694 = vld [vmem:[#allocation18 + $0x68] sm:$0xff]
      %v695 = vld [vmem:[#allocation18 + $0x70] sm:$0xff]
      %v696 = vld [vmem:[#allocation18 + $0x78] sm:$0xff]
      %v697 = vld [vmem:[#allocation18 + $0x80] sm:$0xff]
      %v698 = vld [vmem:[#allocation18 + $0x88] sm:$0xff]
      %v699 = vld [vmem:[#allocation18 + $0x90] sm:$0xff]
      %v700 = vld [vmem:[#allocation18 + $0x98] sm:$0xff]
      %v701 = vld [vmem:[#allocation18 + $0xa0] sm:$0xff]
      %v702 = vld [vmem:[#allocation18 + $0xa8] sm:$0xff]
      %v703 = vld [vmem:[#allocation18 + $0xb0] sm:$0xff]
      %v704 = vld [vmem:[#allocation18 + $0xb8] sm:$0xff]
      %v705 = vld [vmem:[#allocation18 + $0xc0] sm:$0xff]
      %v706 = vld [vmem:[#allocation18 + $0xc8] sm:$0xff]
      %v707 = vld [vmem:[#allocation18 + $0xd0] sm:$0xff]
      %v708 = vld [vmem:[#allocation18 + $0xd8] sm:$0xff]
      %v709 = vld [vmem:[#allocation18 + $0xe0] sm:$0xff]
      %v710 = vld [vmem:[#allocation18 + $0xe8] sm:$0xff]
      %v711 = vld [vmem:[#allocation18 + $0xf0] sm:$0xff]
      %v712 = vld [vmem:[#allocation18 + $0xf8] sm:$0xff]
      %v745 = vunpack.c.l.b16 %v681
      %v746 = vunpack.c.h.b16 %v681
      %v747 = vunpack.c.l.b16 %v682
      %v748 = vunpack.c.h.b16 %v682
      %v749 = vunpack.c.l.b16 %v683
      %v750 = vunpack.c.h.b16 %v683
      %v751 = vunpack.c.l.b16 %v684
      %v752 = vunpack.c.h.b16 %v684
      %v753 = vunpack.c.l.b16 %v685
      %v754 = vunpack.c.h.b16 %v685
      %v755 = vunpack.c.l.b16 %v686
      %v756 = vunpack.c.h.b16 %v686
      %v757 = vunpack.c.l.b16 %v687
      %v758 = vunpack.c.h.b16 %v687
      %v759 = vunpack.c.l.b16 %v688
      %v760 = vunpack.c.h.b16 %v688
      %v761 = vunpack.c.l.b16 %v689
      %v762 = vunpack.c.h.b16 %v689
      %v763 = vunpack.c.l.b16 %v690
      %v764 = vunpack.c.h.b16 %v690
      %v765 = vunpack.c.l.b16 %v691
      %v766 = vunpack.c.h.b16 %v691
      %v767 = vunpack.c.l.b16 %v692
      %v768 = vunpack.c.h.b16 %v692
      %v769 = vunpack.c.l.b16 %v693
      %v770 = vunpack.c.h.b16 %v693
      %v771 = vunpack.c.l.b16 %v694
      %v772 = vunpack.c.h.b16 %v694
      %v773 = vunpack.c.l.b16 %v695
      %v774 = vunpack.c.h.b16 %v695
      %v775 = vunpack.c.l.b16 %v696
      %v776 = vunpack.c.h.b16 %v696
      %v777 = vunpack.c.l.b16 %v697
      %v778 = vunpack.c.h.b16 %v697
      %v779 = vunpack.c.l.b16 %v698
      %v780 = vunpack.c.h.b16 %v698
      %v781 = vunpack.c.l.b16 %v699
      %v782 = vunpack.c.h.b16 %v699
      %v783 = vunpack.c.l.b16 %v700
      %v784 = vunpack.c.h.b16 %v700
      %v785 = vunpack.c.l.b16 %v701
      %v786 = vunpack.c.h.b16 %v701
      %v787 = vunpack.c.l.b16 %v702
      %v788 = vunpack.c.h.b16 %v702
      %v789 = vunpack.c.l.b16 %v703
      %v790 = vunpack.c.h.b16 %v703
      %v791 = vunpack.c.l.b16 %v704
      %v792 = vunpack.c.h.b16 %v704
      %v793 = vunpack.c.l.b16 %v705
      %v794 = vunpack.c.h.b16 %v705
      %v795 = vunpack.c.l.b16 %v706
      %v796 = vunpack.c.h.b16 %v706
      %v797 = vunpack.c.l.b16 %v707
      %v798 = vunpack.c.h.b16 %v707
      %v799 = vunpack.c.l.b16 %v708
      %v800 = vunpack.c.h.b16 %v708
      %v801 = vunpack.c.l.b16 %v709
      %v802 = vunpack.c.h.b16 %v709
      %v803 = vunpack.c.l.b16 %v710
      %v804 = vunpack.c.h.b16 %v710
      %v805 = vunpack.c.l.b16 %v711
      %v806 = vunpack.c.h.b16 %v711
      %v807 = vunpack.c.l.b16 %v712
      %v808 = vunpack.c.h.b16 %v712
      %v809 = vpack.c.b16 %v749, %v745
      %v810 = vpack.c.b16 %v750, %v746
      %v811 = vpack.c.b16 %v751, %v747
      %v812 = vpack.c.b16 %v752, %v748
      %v813 = vpack.c.b16 %v757, %v753
      %v814 = vpack.c.b16 %v758, %v754
      %v815 = vpack.c.b16 %v759, %v755
      %v816 = vpack.c.b16 %v760, %v756
      %v817 = vpack.c.b16 %v765, %v761
      %v818 = vpack.c.b16 %v766, %v762
      %v819 = vpack.c.b16 %v767, %v763
      %v820 = vpack.c.b16 %v768, %v764
      %v821 = vpack.c.b16 %v773, %v769
      %v822 = vpack.c.b16 %v774, %v770
      %v823 = vpack.c.b16 %v775, %v771
      %v824 = vpack.c.b16 %v776, %v772
      %v825 = vpack.c.b16 %v781, %v777
      %v826 = vpack.c.b16 %v782, %v778
      %v827 = vpack.c.b16 %v783, %v779
      %v828 = vpack.c.b16 %v784, %v780
      %v829 = vpack.c.b16 %v789, %v785
      %v830 = vpack.c.b16 %v790, %v786
      %v831 = vpack.c.b16 %v791, %v787
      %v832 = vpack.c.b16 %v792, %v788
      %v833 = vpack.c.b16 %v797, %v793
      %v834 = vpack.c.b16 %v798, %v794
      %v835 = vpack.c.b16 %v799, %v795
      %v836 = vpack.c.b16 %v800, %v796
      %v837 = vpack.c.b16 %v805, %v801
      %v838 = vpack.c.b16 %v806, %v802
      %v839 = vpack.c.b16 %v807, %v803
      %v840 = vpack.c.b16 %v808, %v804
      %873 = vmatpush.bf16.msra.mxu0 %v837
      %874 = vmatpush.bf16.msra.mxu0 %v833
      %875 = vmatpush.bf16.msra.mxu0 %v829
      %876 = vmatpush.bf16.msra.mxu0 %v825
      %877 = vmatpush.bf16.msra.mxu0 %v821
      %878 = vmatpush.bf16.msra.mxu0 %v817
      %879 = vmatpush.bf16.msra.mxu0 %v813
      %880 = vmatpush.bf16.msra.mxu0 %v809
      %881 = vmatmul.bf16.gmra.mxu0 %v680
      %v882 = vpop.f32.mrf.mxu0
      %v883 = vadd.f32 0.0, %v882
      %v884 = vpop.f32.mrf.mxu0
      %885 = vdwg.mxu0
      %886 = vmatpush.bf16.msra.mxu0 %v838
      %887 = vmatpush.bf16.msra.mxu0 %v834
      %888 = vmatpush.bf16.msra.mxu0 %v830
      %889 = vmatpush.bf16.msra.mxu0 %v826
      %890 = vmatpush.bf16.msra.mxu0 %v822
      %891 = vmatpush.bf16.msra.mxu0 %v818
      %892 = vmatpush.bf16.msra.mxu0 %v814
      %893 = vmatpush.bf16.msra.mxu0 %v810
      %894 = vmatmul.bf16.gmra.mxu0 %v680
      %v895 = vpop.f32.mrf.mxu0
      %v896 = vadd.f32 0.0, %v895
      %v897 = vpop.f32.mrf.mxu0
      %898 = vdwg.mxu0
      %899 = vmatpush.bf16.msra.mxu0 %v839
      %900 = vmatpush.bf16.msra.mxu0 %v835
      %901 = vmatpush.bf16.msra.mxu0 %v831
      %902 = vmatpush.bf16.msra.mxu0 %v827
      %903 = vmatpush.bf16.msra.mxu0 %v823
      %904 = vmatpush.bf16.msra.mxu0 %v819
      %905 = vmatpush.bf16.msra.mxu0 %v815
      %906 = vmatpush.bf16.msra.mxu0 %v811
      %907 = vmatmul.bf16.gmra.mxu0 %v680
      %v908 = vpop.f32.mrf.mxu0
      %v909 = vadd.f32 0.0, %v908
      %v910 = vpop.f32.mrf.mxu0
      %911 = vdwg.mxu0
      %912 = vmatpush.bf16.msra.mxu0 %v840
      %913 = vmatpush.bf16.msra.mxu0 %v836
      %914 = vmatpush.bf16.msra.mxu0 %v832
      %915 = vmatpush.bf16.msra.mxu0 %v828
      %916 = vmatpush.bf16.msra.mxu0 %v824
      %917 = vmatpush.bf16.msra.mxu0 %v820
      %918 = vmatpush.bf16.msra.mxu0 %v816
      %919 = vmatpush.bf16.msra.mxu0 %v812
      %920 = vmatmul.bf16.gmra.mxu0 %v680
      %v921 = vpop.f32.mrf.mxu0
      %v922 = vadd.f32 0.0, %v921
      %v923 = vpop.f32.mrf.mxu0
      %924 = vdwg.mxu0
      %v925 = vadd.f32 %v638, %v883
      %v926 = vadd.f32 %v651, %v896
      %v927 = vadd.f32 %v664, %v909
      %v928 = vadd.f32 %v677, %v922
      %v929 = vld [vmem:[%s7] sm:$0xf]
      %v931 = vperm.slane %v929, 0
      %v932 = vperm.slane %v929, 1
      %v933 = vperm.slane %v929, 2
      %v934 = vperm.slane %v929, 3
      %v939 = vadd.f32 %v925, %v931
      %v940 = vadd.f32 %v926, %v932
      %v941 = vadd.f32 %v927, %v933
      %v942 = vadd.f32 %v928, %v934
      %v943 = vxor.u32 %v939, 2147483648
      %v944 = vmul.f32 %v943, 1.442695
      %v945 = vpow.pop %v944
      %v946 = vadd.f32 %v945, 1.0
      %v947 = vrcp.pop %v946
      %v948 = vmul.f32 %v946, %v947
      %v949 = vsub.f32 1.0, %v948
      %v950 = vmul.f32 %v947, %v949
      %v951 = vadd.f32 %v947, %v950
      %vm952 = vweird.f32 %v946
      %vm953 = vweird.f32 %v947
      %vm954 = vmor %vm952, %vm953
      %v955 = vsel %vm954, %v947, %v951
      %v956 = vand.u32 2147483647, %v946
      %vm957 = vcmp.eq.f32.partialorder %v956, 8.507059e+37
      %v958 = vand.u32 %v946, 2147483648
      %v959 = vor.u32 1.1754944e-38, %v958
      %v960 = vsel %vm957, %v959, %v955
      %v961 = vmul.f32 1.0, %v960
      %v962 = vxor.u32 %v940, 2147483648
      %v963 = vmul.f32 %v962, 1.442695
      %v964 = vpow.pop %v963
      %v965 = vadd.f32 %v964, 1.0
      %v966 = vrcp.pop %v965
      %v967 = vmul.f32 %v965, %v966
      %v968 = vsub.f32 1.0, %v967
      %v969 = vmul.f32 %v966, %v968
      %v970 = vadd.f32 %v966, %v969
      %vm971 = vweird.f32 %v965
      %vm972 = vweird.f32 %v966
      %vm973 = vmor %vm971, %vm972
      %v974 = vsel %vm973, %v966, %v970
      %v975 = vand.u32 2147483647, %v965
      %vm976 = vcmp.eq.f32.partialorder %v975, 8.507059e+37
      %v977 = vand.u32 %v965, 2147483648
      %v978 = vor.u32 1.1754944e-38, %v977
      %v979 = vsel %vm976, %v978, %v974
      %v980 = vmul.f32 1.0, %v979
      %v981 = vmul.f32 %v961, %v942
      %v982 = vadd.f32 %v941, %v981
      %v983 = vtanh.pop %v982
      %v984 = vsub.f32 1.0, %v980
      %v985 = vmul.f32 %v984, %v983
      %v986 = vmul.f32 %v980, %v187
      %v987 = vadd.f32 %v985, %v986
      %988 = vst [vmem:[#allocation22] sm:$0xff] %v987
      %v989 = vpack.c.bf16 %v987, %v987
      %v990 = vld [vmem:[#allocation19] sm:$0xf]
      %v991 = vld [vmem:[#allocation19 + $0x4] sm:$0xf]
      %v992 = vld [vmem:[#allocation19 + $0x8] sm:$0xf]
      %v993 = vld [vmem:[#allocation19 + $0xc] sm:$0xf]
      %v994 = vld [vmem:[#allocation19 + $0x10] sm:$0xf]
      %v995 = vld [vmem:[#allocation19 + $0x14] sm:$0xf]
      %v996 = vld [vmem:[#allocation19 + $0x18] sm:$0xf]
      %v997 = vld [vmem:[#allocation19 + $0x1c] sm:$0xf]
      %v998 = vld [vmem:[#allocation19 + $0x20] sm:$0xf]
      %v999 = vld [vmem:[#allocation19 + $0x24] sm:$0xf]
      %v1000 = vld [vmem:[#allocation19 + $0x28] sm:$0xf]
      %v1001 = vld [vmem:[#allocation19 + $0x2c] sm:$0xf]
      %v1002 = vld [vmem:[#allocation19 + $0x30] sm:$0xf]
      %v1003 = vld [vmem:[#allocation19 + $0x34] sm:$0xf]
      %v1004 = vld [vmem:[#allocation19 + $0x38] sm:$0xf]
      %v1005 = vld [vmem:[#allocation19 + $0x3c] sm:$0xf]
      %v1006 = vld [vmem:[%s9] sm:$0x1]
      %v1008 = vperm.slane %v1006, 0
      %v1026 = vunpack.c.l.b16 %v990
      %v1027 = vunpack.c.l.b16 %v991
      %v1028 = vunpack.c.l.b16 %v992
      %v1029 = vunpack.c.l.b16 %v993
      %v1030 = vunpack.c.l.b16 %v994
      %v1031 = vunpack.c.l.b16 %v995
      %v1032 = vunpack.c.l.b16 %v996
      %v1033 = vunpack.c.l.b16 %v997
      %v1034 = vunpack.c.l.b16 %v998
      %v1035 = vunpack.c.l.b16 %v999
      %v1036 = vunpack.c.l.b16 %v1000
      %v1037 = vunpack.c.l.b16 %v1001
      %v1038 = vunpack.c.l.b16 %v1002
      %v1039 = vunpack.c.l.b16 %v1003
      %v1040 = vunpack.c.l.b16 %v1004
      %v1041 = vunpack.c.l.b16 %v1005
      %v1042 = vpack.c.b16 %v1027, %v1026
      %v1043 = vpack.c.b16 %v1029, %v1028
      %v1044 = vpack.c.b16 %v1031, %v1030
      %v1045 = vpack.c.b16 %v1033, %v1032
      %v1046 = vpack.c.b16 %v1035, %v1034
      %v1047 = vpack.c.b16 %v1037, %v1036
      %v1048 = vpack.c.b16 %v1039, %v1038
      %v1049 = vpack.c.b16 %v1041, %v1040
      %1058 = vmatpush.bf16.msra.mxu0 %v1049
      %1059 = vmatpush.bf16.msra.mxu0 %v1048
      %1060 = vmatpush.bf16.msra.mxu0 %v1047
      %1061 = vmatpush.bf16.msra.mxu0 %v1046
      %1062 = vmatpush.bf16.msra.mxu0 %v1045
      %1063 = vmatpush.bf16.msra.mxu0 %v1044
      %1064 = vmatpush.bf16.msra.mxu0 %v1043
      %1065 = vmatpush.bf16.msra.mxu0 %v1042
      %1066 = vmatmul.bf16.gmra.mxu0 %v989
      %v1067 = vpop.f32.mrf.mxu0
      %v1068 = vadd.f32 %v1008, %v1067
      %v1069 = vpop.f32.mrf.mxu0
      %1070 = vdwg.mxu0
      %v1071 = vld [vmem:[%s11] sm:$0x1]
      %v1073 = vperm.slane %v1071, 0
      %v1075 = vadd.f32 %v1068, %v1073
      %1076 = vst [vmem:[#allocation2] sm:$0xff] %v1075
      %vm1077 = vcmask 7168
      %1078 = vst.msk [vmem:[#allocation3] sm:$0xff] %vm1077, -inf
      %1079 = vst.msk [vmem:[#allocation4] sm:$0xff] %vm1077, 0.0
      %1080 = vst [vmem:[#allocation5] sm:$0xff] 0.0
    $region93: #{tpu_custom_call.1} parent=1 // pred_fallthru
      _
    %v1081 = vld [vmem:[#allocation13] sm:$0xf]
    %v1082 = vld [vmem:[#allocation13 + $0x4] sm:$0xf]
    %v1083 = vld [vmem:[#allocation13 + $0x8] sm:$0xf]
    %v1084 = vld [vmem:[#allocation13 + $0xc] sm:$0xf]
    %v1085 = vld [vmem:[#allocation13 + $0x10] sm:$0xf]
    %v1086 = vld [vmem:[#allocation13 + $0x14] sm:$0xf]
    %v1087 = vld [vmem:[#allocation13 + $0x18] sm:$0xf]
    %v1088 = vld [vmem:[#allocation13 + $0x1c] sm:$0xf]
    %v1089 = vld [vmem:[#allocation13 + $0x20] sm:$0xf]
    %v1090 = vld [vmem:[#allocation13 + $0x24] sm:$0xf]
    %v1091 = vld [vmem:[#allocation13 + $0x28] sm:$0xf]
    %v1092 = vld [vmem:[#allocation13 + $0x2c] sm:$0xf]
    %v1093 = vld [vmem:[#allocation13 + $0x30] sm:$0xf]
    %v1094 = vld [vmem:[#allocation13 + $0x34] sm:$0xf]
    %v1095 = vld [vmem:[#allocation13 + $0x38] sm:$0xf]
    %v1096 = vld [vmem:[#allocation13 + $0x3c] sm:$0xf]
    %v1097 = vld [vmem:[#allocation13 + $0x40] sm:$0xf]
    %v1098 = vld [vmem:[#allocation13 + $0x44] sm:$0xf]
    %v1099 = vld [vmem:[#allocation13 + $0x48] sm:$0xf]
    %v1100 = vld [vmem:[#allocation13 + $0x4c] sm:$0xf]
    %v1101 = vld [vmem:[#allocation13 + $0x50] sm:$0xf]
    %v1102 = vld [vmem:[#allocation13 + $0x54] sm:$0xf]
    %v1103 = vld [vmem:[#allocation13 + $0x58] sm:$0xf]
    %v1104 = vld [vmem:[#allocation13 + $0x5c] sm:$0xf]
    %v1105 = vld [vmem:[#allocation13 + $0x60] sm:$0xf]
    %v1106 = vld [vmem:[#allocation13 + $0x64] sm:$0xf]
    %v1107 = vld [vmem:[#allocation13 + $0x68] sm:$0xf]
    %v1108 = vld [vmem:[#allocation13 + $0x6c] sm:$0xf]
    %v1109 = vld [vmem:[#allocation13 + $0x70] sm:$0xf]
    %v1110 = vld [vmem:[#allocation13 + $0x74] sm:$0xf]
    %v1111 = vld [vmem:[#allocation13 + $0x78] sm:$0xf]
    %v1112 = vld [vmem:[#allocation13 + $0x7c] sm:$0xf]
    %v1113 = vld [vmem:[#allocation13 + $0x80] sm:$0xf]
    %v1114 = vld [vmem:[#allocation13 + $0x84] sm:$0xf]
    %v1115 = vld [vmem:[#allocation13 + $0x88] sm:$0xf]
    %v1116 = vld [vmem:[#allocation13 + $0x8c] sm:$0xf]
    %v1117 = vld [vmem:[#allocation13 + $0x90] sm:$0xf]
    %v1118 = vld [vmem:[#allocation13 + $0x94] sm:$0xf]
    %v1119 = vld [vmem:[#allocation13 + $0x98] sm:$0xf]
    %v1120 = vld [vmem:[#allocation13 + $0x9c] sm:$0xf]
    %v1121 = vld [vmem:[#allocation13 + $0xa0] sm:$0xf]
    %v1122 = vld [vmem:[#allocation13 + $0xa4] sm:$0xf]
    %v1123 = vld [vmem:[#allocation13 + $0xa8] sm:$0xf]
    %v1124 = vld [vmem:[#allocation13 + $0xac] sm:$0xf]
    %v1125 = vld [vmem:[#allocation13 + $0xb0] sm:$0xf]
    %v1126 = vld [vmem:[#allocation13 + $0xb4] sm:$0xf]
    %v1127 = vld [vmem:[#allocation13 + $0xb8] sm:$0xf]
    %v1128 = vld [vmem:[#allocation13 + $0xbc] sm:$0xf]
    %v1129 = vld [vmem:[#allocation13 + $0xc0] sm:$0xf]
    %v1130 = vld [vmem:[#allocation13 + $0xc4] sm:$0xf]
    %v1131 = vld [vmem:[#allocation13 + $0xc8] sm:$0xf]
    %v1132 = vld [vmem:[#allocation13 + $0xcc] sm:$0xf]
    %v1133 = vld [vmem:[#allocation13 + $0xd0] sm:$0xf]
    %v1134 = vld [vmem:[#allocation13 + $0xd4] sm:$0xf]
    %v1135 = vld [vmem:[#allocation13 + $0xd8] sm:$0xf]
    %v1136 = vld [vmem:[#allocation13 + $0xdc] sm:$0xf]
    %v1137 = vld [vmem:[#allocation13 + $0xe0] sm:$0xf]
    %v1138 = vld [vmem:[#allocation13 + $0xe4] sm:$0xf]
    %v1139 = vld [vmem:[#allocation13 + $0xe8] sm:$0xf]
    %v1140 = vld [vmem:[#allocation13 + $0xec] sm:$0xf]
    %v1141 = vld [vmem:[#allocation13 + $0xf0] sm:$0xf]
    %v1142 = vld [vmem:[#allocation13 + $0xf4] sm:$0xf]
    %v1143 = vld [vmem:[#allocation13 + $0xf8] sm:$0xf]
    %v1144 = vld [vmem:[#allocation13 + $0xfc] sm:$0xf]
    %v1145 = vld [vmem:[#allocation13 + $0x100] sm:$0xf]
    %v1146 = vld [vmem:[#allocation13 + $0x104] sm:$0xf]
    %v1147 = vld [vmem:[#allocation13 + $0x108] sm:$0xf]
    %v1148 = vld [vmem:[#allocation13 + $0x10c] sm:$0xf]
    %v1149 = vld [vmem:[#allocation13 + $0x110] sm:$0xf]
    %v1150 = vld [vmem:[#allocation13 + $0x114] sm:$0xf]
    %v1151 = vld [vmem:[#allocation13 + $0x118] sm:$0xf]
    %v1152 = vld [vmem:[#allocation13 + $0x11c] sm:$0xf]
    %v1153 = vld [vmem:[#allocation13 + $0x120] sm:$0xf]
    %v1154 = vld [vmem:[#allocation13 + $0x124] sm:$0xf]
    %v1155 = vld [vmem:[#allocation13 + $0x128] sm:$0xf]
    %v1156 = vld [vmem:[#allocation13 + $0x12c] sm:$0xf]
    %v1157 = vld [vmem:[#allocation13 + $0x130] sm:$0xf]
    %v1158 = vld [vmem:[#allocation13 + $0x134] sm:$0xf]
    %v1159 = vld [vmem:[#allocation13 + $0x138] sm:$0xf]
    %v1160 = vld [vmem:[#allocation13 + $0x13c] sm:$0xf]
    %v1161 = vld [vmem:[#allocation13 + $0x140] sm:$0xf]
    %v1162 = vld [vmem:[#allocation13 + $0x144] sm:$0xf]
    %v1163 = vld [vmem:[#allocation13 + $0x148] sm:$0xf]
    %v1164 = vld [vmem:[#allocation13 + $0x14c] sm:$0xf]
    %v1165 = vld [vmem:[#allocation13 + $0x150] sm:$0xf]
    %v1166 = vld [vmem:[#allocation13 + $0x154] sm:$0xf]
    %v1167 = vld [vmem:[#allocation13 + $0x158] sm:$0xf]
    %v1168 = vld [vmem:[#allocation13 + $0x15c] sm:$0xf]
    %v1169 = vld [vmem:[#allocation13 + $0x160] sm:$0xf]
    %v1170 = vld [vmem:[#allocation13 + $0x164] sm:$0xf]
    %v1171 = vld [vmem:[#allocation13 + $0x168] sm:$0xf]
    %v1172 = vld [vmem:[#allocation13 + $0x16c] sm:$0xf]
    %v1173 = vld [vmem:[#allocation13 + $0x170] sm:$0xf]
    %v1174 = vld [vmem:[#allocation13 + $0x174] sm:$0xf]
    %v1175 = vld [vmem:[#allocation13 + $0x178] sm:$0xf]
    %v1176 = vld [vmem:[#allocation13 + $0x17c] sm:$0xf]
    %v1177 = vld [vmem:[#allocation13 + $0x180] sm:$0xf]
    %v1178 = vld [vmem:[#allocation13 + $0x184] sm:$0xf]
    %v1179 = vld [vmem:[#allocation13 + $0x188] sm:$0xf]
    %v1180 = vld [vmem:[#allocation13 + $0x18c] sm:$0xf]
    %v1181 = vld [vmem:[#allocation13 + $0x190] sm:$0xf]
    %v1182 = vld [vmem:[#allocation13 + $0x194] sm:$0xf]
    %v1183 = vld [vmem:[#allocation13 + $0x198] sm:$0xf]
    %v1184 = vld [vmem:[#allocation13 + $0x19c] sm:$0xf]
    %v1185 = vld [vmem:[#allocation13 + $0x1a0] sm:$0xf]
    %v1186 = vld [vmem:[#allocation13 + $0x1a4] sm:$0xf]
    %v1187 = vld [vmem:[#allocation13 + $0x1a8] sm:$0xf]
    %v1188 = vld [vmem:[#allocation13 + $0x1ac] sm:$0xf]
    %v1189 = vld [vmem:[#allocation13 + $0x1b0] sm:$0xf]
    %v1190 = vld [vmem:[#allocation13 + $0x1b4] sm:$0xf]
    %v1191 = vld [vmem:[#allocation13 + $0x1b8] sm:$0xf]
    %v1192 = vld [vmem:[#allocation13 + $0x1bc] sm:$0xf]
    %v1193 = vld [vmem:[#allocation13 + $0x1c0] sm:$0xf]
    %v1194 = vld [vmem:[#allocation13 + $0x1c4] sm:$0xf]
    %v1195 = vld [vmem:[#allocation13 + $0x1c8] sm:$0xf]
    %v1196 = vld [vmem:[#allocation13 + $0x1cc] sm:$0xf]
    %v1197 = vld [vmem:[#allocation13 + $0x1d0] sm:$0xf]
    %v1198 = vld [vmem:[#allocation13 + $0x1d4] sm:$0xf]
    %v1199 = vld [vmem:[#allocation13 + $0x1d8] sm:$0xf]
    %v1200 = vld [vmem:[#allocation13 + $0x1dc] sm:$0xf]
    %v1201 = vld [vmem:[#allocation13 + $0x1e0] sm:$0xf]
    %v1202 = vld [vmem:[#allocation13 + $0x1e4] sm:$0xf]
    %v1203 = vld [vmem:[#allocation13 + $0x1e8] sm:$0xf]
    %v1204 = vld [vmem:[#allocation13 + $0x1ec] sm:$0xf]
    %v1205 = vld [vmem:[#allocation13 + $0x1f0] sm:$0xf]
    %v1206 = vld [vmem:[#allocation13 + $0x1f4] sm:$0xf]
    %v1207 = vld [vmem:[#allocation13 + $0x1f8] sm:$0xf]
    %v1208 = vld [vmem:[#allocation13 + $0x1fc] sm:$0xf]
    %v1209 = vld [vmem:[#allocation21] sm:$0xf]
    %v1210 = vld [vmem:[#allocation21 + $0x4] sm:$0xf]
    %v1211 = vld [vmem:[#allocation21 + $0x8] sm:$0xf]
    %v1212 = vld [vmem:[#allocation21 + $0xc] sm:$0xf]
    %v1213 = vld [vmem:[#allocation21 + $0x10] sm:$0xf]
    %v1214 = vld [vmem:[#allocation21 + $0x14] sm:$0xf]
    %v1215 = vld [vmem:[#allocation21 + $0x18] sm:$0xf]
    %v1216 = vld [vmem:[#allocation21 + $0x1c] sm:$0xf]
    %v1217 = vld [vmem:[#allocation21 + $0x20] sm:$0xf]
    %v1218 = vld [vmem:[#allocation21 + $0x24] sm:$0xf]
    %v1219 = vld [vmem:[#allocation21 + $0x28] sm:$0xf]
    %v1220 = vld [vmem:[#allocation21 + $0x2c] sm:$0xf]
    %v1221 = vld [vmem:[#allocation21 + $0x30] sm:$0xf]
    %v1222 = vld [vmem:[#allocation21 + $0x34] sm:$0xf]
    %v1223 = vld [vmem:[#allocation21 + $0x38] sm:$0xf]
    %v1224 = vld [vmem:[#allocation21 + $0x3c] sm:$0xf]
    %v1353 = vunpack.c.l.b16 %v1081
    %v1354 = vunpack.c.l.b16 %v1082
    %v1355 = vunpack.c.l.b16 %v1083
    %v1356 = vunpack.c.l.b16 %v1084
    %v1357 = vunpack.c.l.b16 %v1085
    %v1358 = vunpack.c.l.b16 %v1086
    %v1359 = vunpack.c.l.b16 %v1087
    %v1360 = vunpack.c.l.b16 %v1088
    %v1361 = vunpack.c.l.b16 %v1089
    %v1362 = vunpack.c.l.b16 %v1090
    %v1363 = vunpack.c.l.b16 %v1091
    %v1364 = vunpack.c.l.b16 %v1092
    %v1365 = vunpack.c.l.b16 %v1093
    %v1366 = vunpack.c.l.b16 %v1094
    %v1367 = vunpack.c.l.b16 %v1095
    %v1368 = vunpack.c.l.b16 %v1096
    %v1369 = vunpack.c.l.b16 %v1097
    %v1370 = vunpack.c.l.b16 %v1098
    %v1371 = vunpack.c.l.b16 %v1099
    %v1372 = vunpack.c.l.b16 %v1100
    %v1373 = vunpack.c.l.b16 %v1101
    %v1374 = vunpack.c.l.b16 %v1102
    %v1375 = vunpack.c.l.b16 %v1103
    %v1376 = vunpack.c.l.b16 %v1104
    %v1377 = vunpack.c.l.b16 %v1105
    %v1378 = vunpack.c.l.b16 %v1106
    %v1379 = vunpack.c.l.b16 %v1107
    %v1380 = vunpack.c.l.b16 %v1108
    %v1381 = vunpack.c.l.b16 %v1109
    %v1382 = vunpack.c.l.b16 %v1110
    %v1383 = vunpack.c.l.b16 %v1111
    %v1384 = vunpack.c.l.b16 %v1112
    %v1385 = vunpack.c.l.b16 %v1113
    %v1386 = vunpack.c.l.b16 %v1114
    %v1387 = vunpack.c.l.b16 %v1115
    %v1388 = vunpack.c.l.b16 %v1116
    %v1389 = vunpack.c.l.b16 %v1117
    %v1390 = vunpack.c.l.b16 %v1118
    %v1391 = vunpack.c.l.b16 %v1119
    %v1392 = vunpack.c.l.b16 %v1120
    %v1393 = vunpack.c.l.b16 %v1121
    %v1394 = vunpack.c.l.b16 %v1122
    %v1395 = vunpack.c.l.b16 %v1123
    %v1396 = vunpack.c.l.b16 %v1124
    %v1397 = vunpack.c.l.b16 %v1125
    %v1398 = vunpack.c.l.b16 %v1126
    %v1399 = vunpack.c.l.b16 %v1127
    %v1400 = vunpack.c.l.b16 %v1128
    %v1401 = vunpack.c.l.b16 %v1129
    %v1402 = vunpack.c.l.b16 %v1130
    %v1403 = vunpack.c.l.b16 %v1131
    %v1404 = vunpack.c.l.b16 %v1132
    %v1405 = vunpack.c.l.b16 %v1133
    %v1406 = vunpack.c.l.b16 %v1134
    %v1407 = vunpack.c.l.b16 %v1135
    %v1408 = vunpack.c.l.b16 %v1136
    %v1409 = vunpack.c.l.b16 %v1137
    %v1410 = vunpack.c.l.b16 %v1138
    %v1411 = vunpack.c.l.b16 %v1139
    %v1412 = vunpack.c.l.b16 %v1140
    %v1413 = vunpack.c.l.b16 %v1141
    %v1414 = vunpack.c.l.b16 %v1142
    %v1415 = vunpack.c.l.b16 %v1143
    %v1416 = vunpack.c.l.b16 %v1144
    %v1417 = vunpack.c.l.b16 %v1145
    %v1418 = vunpack.c.l.b16 %v1146
    %v1419 = vunpack.c.l.b16 %v1147
    %v1420 = vunpack.c.l.b16 %v1148
    %v1421 = vunpack.c.l.b16 %v1149
    %v1422 = vunpack.c.l.b16 %v1150
    %v1423 = vunpack.c.l.b16 %v1151
    %v1424 = vunpack.c.l.b16 %v1152
    %v1425 = vunpack.c.l.b16 %v1153
    %v1426 = vunpack.c.l.b16 %v1154
    %v1427 = vunpack.c.l.b16 %v1155
    %v1428 = vunpack.c.l.b16 %v1156
    %v1429 = vunpack.c.l.b16 %v1157
    %v1430 = vunpack.c.l.b16 %v1158
    %v1431 = vunpack.c.l.b16 %v1159
    %v1432 = vunpack.c.l.b16 %v1160
    %v1433 = vunpack.c.l.b16 %v1161
    %v1434 = vunpack.c.l.b16 %v1162
    %v1435 = vunpack.c.l.b16 %v1163
    %v1436 = vunpack.c.l.b16 %v1164
    %v1437 = vunpack.c.l.b16 %v1165
    %v1438 = vunpack.c.l.b16 %v1166
    %v1439 = vunpack.c.l.b16 %v1167
    %v1440 = vunpack.c.l.b16 %v1168
    %v1441 = vunpack.c.l.b16 %v1169
    %v1442 = vunpack.c.l.b16 %v1170
    %v1443 = vunpack.c.l.b16 %v1171
    %v1444 = vunpack.c.l.b16 %v1172
    %v1445 = vunpack.c.l.b16 %v1173
    %v1446 = vunpack.c.l.b16 %v1174
    %v1447 = vunpack.c.l.b16 %v1175
    %v1448 = vunpack.c.l.b16 %v1176
    %v1449 = vunpack.c.l.b16 %v1177
    %v1450 = vunpack.c.l.b16 %v1178
    %v1451 = vunpack.c.l.b16 %v1179
    %v1452 = vunpack.c.l.b16 %v1180
    %v1453 = vunpack.c.l.b16 %v1181
    %v1454 = vunpack.c.l.b16 %v1182
    %v1455 = vunpack.c.l.b16 %v1183
    %v1456 = vunpack.c.l.b16 %v1184
    %v1457 = vunpack.c.l.b16 %v1185
    %v1458 = vunpack.c.l.b16 %v1186
    %v1459 = vunpack.c.l.b16 %v1187
    %v1460 = vunpack.c.l.b16 %v1188
    %v1461 = vunpack.c.l.b16 %v1189
    %v1462 = vunpack.c.l.b16 %v1190
    %v1463 = vunpack.c.l.b16 %v1191
    %v1464 = vunpack.c.l.b16 %v1192
    %v1465 = vunpack.c.l.b16 %v1193
    %v1466 = vunpack.c.l.b16 %v1194
    %v1467 = vunpack.c.l.b16 %v1195
    %v1468 = vunpack.c.l.b16 %v1196
    %v1469 = vunpack.c.l.b16 %v1197
    %v1470 = vunpack.c.l.b16 %v1198
    %v1471 = vunpack.c.l.b16 %v1199
    %v1472 = vunpack.c.l.b16 %v1200
    %v1473 = vunpack.c.l.b16 %v1201
    %v1474 = vunpack.c.l.b16 %v1202
    %v1475 = vunpack.c.l.b16 %v1203
    %v1476 = vunpack.c.l.b16 %v1204
    %v1477 = vunpack.c.l.b16 %v1205
    %v1478 = vunpack.c.l.b16 %v1206
    %v1479 = vunpack.c.l.b16 %v1207
    %v1480 = vunpack.c.l.b16 %v1208
    %v1481 = vpack.c.b16 %v1354, %v1353
    %v1482 = vpack.c.b16 %v1356, %v1355
    %v1483 = vpack.c.b16 %v1358, %v1357
    %v1484 = vpack.c.b16 %v1360, %v1359
    %v1485 = vpack.c.b16 %v1362, %v1361
    %v1486 = vpack.c.b16 %v1364, %v1363
    %v1487 = vpack.c.b16 %v1366, %v1365
    %v1488 = vpack.c.b16 %v1368, %v1367
    %v1489 = vpack.c.b16 %v1370, %v1369
    %v1490 = vpack.c.b16 %v1372, %v1371
    %v1491 = vpack.c.b16 %v1374, %v1373
    %v1492 = vpack.c.b16 %v1376, %v1375
    %v1493 = vpack.c.b16 %v1378, %v1377
    %v1494 = vpack.c.b16 %v1380, %v1379
    %v1495 = vpack.c.b16 %v1382, %v1381
    %v1496 = vpack.c.b16 %v1384, %v1383
    %v1497 = vpack.c.b16 %v1386, %v1385
    %v1498 = vpack.c.b16 %v1388, %v1387
    %v1499 = vpack.c.b16 %v1390, %v1389
    %v1500 = vpack.c.b16 %v1392, %v1391
    %v1501 = vpack.c.b16 %v1394, %v1393
    %v1502 = vpack.c.b16 %v1396, %v1395
    %v1503 = vpack.c.b16 %v1398, %v1397
    %v1504 = vpack.c.b16 %v1400, %v1399
    %v1505 = vpack.c.b16 %v1402, %v1401
    %v1506 = vpack.c.b16 %v1404, %v1403
    %v1507 = vpack.c.b16 %v1406, %v1405
    %v1508 = vpack.c.b16 %v1408, %v1407
    %v1509 = vpack.c.b16 %v1410, %v1409
    %v1510 = vpack.c.b16 %v1412, %v1411
    %v1511 = vpack.c.b16 %v1414, %v1413
    %v1512 = vpack.c.b16 %v1416, %v1415
    %v1513 = vpack.c.b16 %v1418, %v1417
    %v1514 = vpack.c.b16 %v1420, %v1419
    %v1515 = vpack.c.b16 %v1422, %v1421
    %v1516 = vpack.c.b16 %v1424, %v1423
    %v1517 = vpack.c.b16 %v1426, %v1425
    %v1518 = vpack.c.b16 %v1428, %v1427
    %v1519 = vpack.c.b16 %v1430, %v1429
    %v1520 = vpack.c.b16 %v1432, %v1431
    %v1521 = vpack.c.b16 %v1434, %v1433
    %v1522 = vpack.c.b16 %v1436, %v1435
    %v1523 = vpack.c.b16 %v1438, %v1437
    %v1524 = vpack.c.b16 %v1440, %v1439
    %v1525 = vpack.c.b16 %v1442, %v1441
    %v1526 = vpack.c.b16 %v1444, %v1443
    %v1527 = vpack.c.b16 %v1446, %v1445
    %v1528 = vpack.c.b16 %v1448, %v1447
    %v1529 = vpack.c.b16 %v1450, %v1449
    %v1530 = vpack.c.b16 %v1452, %v1451
    %v1531 = vpack.c.b16 %v1454, %v1453
    %v1532 = vpack.c.b16 %v1456, %v1455
    %v1533 = vpack.c.b16 %v1458, %v1457
    %v1534 = vpack.c.b16 %v1460, %v1459
    %v1535 = vpack.c.b16 %v1462, %v1461
    %v1536 = vpack.c.b16 %v1464, %v1463
    %v1537 = vpack.c.b16 %v1466, %v1465
    %v1538 = vpack.c.b16 %v1468, %v1467
    %v1539 = vpack.c.b16 %v1470, %v1469
    %v1540 = vpack.c.b16 %v1472, %v1471
    %v1541 = vpack.c.b16 %v1474, %v1473
    %v1542 = vpack.c.b16 %v1476, %v1475
    %v1543 = vpack.c.b16 %v1478, %v1477
    %v1544 = vpack.c.b16 %v1480, %v1479
    %v1625 = vunpack.c.l.b16 %v1209
    %v1626 = vunpack.c.l.b16 %v1210
    %v1627 = vunpack.c.l.b16 %v1211
    %v1628 = vunpack.c.l.b16 %v1212
    %v1629 = vunpack.c.l.b16 %v1213
    %v1630 = vunpack.c.l.b16 %v1214
    %v1631 = vunpack.c.l.b16 %v1215
    %v1632 = vunpack.c.l.b16 %v1216
    %v1633 = vunpack.c.l.b16 %v1217
    %v1634 = vunpack.c.l.b16 %v1218
    %v1635 = vunpack.c.l.b16 %v1219
    %v1636 = vunpack.c.l.b16 %v1220
    %v1637 = vunpack.c.l.b16 %v1221
    %v1638 = vunpack.c.l.b16 %v1222
    %v1639 = vunpack.c.l.b16 %v1223
    %v1640 = vunpack.c.l.b16 %v1224
    %v1641 = vpack.c.b16 %v1626, %v1625
    %v1642 = vpack.c.b16 %v1628, %v1627
    %v1643 = vpack.c.b16 %v1630, %v1629
    %v1644 = vpack.c.b16 %v1632, %v1631
    %v1645 = vpack.c.b16 %v1634, %v1633
    %v1646 = vpack.c.b16 %v1636, %v1635
    %v1647 = vpack.c.b16 %v1638, %v1637
    %v1648 = vpack.c.b16 %v1640, %v1639
    %1657 = vmatpush.bf16.msra.mxu0 %v1648
    %1658 = vmatpush.bf16.msra.mxu0 %v1647
    %1659 = vmatpush.bf16.msra.mxu0 %v1646
    %1660 = vmatpush.bf16.msra.mxu0 %v1645
    %1661 = vmatpush.bf16.msra.mxu0 %v1644
    %1662 = vmatpush.bf16.msra.mxu0 %v1643
    %1663 = vmatpush.bf16.msra.mxu0 %v1642
    %1664 = vmatpush.bf16.msra.mxu0 %v1641
    %1665 = vmatmul.bf16.gmra.mxu0 %v1481
    %v1666 = vpop.f32.mrf.mxu0
    %v1667 = vadd.f32 0.0, %v1666
    %v1668 = vpop.f32.mrf.mxu0
    %v1669 = vadd.f32 0.0, %v1668
    %1670 = vmatmul.bf16.gmra.mxu0 %v1482
    %v1671 = vpop.f32.mrf.mxu0
    %v1672 = vadd.f32 0.0, %v1671
    %v1673 = vpop.f32.mrf.mxu0
    %v1674 = vadd.f32 0.0, %v1673
    %1675 = vmatmul.bf16.gmra.mxu0 %v1483
    %v1676 = vpop.f32.mrf.mxu0
    %v1677 = vadd.f32 0.0, %v1676
    %v1678 = vpop.f32.mrf.mxu0
    %v1679 = vadd.f32 0.0, %v1678
    %1680 = vmatmul.bf16.gmra.mxu0 %v1484
    %v1681 = vpop.f32.mrf.mxu0
    %v1682 = vadd.f32 0.0, %v1681
    %v1683 = vpop.f32.mrf.mxu0
    %v1684 = vadd.f32 0.0, %v1683
    %1685 = vmatmul.bf16.gmra.mxu0 %v1485
    %v1686 = vpop.f32.mrf.mxu0
    %v1687 = vadd.f32 0.0, %v1686
    %v1688 = vpop.f32.mrf.mxu0
    %v1689 = vadd.f32 0.0, %v1688
    %1690 = vmatmul.bf16.gmra.mxu0 %v1486
    %v1691 = vpop.f32.mrf.mxu0
    %v1692 = vadd.f32 0.0, %v1691
    %v1693 = vpop.f32.mrf.mxu0
    %v1694 = vadd.f32 0.0, %v1693
    %1695 = vmatmul.bf16.gmra.mxu0 %v1487
    %v1696 = vpop.f32.mrf.mxu0
    %v1697 = vadd.f32 0.0, %v1696
    %v1698 = vpop.f32.mrf.mxu0
    %v1699 = vadd.f32 0.0, %v1698
    %1700 = vmatmul.bf16.gmra.mxu0 %v1488
    %v1701 = vpop.f32.mrf.mxu0
    %v1702 = vadd.f32 0.0, %v1701
    %v1703 = vpop.f32.mrf.mxu0
    %v1704 = vadd.f32 0.0, %v1703
    %1705 = vmatmul.bf16.gmra.mxu0 %v1489
    %v1706 = vpop.f32.mrf.mxu0
    %v1707 = vadd.f32 0.0, %v1706
    %v1708 = vpop.f32.mrf.mxu0
    %v1709 = vadd.f32 0.0, %v1708
    %1710 = vmatmul.bf16.gmra.mxu0 %v1490
    %v1711 = vpop.f32.mrf.mxu0
    %v1712 = vadd.f32 0.0, %v1711
    %v1713 = vpop.f32.mrf.mxu0
    %v1714 = vadd.f32 0.0, %v1713
    %1715 = vmatmul.bf16.gmra.mxu0 %v1491
    %v1716 = vpop.f32.mrf.mxu0
    %v1717 = vadd.f32 0.0, %v1716
    %v1718 = vpop.f32.mrf.mxu0
    %v1719 = vadd.f32 0.0, %v1718
    %1720 = vmatmul.bf16.gmra.mxu0 %v1492
    %v1721 = vpop.f32.mrf.mxu0
    %v1722 = vadd.f32 0.0, %v1721
    %v1723 = vpop.f32.mrf.mxu0
    %v1724 = vadd.f32 0.0, %v1723
    %1725 = vmatmul.bf16.gmra.mxu0 %v1493
    %v1726 = vpop.f32.mrf.mxu0
    %v1727 = vadd.f32 0.0, %v1726
    %v1728 = vpop.f32.mrf.mxu0
    %v1729 = vadd.f32 0.0, %v1728
    %1730 = vmatmul.bf16.gmra.mxu0 %v1494
    %v1731 = vpop.f32.mrf.mxu0
    %v1732 = vadd.f32 0.0, %v1731
    %v1733 = vpop.f32.mrf.mxu0
    %v1734 = vadd.f32 0.0, %v1733
    %1735 = vmatmul.bf16.gmra.mxu0 %v1495
    %v1736 = vpop.f32.mrf.mxu0
    %v1737 = vadd.f32 0.0, %v1736
    %v1738 = vpop.f32.mrf.mxu0
    %v1739 = vadd.f32 0.0, %v1738
    %1740 = vmatmul.bf16.gmra.mxu0 %v1496
    %v1741 = vpop.f32.mrf.mxu0
    %v1742 = vadd.f32 0.0, %v1741
    %v1743 = vpop.f32.mrf.mxu0
    %v1744 = vadd.f32 0.0, %v1743
    %1745 = vmatmul.bf16.gmra.mxu0 %v1497
    %v1746 = vpop.f32.mrf.mxu0
    %v1747 = vadd.f32 0.0, %v1746
    %v1748 = vpop.f32.mrf.mxu0
    %v1749 = vadd.f32 0.0, %v1748
    %1750 = vmatmul.bf16.gmra.mxu0 %v1498
    %v1751 = vpop.f32.mrf.mxu0
    %v1752 = vadd.f32 0.0, %v1751
    %v1753 = vpop.f32.mrf.mxu0
    %v1754 = vadd.f32 0.0, %v1753
    %1755 = vmatmul.bf16.gmra.mxu0 %v1499
    %v1756 = vpop.f32.mrf.mxu0
    %v1757 = vadd.f32 0.0, %v1756
    %v1758 = vpop.f32.mrf.mxu0
    %v1759 = vadd.f32 0.0, %v1758
    %1760 = vmatmul.bf16.gmra.mxu0 %v1500
    %v1761 = vpop.f32.mrf.mxu0
    %v1762 = vadd.f32 0.0, %v1761
    %v1763 = vpop.f32.mrf.mxu0
    %v1764 = vadd.f32 0.0, %v1763
    %1765 = vmatmul.bf16.gmra.mxu0 %v1501
    %v1766 = vpop.f32.mrf.mxu0
    %v1767 = vadd.f32 0.0, %v1766
    %v1768 = vpop.f32.mrf.mxu0
    %v1769 = vadd.f32 0.0, %v1768
    %1770 = vmatmul.bf16.gmra.mxu0 %v1502
    %v1771 = vpop.f32.mrf.mxu0
    %v1772 = vadd.f32 0.0, %v1771
    %v1773 = vpop.f32.mrf.mxu0
    %v1774 = vadd.f32 0.0, %v1773
    %1775 = vmatmul.bf16.gmra.mxu0 %v1503
    %v1776 = vpop.f32.mrf.mxu0
    %v1777 = vadd.f32 0.0, %v1776
    %v1778 = vpop.f32.mrf.mxu0
    %v1779 = vadd.f32 0.0, %v1778
    %1780 = vmatmul.bf16.gmra.mxu0 %v1504
    %v1781 = vpop.f32.mrf.mxu0
    %v1782 = vadd.f32 0.0, %v1781
    %v1783 = vpop.f32.mrf.mxu0
    %v1784 = vadd.f32 0.0, %v1783
    %1785 = vmatmul.bf16.gmra.mxu0 %v1505
    %v1786 = vpop.f32.mrf.mxu0
    %v1787 = vadd.f32 0.0, %v1786
    %v1788 = vpop.f32.mrf.mxu0
    %v1789 = vadd.f32 0.0, %v1788
    %1790 = vmatmul.bf16.gmra.mxu0 %v1506
    %v1791 = vpop.f32.mrf.mxu0
    %v1792 = vadd.f32 0.0, %v1791
    %v1793 = vpop.f32.mrf.mxu0
    %v1794 = vadd.f32 0.0, %v1793
    %1795 = vmatmul.bf16.gmra.mxu0 %v1507
    %v1796 = vpop.f32.mrf.mxu0
    %v1797 = vadd.f32 0.0, %v1796
    %v1798 = vpop.f32.mrf.mxu0
    %v1799 = vadd.f32 0.0, %v1798
    %1800 = vmatmul.bf16.gmra.mxu0 %v1508
    %v1801 = vpop.f32.mrf.mxu0
    %v1802 = vadd.f32 0.0, %v1801
    %v1803 = vpop.f32.mrf.mxu0
    %v1804 = vadd.f32 0.0, %v1803
    %1805 = vmatmul.bf16.gmra.mxu0 %v1509
    %v1806 = vpop.f32.mrf.mxu0
    %v1807 = vadd.f32 0.0, %v1806
    %v1808 = vpop.f32.mrf.mxu0
    %v1809 = vadd.f32 0.0, %v1808
    %1810 = vmatmul.bf16.gmra.mxu0 %v1510
    %v1811 = vpop.f32.mrf.mxu0
    %v1812 = vadd.f32 0.0, %v1811
    %v1813 = vpop.f32.mrf.mxu0
    %v1814 = vadd.f32 0.0, %v1813
    %1815 = vmatmul.bf16.gmra.mxu0 %v1511
    %v1816 = vpop.f32.mrf.mxu0
    %v1817 = vadd.f32 0.0, %v1816
    %v1818 = vpop.f32.mrf.mxu0
    %v1819 = vadd.f32 0.0, %v1818
    %1820 = vmatmul.bf16.gmra.mxu0 %v1512
    %v1821 = vpop.f32.mrf.mxu0
    %v1822 = vadd.f32 0.0, %v1821
    %v1823 = vpop.f32.mrf.mxu0
    %v1824 = vadd.f32 0.0, %v1823
    %1825 = vmatmul.bf16.gmra.mxu0 %v1513
    %v1826 = vpop.f32.mrf.mxu0
    %v1827 = vadd.f32 0.0, %v1826
    %v1828 = vpop.f32.mrf.mxu0
    %v1829 = vadd.f32 0.0, %v1828
    %1830 = vmatmul.bf16.gmra.mxu0 %v1514
    %v1831 = vpop.f32.mrf.mxu0
    %v1832 = vadd.f32 0.0, %v1831
    %v1833 = vpop.f32.mrf.mxu0
    %v1834 = vadd.f32 0.0, %v1833
    %1835 = vmatmul.bf16.gmra.mxu0 %v1515
    %v1836 = vpop.f32.mrf.mxu0
    %v1837 = vadd.f32 0.0, %v1836
    %v1838 = vpop.f32.mrf.mxu0
    %v1839 = vadd.f32 0.0, %v1838
    %1840 = vmatmul.bf16.gmra.mxu0 %v1516
    %v1841 = vpop.f32.mrf.mxu0
    %v1842 = vadd.f32 0.0, %v1841
    %v1843 = vpop.f32.mrf.mxu0
    %v1844 = vadd.f32 0.0, %v1843
    %1845 = vmatmul.bf16.gmra.mxu0 %v1517
    %v1846 = vpop.f32.mrf.mxu0
    %v1847 = vadd.f32 0.0, %v1846
    %v1848 = vpop.f32.mrf.mxu0
    %v1849 = vadd.f32 0.0, %v1848
    %1850 = vmatmul.bf16.gmra.mxu0 %v1518
    %v1851 = vpop.f32.mrf.mxu0
    %v1852 = vadd.f32 0.0, %v1851
    %v1853 = vpop.f32.mrf.mxu0
    %v1854 = vadd.f32 0.0, %v1853
    %1855 = vmatmul.bf16.gmra.mxu0 %v1519
    %v1856 = vpop.f32.mrf.mxu0
    %v1857 = vadd.f32 0.0, %v1856
    %v1858 = vpop.f32.mrf.mxu0
    %v1859 = vadd.f32 0.0, %v1858
    %1860 = vmatmul.bf16.gmra.mxu0 %v1520
    %v1861 = vpop.f32.mrf.mxu0
    %v1862 = vadd.f32 0.0, %v1861
    %v1863 = vpop.f32.mrf.mxu0
    %v1864 = vadd.f32 0.0, %v1863
    %1865 = vmatmul.bf16.gmra.mxu0 %v1521
    %v1866 = vpop.f32.mrf.mxu0
    %v1867 = vadd.f32 0.0, %v1866
    %v1868 = vpop.f32.mrf.mxu0
    %v1869 = vadd.f32 0.0, %v1868
    %1870 = vmatmul.bf16.gmra.mxu0 %v1522
    %v1871 = vpop.f32.mrf.mxu0
    %v1872 = vadd.f32 0.0, %v1871
    %v1873 = vpop.f32.mrf.mxu0
    %v1874 = vadd.f32 0.0, %v1873
    %1875 = vmatmul.bf16.gmra.mxu0 %v1523
    %v1876 = vpop.f32.mrf.mxu0
    %v1877 = vadd.f32 0.0, %v1876
    %v1878 = vpop.f32.mrf.mxu0
    %v1879 = vadd.f32 0.0, %v1878
    %1880 = vmatmul.bf16.gmra.mxu0 %v1524
    %v1881 = vpop.f32.mrf.mxu0
    %v1882 = vadd.f32 0.0, %v1881
    %v1883 = vpop.f32.mrf.mxu0
    %v1884 = vadd.f32 0.0, %v1883
    %1885 = vmatmul.bf16.gmra.mxu0 %v1525
    %v1886 = vpop.f32.mrf.mxu0
    %v1887 = vadd.f32 0.0, %v1886
    %v1888 = vpop.f32.mrf.mxu0
    %v1889 = vadd.f32 0.0, %v1888
    %1890 = vmatmul.bf16.gmra.mxu0 %v1526
    %v1891 = vpop.f32.mrf.mxu0
    %v1892 = vadd.f32 0.0, %v1891
    %v1893 = vpop.f32.mrf.mxu0
    %v1894 = vadd.f32 0.0, %v1893
    %1895 = vmatmul.bf16.gmra.mxu0 %v1527
    %v1896 = vpop.f32.mrf.mxu0
    %v1897 = vadd.f32 0.0, %v1896
    %v1898 = vpop.f32.mrf.mxu0
    %v1899 = vadd.f32 0.0, %v1898
    %1900 = vmatmul.bf16.gmra.mxu0 %v1528
    %v1901 = vpop.f32.mrf.mxu0
    %v1902 = vadd.f32 0.0, %v1901
    %v1903 = vpop.f32.mrf.mxu0
    %v1904 = vadd.f32 0.0, %v1903
    %1905 = vmatmul.bf16.gmra.mxu0 %v1529
    %v1906 = vpop.f32.mrf.mxu0
    %v1907 = vadd.f32 0.0, %v1906
    %v1908 = vpop.f32.mrf.mxu0
    %v1909 = vadd.f32 0.0, %v1908
    %1910 = vmatmul.bf16.gmra.mxu0 %v1530
    %v1911 = vpop.f32.mrf.mxu0
    %v1912 = vadd.f32 0.0, %v1911
    %v1913 = vpop.f32.mrf.mxu0
    %v1914 = vadd.f32 0.0, %v1913
    %1915 = vmatmul.bf16.gmra.mxu0 %v1531
    %v1916 = vpop.f32.mrf.mxu0
    %v1917 = vadd.f32 0.0, %v1916
    %v1918 = vpop.f32.mrf.mxu0
    %v1919 = vadd.f32 0.0, %v1918
    %1920 = vmatmul.bf16.gmra.mxu0 %v1532
    %v1921 = vpop.f32.mrf.mxu0
    %v1922 = vadd.f32 0.0, %v1921
    %v1923 = vpop.f32.mrf.mxu0
    %v1924 = vadd.f32 0.0, %v1923
    %1925 = vmatmul.bf16.gmra.mxu0 %v1533
    %v1926 = vpop.f32.mrf.mxu0
    %v1927 = vadd.f32 0.0, %v1926
    %v1928 = vpop.f32.mrf.mxu0
    %v1929 = vadd.f32 0.0, %v1928
    %1930 = vmatmul.bf16.gmra.mxu0 %v1534
    %v1931 = vpop.f32.mrf.mxu0
    %v1932 = vadd.f32 0.0, %v1931
    %v1933 = vpop.f32.mrf.mxu0
    %v1934 = vadd.f32 0.0, %v1933
    %1935 = vmatmul.bf16.gmra.mxu0 %v1535
    %v1936 = vpop.f32.mrf.mxu0
    %v1937 = vadd.f32 0.0, %v1936
    %v1938 = vpop.f32.mrf.mxu0
    %v1939 = vadd.f32 0.0, %v1938
    %1940 = vmatmul.bf16.gmra.mxu0 %v1536
    %v1941 = vpop.f32.mrf.mxu0
    %v1942 = vadd.f32 0.0, %v1941
    %v1943 = vpop.f32.mrf.mxu0
    %v1944 = vadd.f32 0.0, %v1943
    %1945 = vmatmul.bf16.gmra.mxu0 %v1537
    %v1946 = vpop.f32.mrf.mxu0
    %v1947 = vadd.f32 0.0, %v1946
    %v1948 = vpop.f32.mrf.mxu0
    %v1949 = vadd.f32 0.0, %v1948
    %1950 = vmatmul.bf16.gmra.mxu0 %v1538
    %v1951 = vpop.f32.mrf.mxu0
    %v1952 = vadd.f32 0.0, %v1951
    %v1953 = vpop.f32.mrf.mxu0
    %v1954 = vadd.f32 0.0, %v1953
    %1955 = vmatmul.bf16.gmra.mxu0 %v1539
    %v1956 = vpop.f32.mrf.mxu0
    %v1957 = vadd.f32 0.0, %v1956
    %v1958 = vpop.f32.mrf.mxu0
    %v1959 = vadd.f32 0.0, %v1958
    %1960 = vmatmul.bf16.gmra.mxu0 %v1540
    %v1961 = vpop.f32.mrf.mxu0
    %v1962 = vadd.f32 0.0, %v1961
    %v1963 = vpop.f32.mrf.mxu0
    %v1964 = vadd.f32 0.0, %v1963
    %1965 = vmatmul.bf16.gmra.mxu0 %v1541
    %v1966 = vpop.f32.mrf.mxu0
    %v1967 = vadd.f32 0.0, %v1966
    %v1968 = vpop.f32.mrf.mxu0
    %v1969 = vadd.f32 0.0, %v1968
    %1970 = vmatmul.bf16.gmra.mxu0 %v1542
    %v1971 = vpop.f32.mrf.mxu0
    %v1972 = vadd.f32 0.0, %v1971
    %v1973 = vpop.f32.mrf.mxu0
    %v1974 = vadd.f32 0.0, %v1973
    %1975 = vmatmul.bf16.gmra.mxu0 %v1543
    %v1976 = vpop.f32.mrf.mxu0
    %v1977 = vadd.f32 0.0, %v1976
    %v1978 = vpop.f32.mrf.mxu0
    %v1979 = vadd.f32 0.0, %v1978
    %1980 = vmatmul.bf16.gmra.mxu0 %v1544
    %v1981 = vpop.f32.mrf.mxu0
    %v1982 = vadd.f32 0.0, %v1981
    %v1983 = vpop.f32.mrf.mxu0
    %v1984 = vadd.f32 0.0, %v1983
    %1985 = vdwg.mxu0
    %v1986 = vld [vmem:[#allocation2] sm:$0xff]
    %v1988 = vrot.slane %v1986, 1
    %v1989 = vrot.slane %v1986, 2
    %v1990 = vrot.slane %v1986, 3
    %v1991 = vrot.slane %v1986, 4
    %v1992 = vrot.slane %v1986, 5
    %v1993 = vrot.slane %v1986, 6
    %v1994 = vrot.slane %v1986, 7
    %v1995 = vperm.slane %v1986, 0
    %v1996 = vperm.slane %v1988, 0
    %v1997 = vperm.slane %v1989, 0
    %v1998 = vperm.slane %v1990, 0
    %v1999 = vperm.slane %v1991, 0
    %v2000 = vperm.slane %v1992, 0
    %v2001 = vperm.slane %v1993, 0
    %v2002 = vperm.slane %v1994, 0
    %v2011 = vadd.f32 %v1995, %v1667
    %v2012 = vadd.f32 %v1995, %v1669
    %v2013 = vadd.f32 %v1995, %v1672
    %v2014 = vadd.f32 %v1995, %v1674
    %v2015 = vadd.f32 %v1995, %v1677
    %v2016 = vadd.f32 %v1995, %v1679
    %v2017 = vadd.f32 %v1995, %v1682
    %v2018 = vadd.f32 %v1995, %v1684
    %v2019 = vadd.f32 %v1995, %v1687
    %v2020 = vadd.f32 %v1995, %v1689
    %v2021 = vadd.f32 %v1995, %v1692
    %v2022 = vadd.f32 %v1995, %v1694
    %v2023 = vadd.f32 %v1995, %v1697
    %v2024 = vadd.f32 %v1995, %v1699
    %v2025 = vadd.f32 %v1995, %v1702
    %v2026 = vadd.f32 %v1995, %v1704
    %v2027 = vadd.f32 %v1996, %v1707
    %v2028 = vadd.f32 %v1996, %v1709
    %v2029 = vadd.f32 %v1996, %v1712
    %v2030 = vadd.f32 %v1996, %v1714
    %v2031 = vadd.f32 %v1996, %v1717
    %v2032 = vadd.f32 %v1996, %v1719
    %v2033 = vadd.f32 %v1996, %v1722
    %v2034 = vadd.f32 %v1996, %v1724
    %v2035 = vadd.f32 %v1996, %v1727
    %v2036 = vadd.f32 %v1996, %v1729
    %v2037 = vadd.f32 %v1996, %v1732
    %v2038 = vadd.f32 %v1996, %v1734
    %v2039 = vadd.f32 %v1996, %v1737
    %v2040 = vadd.f32 %v1996, %v1739
    %v2041 = vadd.f32 %v1996, %v1742
    %v2042 = vadd.f32 %v1996, %v1744
    %v2043 = vadd.f32 %v1997, %v1747
    %v2044 = vadd.f32 %v1997, %v1749
    %v2045 = vadd.f32 %v1997, %v1752
    %v2046 = vadd.f32 %v1997, %v1754
    %v2047 = vadd.f32 %v1997, %v1757
    %v2048 = vadd.f32 %v1997, %v1759
    %v2049 = vadd.f32 %v1997, %v1762
    %v2050 = vadd.f32 %v1997, %v1764
    %v2051 = vadd.f32 %v1997, %v1767
    %v2052 = vadd.f32 %v1997, %v1769
    %v2053 = vadd.f32 %v1997, %v1772
    %v2054 = vadd.f32 %v1997, %v1774
    %v2055 = vadd.f32 %v1997, %v1777
    %v2056 = vadd.f32 %v1997, %v1779
    %v2057 = vadd.f32 %v1997, %v1782
    %v2058 = vadd.f32 %v1997, %v1784
    %v2059 = vadd.f32 %v1998, %v1787
    %v2060 = vadd.f32 %v1998, %v1789
    %v2061 = vadd.f32 %v1998, %v1792
    %v2062 = vadd.f32 %v1998, %v1794
    %v2063 = vadd.f32 %v1998, %v1797
    %v2064 = vadd.f32 %v1998, %v1799
    %v2065 = vadd.f32 %v1998, %v1802
    %v2066 = vadd.f32 %v1998, %v1804
    %v2067 = vadd.f32 %v1998, %v1807
    %v2068 = vadd.f32 %v1998, %v1809
    %v2069 = vadd.f32 %v1998, %v1812
    %v2070 = vadd.f32 %v1998, %v1814
    %v2071 = vadd.f32 %v1998, %v1817
    %v2072 = vadd.f32 %v1998, %v1819
    %v2073 = vadd.f32 %v1998, %v1822
    %v2074 = vadd.f32 %v1998, %v1824
    %v2075 = vadd.f32 %v1999, %v1827
    %v2076 = vadd.f32 %v1999, %v1829
    %v2077 = vadd.f32 %v1999, %v1832
    %v2078 = vadd.f32 %v1999, %v1834
    %v2079 = vadd.f32 %v1999, %v1837
    %v2080 = vadd.f32 %v1999, %v1839
    %v2081 = vadd.f32 %v1999, %v1842
    %v2082 = vadd.f32 %v1999, %v1844
    %v2083 = vadd.f32 %v1999, %v1847
    %v2084 = vadd.f32 %v1999, %v1849
    %v2085 = vadd.f32 %v1999, %v1852
    %v2086 = vadd.f32 %v1999, %v1854
    %v2087 = vadd.f32 %v1999, %v1857
    %v2088 = vadd.f32 %v1999, %v1859
    %v2089 = vadd.f32 %v1999, %v1862
    %v2090 = vadd.f32 %v1999, %v1864
    %v2091 = vadd.f32 %v2000, %v1867
    %v2092 = vadd.f32 %v2000, %v1869
    %v2093 = vadd.f32 %v2000, %v1872
    %v2094 = vadd.f32 %v2000, %v1874
    %v2095 = vadd.f32 %v2000, %v1877
    %v2096 = vadd.f32 %v2000, %v1879
    %v2097 = vadd.f32 %v2000, %v1882
    %v2098 = vadd.f32 %v2000, %v1884
    %v2099 = vadd.f32 %v2000, %v1887
    %v2100 = vadd.f32 %v2000, %v1889
    %v2101 = vadd.f32 %v2000, %v1892
    %v2102 = vadd.f32 %v2000, %v1894
    %v2103 = vadd.f32 %v2000, %v1897
    %v2104 = vadd.f32 %v2000, %v1899
    %v2105 = vadd.f32 %v2000, %v1902
    %v2106 = vadd.f32 %v2000, %v1904
    %v2107 = vadd.f32 %v2001, %v1907
    %v2108 = vadd.f32 %v2001, %v1909
    %v2109 = vadd.f32 %v2001, %v1912
    %v2110 = vadd.f32 %v2001, %v1914
    %v2111 = vadd.f32 %v2001, %v1917
    %v2112 = vadd.f32 %v2001, %v1919
    %v2113 = vadd.f32 %v2001, %v1922
    %v2114 = vadd.f32 %v2001, %v1924
    %v2115 = vadd.f32 %v2001, %v1927
    %v2116 = vadd.f32 %v2001, %v1929
    %v2117 = vadd.f32 %v2001, %v1932
    %v2118 = vadd.f32 %v2001, %v1934
    %v2119 = vadd.f32 %v2001, %v1937
    %v2120 = vadd.f32 %v2001, %v1939
    %v2121 = vadd.f32 %v2001, %v1942
    %v2122 = vadd.f32 %v2001, %v1944
    %v2123 = vadd.f32 %v2002, %v1947
    %v2124 = vadd.f32 %v2002, %v1949
    %v2125 = vadd.f32 %v2002, %v1952
    %v2126 = vadd.f32 %v2002, %v1954
    %v2127 = vadd.f32 %v2002, %v1957
    %v2128 = vadd.f32 %v2002, %v1959
    %v2129 = vadd.f32 %v2002, %v1962
    %v2130 = vadd.f32 %v2002, %v1964
    %v2131 = vadd.f32 %v2002, %v1967
    %v2132 = vadd.f32 %v2002, %v1969
    %v2133 = vadd.f32 %v2002, %v1972
    %v2134 = vadd.f32 %v2002, %v1974
    %v2135 = vadd.f32 %v2002, %v1977
    %v2136 = vadd.f32 %v2002, %v1979
    %v2137 = vadd.f32 %v2002, %v1982
    %v2138 = vadd.f32 %v2002, %v1984
    %v2139 = vtanh.pop %v2011
    %v2140 = vtanh.pop %v2012
    %v2141 = vtanh.pop %v2013
    %v2142 = vtanh.pop %v2014
    %v2143 = vtanh.pop %v2015
    %v2144 = vtanh.pop %v2016
    %v2145 = vtanh.pop %v2017
    %v2146 = vtanh.pop %v2018
    %v2147 = vtanh.pop %v2019
    %v2148 = vtanh.pop %v2020
    %v2149 = vtanh.pop %v2021
    %v2150 = vtanh.pop %v2022
    %v2151 = vtanh.pop %v2023
    %v2152 = vtanh.pop %v2024
    %v2153 = vtanh.pop %v2025
    %v2154 = vtanh.pop %v2026
    %v2155 = vtanh.pop %v2027
    %v2156 = vtanh.pop %v2028
    %v2157 = vtanh.pop %v2029
    %v2158 = vtanh.pop %v2030
    %v2159 = vtanh.pop %v2031
    %v2160 = vtanh.pop %v2032
    %v2161 = vtanh.pop %v2033
    %v2162 = vtanh.pop %v2034
    %v2163 = vtanh.pop %v2035
    %v2164 = vtanh.pop %v2036
    %v2165 = vtanh.pop %v2037
    %v2166 = vtanh.pop %v2038
    %v2167 = vtanh.pop %v2039
    %v2168 = vtanh.pop %v2040
    %v2169 = vtanh.pop %v2041
    %v2170 = vtanh.pop %v2042
    %v2171 = vtanh.pop %v2043
    %v2172 = vtanh.pop %v2044
    %v2173 = vtanh.pop %v2045
    %v2174 = vtanh.pop %v2046
    %v2175 = vtanh.pop %v2047
    %v2176 = vtanh.pop %v2048
    %v2177 = vtanh.pop %v2049
    %v2178 = vtanh.pop %v2050
    %v2179 = vtanh.pop %v2051
    %v2180 = vtanh.pop %v2052
    %v2181 = vtanh.pop %v2053
    %v2182 = vtanh.pop %v2054
    %v2183 = vtanh.pop %v2055
    %v2184 = vtanh.pop %v2056
    %v2185 = vtanh.pop %v2057
    %v2186 = vtanh.pop %v2058
    %v2187 = vtanh.pop %v2059
    %v2188 = vtanh.pop %v2060
    %v2189 = vtanh.pop %v2061
    %v2190 = vtanh.pop %v2062
    %v2191 = vtanh.pop %v2063
    %v2192 = vtanh.pop %v2064
    %v2193 = vtanh.pop %v2065
    %v2194 = vtanh.pop %v2066
    %v2195 = vtanh.pop %v2067
    %v2196 = vtanh.pop %v2068
    %v2197 = vtanh.pop %v2069
    %v2198 = vtanh.pop %v2070
    %v2199 = vtanh.pop %v2071
    %v2200 = vtanh.pop %v2072
    %v2201 = vtanh.pop %v2073
    %v2202 = vtanh.pop %v2074
    %v2203 = vtanh.pop %v2075
    %v2204 = vtanh.pop %v2076
    %v2205 = vtanh.pop %v2077
    %v2206 = vtanh.pop %v2078
    %v2207 = vtanh.pop %v2079
    %v2208 = vtanh.pop %v2080
    %v2209 = vtanh.pop %v2081
    %v2210 = vtanh.pop %v2082
    %v2211 = vtanh.pop %v2083
    %v2212 = vtanh.pop %v2084
    %v2213 = vtanh.pop %v2085
    %v2214 = vtanh.pop %v2086
    %v2215 = vtanh.pop %v2087
    %v2216 = vtanh.pop %v2088
    %v2217 = vtanh.pop %v2089
    %v2218 = vtanh.pop %v2090
    %v2219 = vtanh.pop %v2091
    %v2220 = vtanh.pop %v2092
    %v2221 = vtanh.pop %v2093
    %v2222 = vtanh.pop %v2094
    %v2223 = vtanh.pop %v2095
    %v2224 = vtanh.pop %v2096
    %v2225 = vtanh.pop %v2097
    %v2226 = vtanh.pop %v2098
    %v2227 = vtanh.pop %v2099
    %v2228 = vtanh.pop %v2100
    %v2229 = vtanh.pop %v2101
    %v2230 = vtanh.pop %v2102
    %v2231 = vtanh.pop %v2103
    %v2232 = vtanh.pop %v2104
    %v2233 = vtanh.pop %v2105
    %v2234 = vtanh.pop %v2106
    %v2235 = vtanh.pop %v2107
    %v2236 = vtanh.pop %v2108
    %v2237 = vtanh.pop %v2109
    %v2238 = vtanh.pop %v2110
    %v2239 = vtanh.pop %v2111
    %v2240 = vtanh.pop %v2112
    %v2241 = vtanh.pop %v2113
    %v2242 = vtanh.pop %v2114
    %v2243 = vtanh.pop %v2115
    %v2244 = vtanh.pop %v2116
    %v2245 = vtanh.pop %v2117
    %v2246 = vtanh.pop %v2118
    %v2247 = vtanh.pop %v2119
    %v2248 = vtanh.pop %v2120
    %v2249 = vtanh.pop %v2121
    %v2250 = vtanh.pop %v2122
    %v2251 = vtanh.pop %v2123
    %v2252 = vtanh.pop %v2124
    %v2253 = vtanh.pop %v2125
    %v2254 = vtanh.pop %v2126
    %v2255 = vtanh.pop %v2127
    %v2256 = vtanh.pop %v2128
    %v2257 = vtanh.pop %v2129
    %v2258 = vtanh.pop %v2130
    %v2259 = vtanh.pop %v2131
    %v2260 = vtanh.pop %v2132
    %v2261 = vtanh.pop %v2133
    %v2262 = vtanh.pop %v2134
    %v2263 = vtanh.pop %v2135
    %v2264 = vtanh.pop %v2136
    %v2265 = vtanh.pop %v2137
    %v2266 = vtanh.pop %v2138
    %v2267 = vld [vmem:[%s12] sm:$0x1]
    %v2269 = vperm.slane %v2267, 0
    %v2271 = vmul.f32 %v2139, %v2269
    %v2272 = vmul.f32 %v2140, %v2269
    %v2273 = vmul.f32 %v2141, %v2269
    %v2274 = vmul.f32 %v2142, %v2269
    %v2275 = vmul.f32 %v2143, %v2269
    %v2276 = vmul.f32 %v2144, %v2269
    %v2277 = vmul.f32 %v2145, %v2269
    %v2278 = vmul.f32 %v2146, %v2269
    %v2279 = vmul.f32 %v2147, %v2269
    %v2280 = vmul.f32 %v2148, %v2269
    %v2281 = vmul.f32 %v2149, %v2269
    %v2282 = vmul.f32 %v2150, %v2269
    %v2283 = vmul.f32 %v2151, %v2269
    %v2284 = vmul.f32 %v2152, %v2269
    %v2285 = vmul.f32 %v2153, %v2269
    %v2286 = vmul.f32 %v2154, %v2269
    %v2287 = vmul.f32 %v2155, %v2269
    %v2288 = vmul.f32 %v2156, %v2269
    %v2289 = vmul.f32 %v2157, %v2269
    %v2290 = vmul.f32 %v2158, %v2269
    %v2291 = vmul.f32 %v2159, %v2269
    %v2292 = vmul.f32 %v2160, %v2269
    %v2293 = vmul.f32 %v2161, %v2269
    %v2294 = vmul.f32 %v2162, %v2269
    %v2295 = vmul.f32 %v2163, %v2269
    %v2296 = vmul.f32 %v2164, %v2269
    %v2297 = vmul.f32 %v2165, %v2269
    %v2298 = vmul.f32 %v2166, %v2269
    %v2299 = vmul.f32 %v2167, %v2269
    %v2300 = vmul.f32 %v2168, %v2269
    %v2301 = vmul.f32 %v2169, %v2269
    %v2302 = vmul.f32 %v2170, %v2269
    %v2303 = vmul.f32 %v2171, %v2269
    %v2304 = vmul.f32 %v2172, %v2269
    %v2305 = vmul.f32 %v2173, %v2269
    %v2306 = vmul.f32 %v2174, %v2269
    %v2307 = vmul.f32 %v2175, %v2269
    %v2308 = vmul.f32 %v2176, %v2269
    %v2309 = vmul.f32 %v2177, %v2269
    %v2310 = vmul.f32 %v2178, %v2269
    %v2311 = vmul.f32 %v2179, %v2269
    %v2312 = vmul.f32 %v2180, %v2269
    %v2313 = vmul.f32 %v2181, %v2269
    %v2314 = vmul.f32 %v2182, %v2269
    %v2315 = vmul.f32 %v2183, %v2269
    %v2316 = vmul.f32 %v2184, %v2269
    %v2317 = vmul.f32 %v2185, %v2269
    %v2318 = vmul.f32 %v2186, %v2269
    %v2319 = vmul.f32 %v2187, %v2269
    %v2320 = vmul.f32 %v2188, %v2269
    %v2321 = vmul.f32 %v2189, %v2269
    %v2322 = vmul.f32 %v2190, %v2269
    %v2323 = vmul.f32 %v2191, %v2269
    %v2324 = vmul.f32 %v2192, %v2269
    %v2325 = vmul.f32 %v2193, %v2269
    %v2326 = vmul.f32 %v2194, %v2269
    %v2327 = vmul.f32 %v2195, %v2269
    %v2328 = vmul.f32 %v2196, %v2269
    %v2329 = vmul.f32 %v2197, %v2269
    %v2330 = vmul.f32 %v2198, %v2269
    %v2331 = vmul.f32 %v2199, %v2269
    %v2332 = vmul.f32 %v2200, %v2269
    %v2333 = vmul.f32 %v2201, %v2269
    %v2334 = vmul.f32 %v2202, %v2269
    %v2335 = vmul.f32 %v2203, %v2269
    %v2336 = vmul.f32 %v2204, %v2269
    %v2337 = vmul.f32 %v2205, %v2269
    %v2338 = vmul.f32 %v2206, %v2269
    %v2339 = vmul.f32 %v2207, %v2269
    %v2340 = vmul.f32 %v2208, %v2269
    %v2341 = vmul.f32 %v2209, %v2269
    %v2342 = vmul.f32 %v2210, %v2269
    %v2343 = vmul.f32 %v2211, %v2269
    %v2344 = vmul.f32 %v2212, %v2269
    %v2345 = vmul.f32 %v2213, %v2269
    %v2346 = vmul.f32 %v2214, %v2269
    %v2347 = vmul.f32 %v2215, %v2269
    %v2348 = vmul.f32 %v2216, %v2269
    %v2349 = vmul.f32 %v2217, %v2269
    %v2350 = vmul.f32 %v2218, %v2269
    %v2351 = vmul.f32 %v2219, %v2269
    %v2352 = vmul.f32 %v2220, %v2269
    %v2353 = vmul.f32 %v2221, %v2269
    %v2354 = vmul.f32 %v2222, %v2269
    %v2355 = vmul.f32 %v2223, %v2269
    %v2356 = vmul.f32 %v2224, %v2269
    %v2357 = vmul.f32 %v2225, %v2269
    %v2358 = vmul.f32 %v2226, %v2269
    %v2359 = vmul.f32 %v2227, %v2269
    %v2360 = vmul.f32 %v2228, %v2269
    %v2361 = vmul.f32 %v2229, %v2269
    %v2362 = vmul.f32 %v2230, %v2269
    %v2363 = vmul.f32 %v2231, %v2269
    %v2364 = vmul.f32 %v2232, %v2269
    %v2365 = vmul.f32 %v2233, %v2269
    %v2366 = vmul.f32 %v2234, %v2269
    %v2367 = vmul.f32 %v2235, %v2269
    %v2368 = vmul.f32 %v2236, %v2269
    %v2369 = vmul.f32 %v2237, %v2269
    %v2370 = vmul.f32 %v2238, %v2269
    %v2371 = vmul.f32 %v2239, %v2269
    %v2372 = vmul.f32 %v2240, %v2269
    %v2373 = vmul.f32 %v2241, %v2269
    %v2374 = vmul.f32 %v2242, %v2269
    %v2375 = vmul.f32 %v2243, %v2269
    %v2376 = vmul.f32 %v2244, %v2269
    %v2377 = vmul.f32 %v2245, %v2269
    %v2378 = vmul.f32 %v2246, %v2269
    %v2379 = vmul.f32 %v2247, %v2269
    %v2380 = vmul.f32 %v2248, %v2269
    %v2381 = vmul.f32 %v2249, %v2269
    %v2382 = vmul.f32 %v2250, %v2269
    %v2383 = vmul.f32 %v2251, %v2269
    %v2384 = vmul.f32 %v2252, %v2269
    %v2385 = vmul.f32 %v2253, %v2269
    %v2386 = vmul.f32 %v2254, %v2269
    %v2387 = vmul.f32 %v2255, %v2269
    %v2388 = vmul.f32 %v2256, %v2269
    %v2389 = vmul.f32 %v2257, %v2269
    %v2390 = vmul.f32 %v2258, %v2269
    %v2391 = vmul.f32 %v2259, %v2269
    %v2392 = vmul.f32 %v2260, %v2269
    %v2393 = vmul.f32 %v2261, %v2269
    %v2394 = vmul.f32 %v2262, %v2269
    %v2395 = vmul.f32 %v2263, %v2269
    %v2396 = vmul.f32 %v2264, %v2269
    %v2397 = vmul.f32 %v2265, %v2269
    %v2398 = vmul.f32 %v2266, %v2269
    %2399 = vadd.xlane.f32.xlu0 %v2271
    %v2400 = vpop.xlane.xlu0 %2399
    %2401 = vadd.xlane.f32.xlu0 %v2272
    %v2402 = vpop.xlane.xlu0 %2401
    %2403 = vadd.xlane.f32.xlu0 %v2273
    %v2404 = vpop.xlane.xlu0 %2403
    %2405 = vadd.xlane.f32.xlu0 %v2274
    %v2406 = vpop.xlane.xlu0 %2405
    %2407 = vadd.xlane.f32.xlu0 %v2275
    %v2408 = vpop.xlane.xlu0 %2407
    %2409 = vadd.xlane.f32.xlu0 %v2276
    %v2410 = vpop.xlane.xlu0 %2409
    %2411 = vadd.xlane.f32.xlu0 %v2277
    %v2412 = vpop.xlane.xlu0 %2411
    %2413 = vadd.xlane.f32.xlu0 %v2278
    %v2414 = vpop.xlane.xlu0 %2413
    %2415 = vadd.xlane.f32.xlu0 %v2279
    %v2416 = vpop.xlane.xlu0 %2415
    %2417 = vadd.xlane.f32.xlu0 %v2280
    %v2418 = vpop.xlane.xlu0 %2417
    %2419 = vadd.xlane.f32.xlu0 %v2281
    %v2420 = vpop.xlane.xlu0 %2419
    %2421 = vadd.xlane.f32.xlu0 %v2282
    %v2422 = vpop.xlane.xlu0 %2421
    %2423 = vadd.xlane.f32.xlu0 %v2283
    %v2424 = vpop.xlane.xlu0 %2423
    %2425 = vadd.xlane.f32.xlu0 %v2284
    %v2426 = vpop.xlane.xlu0 %2425
    %2427 = vadd.xlane.f32.xlu0 %v2285
    %v2428 = vpop.xlane.xlu0 %2427
    %2429 = vadd.xlane.f32.xlu0 %v2286
    %v2430 = vpop.xlane.xlu0 %2429
    %2431 = vadd.xlane.f32.xlu0 %v2287
    %v2432 = vpop.xlane.xlu0 %2431
    %2433 = vadd.xlane.f32.xlu0 %v2288
    %v2434 = vpop.xlane.xlu0 %2433
    %2435 = vadd.xlane.f32.xlu0 %v2289
    %v2436 = vpop.xlane.xlu0 %2435
    %2437 = vadd.xlane.f32.xlu0 %v2290
    %v2438 = vpop.xlane.xlu0 %2437
    %2439 = vadd.xlane.f32.xlu0 %v2291
    %v2440 = vpop.xlane.xlu0 %2439
    %2441 = vadd.xlane.f32.xlu0 %v2292
    %v2442 = vpop.xlane.xlu0 %2441
    %2443 = vadd.xlane.f32.xlu0 %v2293
    %v2444 = vpop.xlane.xlu0 %2443
    %2445 = vadd.xlane.f32.xlu0 %v2294
    %v2446 = vpop.xlane.xlu0 %2445
    %2447 = vadd.xlane.f32.xlu0 %v2295
    %v2448 = vpop.xlane.xlu0 %2447
    %2449 = vadd.xlane.f32.xlu0 %v2296
    %v2450 = vpop.xlane.xlu0 %2449
    %2451 = vadd.xlane.f32.xlu0 %v2297
    %v2452 = vpop.xlane.xlu0 %2451
    %2453 = vadd.xlane.f32.xlu0 %v2298
    %v2454 = vpop.xlane.xlu0 %2453
    %2455 = vadd.xlane.f32.xlu0 %v2299
    %v2456 = vpop.xlane.xlu0 %2455
    %2457 = vadd.xlane.f32.xlu0 %v2300
    %v2458 = vpop.xlane.xlu0 %2457
    %2459 = vadd.xlane.f32.xlu0 %v2301
    %v2460 = vpop.xlane.xlu0 %2459
    %2461 = vadd.xlane.f32.xlu0 %v2302
    %v2462 = vpop.xlane.xlu0 %2461
    %2463 = vadd.xlane.f32.xlu0 %v2303
    %v2464 = vpop.xlane.xlu0 %2463
    %2465 = vadd.xlane.f32.xlu0 %v2304
    %v2466 = vpop.xlane.xlu0 %2465
    %2467 = vadd.xlane.f32.xlu0 %v2305
    %v2468 = vpop.xlane.xlu0 %2467
    %2469 = vadd.xlane.f32.xlu0 %v2306
    %v2470 = vpop.xlane.xlu0 %2469
    %2471 = vadd.xlane.f32.xlu0 %v2307
    %v2472 = vpop.xlane.xlu0 %2471
    %2473 = vadd.xlane.f32.xlu0 %v2308
    %v2474 = vpop.xlane.xlu0 %2473
    %2475 = vadd.xlane.f32.xlu0 %v2309
    %v2476 = vpop.xlane.xlu0 %2475
    %2477 = vadd.xlane.f32.xlu0 %v2310
    %v2478 = vpop.xlane.xlu0 %2477
    %2479 = vadd.xlane.f32.xlu0 %v2311
    %v2480 = vpop.xlane.xlu0 %2479
    %2481 = vadd.xlane.f32.xlu0 %v2312
    %v2482 = vpop.xlane.xlu0 %2481
    %2483 = vadd.xlane.f32.xlu0 %v2313
    %v2484 = vpop.xlane.xlu0 %2483
    %2485 = vadd.xlane.f32.xlu0 %v2314
    %v2486 = vpop.xlane.xlu0 %2485
    %2487 = vadd.xlane.f32.xlu0 %v2315
    %v2488 = vpop.xlane.xlu0 %2487
    %2489 = vadd.xlane.f32.xlu0 %v2316
    %v2490 = vpop.xlane.xlu0 %2489
    %2491 = vadd.xlane.f32.xlu0 %v2317
    %v2492 = vpop.xlane.xlu0 %2491
    %2493 = vadd.xlane.f32.xlu0 %v2318
    %v2494 = vpop.xlane.xlu0 %2493
    %2495 = vadd.xlane.f32.xlu0 %v2319
    %v2496 = vpop.xlane.xlu0 %2495
    %2497 = vadd.xlane.f32.xlu0 %v2320
    %v2498 = vpop.xlane.xlu0 %2497
    %2499 = vadd.xlane.f32.xlu0 %v2321
    %v2500 = vpop.xlane.xlu0 %2499
    %2501 = vadd.xlane.f32.xlu0 %v2322
    %v2502 = vpop.xlane.xlu0 %2501
    %2503 = vadd.xlane.f32.xlu0 %v2323
    %v2504 = vpop.xlane.xlu0 %2503
    %2505 = vadd.xlane.f32.xlu0 %v2324
    %v2506 = vpop.xlane.xlu0 %2505
    %2507 = vadd.xlane.f32.xlu0 %v2325
    %v2508 = vpop.xlane.xlu0 %2507
    %2509 = vadd.xlane.f32.xlu0 %v2326
    %v2510 = vpop.xlane.xlu0 %2509
    %2511 = vadd.xlane.f32.xlu0 %v2327
    %v2512 = vpop.xlane.xlu0 %2511
    %2513 = vadd.xlane.f32.xlu0 %v2328
    %v2514 = vpop.xlane.xlu0 %2513
    %2515 = vadd.xlane.f32.xlu0 %v2329
    %v2516 = vpop.xlane.xlu0 %2515
    %2517 = vadd.xlane.f32.xlu0 %v2330
    %v2518 = vpop.xlane.xlu0 %2517
    %2519 = vadd.xlane.f32.xlu0 %v2331
    %v2520 = vpop.xlane.xlu0 %2519
    %2521 = vadd.xlane.f32.xlu0 %v2332
    %v2522 = vpop.xlane.xlu0 %2521
    %2523 = vadd.xlane.f32.xlu0 %v2333
    %v2524 = vpop.xlane.xlu0 %2523
    %2525 = vadd.xlane.f32.xlu0 %v2334
    %v2526 = vpop.xlane.xlu0 %2525
    %2527 = vadd.xlane.f32.xlu0 %v2335
    %v2528 = vpop.xlane.xlu0 %2527
    %2529 = vadd.xlane.f32.xlu0 %v2336
    %v2530 = vpop.xlane.xlu0 %2529
    %2531 = vadd.xlane.f32.xlu0 %v2337
    %v2532 = vpop.xlane.xlu0 %2531
    %2533 = vadd.xlane.f32.xlu0 %v2338
    %v2534 = vpop.xlane.xlu0 %2533
    %2535 = vadd.xlane.f32.xlu0 %v2339
    %v2536 = vpop.xlane.xlu0 %2535
    %2537 = vadd.xlane.f32.xlu0 %v2340
    %v2538 = vpop.xlane.xlu0 %2537
    %2539 = vadd.xlane.f32.xlu0 %v2341
    %v2540 = vpop.xlane.xlu0 %2539
    %2541 = vadd.xlane.f32.xlu0 %v2342
    %v2542 = vpop.xlane.xlu0 %2541
    %2543 = vadd.xlane.f32.xlu0 %v2343
    %v2544 = vpop.xlane.xlu0 %2543
    %2545 = vadd.xlane.f32.xlu0 %v2344
    %v2546 = vpop.xlane.xlu0 %2545
    %2547 = vadd.xlane.f32.xlu0 %v2345
    %v2548 = vpop.xlane.xlu0 %2547
    %2549 = vadd.xlane.f32.xlu0 %v2346
    %v2550 = vpop.xlane.xlu0 %2549
    %2551 = vadd.xlane.f32.xlu0 %v2347
    %v2552 = vpop.xlane.xlu0 %2551
    %2553 = vadd.xlane.f32.xlu0 %v2348
    %v2554 = vpop.xlane.xlu0 %2553
    %2555 = vadd.xlane.f32.xlu0 %v2349
    %v2556 = vpop.xlane.xlu0 %2555
    %2557 = vadd.xlane.f32.xlu0 %v2350
    %v2558 = vpop.xlane.xlu0 %2557
    %2559 = vadd.xlane.f32.xlu0 %v2351
    %v2560 = vpop.xlane.xlu0 %2559
    %2561 = vadd.xlane.f32.xlu0 %v2352
    %v2562 = vpop.xlane.xlu0 %2561
    %2563 = vadd.xlane.f32.xlu0 %v2353
    %v2564 = vpop.xlane.xlu0 %2563
    %2565 = vadd.xlane.f32.xlu0 %v2354
    %v2566 = vpop.xlane.xlu0 %2565
    %2567 = vadd.xlane.f32.xlu0 %v2355
    %v2568 = vpop.xlane.xlu0 %2567
    %2569 = vadd.xlane.f32.xlu0 %v2356
    %v2570 = vpop.xlane.xlu0 %2569
    %2571 = vadd.xlane.f32.xlu0 %v2357
    %v2572 = vpop.xlane.xlu0 %2571
    %2573 = vadd.xlane.f32.xlu0 %v2358
    %v2574 = vpop.xlane.xlu0 %2573
    %2575 = vadd.xlane.f32.xlu0 %v2359
    %v2576 = vpop.xlane.xlu0 %2575
    %2577 = vadd.xlane.f32.xlu0 %v2360
    %v2578 = vpop.xlane.xlu0 %2577
    %2579 = vadd.xlane.f32.xlu0 %v2361
    %v2580 = vpop.xlane.xlu0 %2579
    %2581 = vadd.xlane.f32.xlu0 %v2362
    %v2582 = vpop.xlane.xlu0 %2581
    %2583 = vadd.xlane.f32.xlu0 %v2363
    %v2584 = vpop.xlane.xlu0 %2583
    %2585 = vadd.xlane.f32.xlu0 %v2364
    %v2586 = vpop.xlane.xlu0 %2585
    %2587 = vadd.xlane.f32.xlu0 %v2365
    %v2588 = vpop.xlane.xlu0 %2587
    %2589 = vadd.xlane.f32.xlu0 %v2366
    %v2590 = vpop.xlane.xlu0 %2589
    %2591 = vadd.xlane.f32.xlu0 %v2367
    %v2592 = vpop.xlane.xlu0 %2591
    %2593 = vadd.xlane.f32.xlu0 %v2368
    %v2594 = vpop.xlane.xlu0 %2593
    %2595 = vadd.xlane.f32.xlu0 %v2369
    %v2596 = vpop.xlane.xlu0 %2595
    %2597 = vadd.xlane.f32.xlu0 %v2370
    %v2598 = vpop.xlane.xlu0 %2597
    %2599 = vadd.xlane.f32.xlu0 %v2371
    %v2600 = vpop.xlane.xlu0 %2599
    %2601 = vadd.xlane.f32.xlu0 %v2372
    %v2602 = vpop.xlane.xlu0 %2601
    %2603 = vadd.xlane.f32.xlu0 %v2373
    %v2604 = vpop.xlane.xlu0 %2603
    %2605 = vadd.xlane.f32.xlu0 %v2374
    %v2606 = vpop.xlane.xlu0 %2605
    %2607 = vadd.xlane.f32.xlu0 %v2375
    %v2608 = vpop.xlane.xlu0 %2607
    %2609 = vadd.xlane.f32.xlu0 %v2376
    %v2610 = vpop.xlane.xlu0 %2609
    %2611 = vadd.xlane.f32.xlu0 %v2377
    %v2612 = vpop.xlane.xlu0 %2611
    %2613 = vadd.xlane.f32.xlu0 %v2378
    %v2614 = vpop.xlane.xlu0 %2613
    %2615 = vadd.xlane.f32.xlu0 %v2379
    %v2616 = vpop.xlane.xlu0 %2615
    %2617 = vadd.xlane.f32.xlu0 %v2380
    %v2618 = vpop.xlane.xlu0 %2617
    %2619 = vadd.xlane.f32.xlu0 %v2381
    %v2620 = vpop.xlane.xlu0 %2619
    %2621 = vadd.xlane.f32.xlu0 %v2382
    %v2622 = vpop.xlane.xlu0 %2621
    %2623 = vadd.xlane.f32.xlu0 %v2383
    %v2624 = vpop.xlane.xlu0 %2623
    %2625 = vadd.xlane.f32.xlu0 %v2384
    %v2626 = vpop.xlane.xlu0 %2625
    %2627 = vadd.xlane.f32.xlu0 %v2385
    %v2628 = vpop.xlane.xlu0 %2627
    %2629 = vadd.xlane.f32.xlu0 %v2386
    %v2630 = vpop.xlane.xlu0 %2629
    %2631 = vadd.xlane.f32.xlu0 %v2387
    %v2632 = vpop.xlane.xlu0 %2631
    %2633 = vadd.xlane.f32.xlu0 %v2388
    %v2634 = vpop.xlane.xlu0 %2633
    %2635 = vadd.xlane.f32.xlu0 %v2389
    %v2636 = vpop.xlane.xlu0 %2635
    %2637 = vadd.xlane.f32.xlu0 %v2390
    %v2638 = vpop.xlane.xlu0 %2637
    %2639 = vadd.xlane.f32.xlu0 %v2391
    %v2640 = vpop.xlane.xlu0 %2639
    %2641 = vadd.xlane.f32.xlu0 %v2392
    %v2642 = vpop.xlane.xlu0 %2641
    %2643 = vadd.xlane.f32.xlu0 %v2393
    %v2644 = vpop.xlane.xlu0 %2643
    %2645 = vadd.xlane.f32.xlu0 %v2394
    %v2646 = vpop.xlane.xlu0 %2645
    %2647 = vadd.xlane.f32.xlu0 %v2395
    %v2648 = vpop.xlane.xlu0 %2647
    %2649 = vadd.xlane.f32.xlu0 %v2396
    %v2650 = vpop.xlane.xlu0 %2649
    %2651 = vadd.xlane.f32.xlu0 %v2397
    %v2652 = vpop.xlane.xlu0 %2651
    %2653 = vadd.xlane.f32.xlu0 %v2398
    %v2654 = vpop.xlane.xlu0 %2653
    %s2655 = smul.u32 0, 128
    %v2656 = vlaneseq
    %v2657 = vand.u32 %v2656, 127
    %v2658 = vstv %s2655
    %v2659 = vadd.s32 %v2658, %v2657
    %vm2660 = vcmp.lt.s32.totalorder %v2659, 8
    %v2789 = vperm.slane %v2400, %v2657
    %v2790 = vadd.s32 %v2657, 4294967288
    %v2791 = vperm.slane %v2402, %v2790
    %vm2792 = vcmask 130112
    %v2793 = vsel %vm2792, %v2791, %v2789
    %v2794 = vadd.s32 %v2657, 4294967280
    %v2795 = vperm.slane %v2404, %v2794
    %vm2796 = vcmask 195712
    %v2797 = vsel %vm2796, %v2795, %v2793
    %v2798 = vadd.s32 %v2657, 4294967272
    %v2799 = vperm.slane %v2406, %v2798
    %vm2800 = vcmask 261312
    %v2801 = vsel %vm2800, %v2799, %v2797
    %v2802 = vadd.s32 %v2657, 4294967264
    %v2803 = vperm.slane %v2408, %v2802
    %vm2804 = vcmask 326912
    %v2805 = vsel %vm2804, %v2803, %v2801
    %v2806 = vadd.s32 %v2657, 4294967256
    %v2807 = vperm.slane %v2410, %v2806
    %vm2808 = vcmask 392512
    %v2809 = vsel %vm2808, %v2807, %v2805
    %v2810 = vadd.s32 %v2657, 4294967248
    %v2811 = vperm.slane %v2412, %v2810
    %vm2812 = vcmask 458112
    %v2813 = vsel %vm2812, %v2811, %v2809
    %v2814 = vadd.s32 %v2657, 4294967240
    %v2815 = vperm.slane %v2414, %v2814
    %vm2816 = vcmask 523712
    %v2817 = vsel %vm2816, %v2815, %v2813
    %v2818 = vadd.s32 %v2657, 4294967232
    %v2819 = vperm.slane %v2416, %v2818
    %vm2820 = vcmask 589312
    %v2821 = vsel %vm2820, %v2819, %v2817
    %v2822 = vadd.s32 %v2657, 4294967224
    %v2823 = vperm.slane %v2418, %v2822
    %vm2824 = vcmask 654912
    %v2825 = vsel %vm2824, %v2823, %v2821
    %v2826 = vadd.s32 %v2657, 4294967216
    %v2827 = vperm.slane %v2420, %v2826
    %vm2828 = vcmask 720512
    %v2829 = vsel %vm2828, %v2827, %v2825
    %v2830 = vadd.s32 %v2657, 4294967208
    %v2831 = vperm.slane %v2422, %v2830
    %vm2832 = vcmask 786112
    %v2833 = vsel %vm2832, %v2831, %v2829
    %v2834 = vadd.s32 %v2657, 4294967200
    %v2835 = vperm.slane %v2424, %v2834
    %vm2836 = vcmask 851712
    %v2837 = vsel %vm2836, %v2835, %v2833
    %v2838 = vadd.s32 %v2657, 4294967192
    %v2839 = vperm.slane %v2426, %v2838
    %vm2840 = vcmask 917312
    %v2841 = vsel %vm2840, %v2839, %v2837
    %v2842 = vadd.s32 %v2657, 4294967184
    %v2843 = vperm.slane %v2428, %v2842
    %vm2844 = vcmask 982912
    %v2845 = vsel %vm2844, %v2843, %v2841
    %v2846 = vadd.s32 %v2657, 4294967176
    %v2847 = vperm.slane %v2430, %v2846
    %vm2848 = vcmask 1048512
    %v2849 = vsel %vm2848, %v2847, %v2845
    %v2850 = vperm.slane %v2432, %v2657
    %v2851 = vperm.slane %v2434, %v2790
    %v2852 = vsel %vm2792, %v2851, %v2850
    %v2853 = vperm.slane %v2436, %v2794
    %v2854 = vsel %vm2796, %v2853, %v2852
    %v2855 = vperm.slane %v2438, %v2798
    %v2856 = vsel %vm2800, %v2855, %v2854
    %v2857 = vperm.slane %v2440, %v2802
    %v2858 = vsel %vm2804, %v2857, %v2856
    %v2859 = vperm.slane %v2442, %v2806
    %v2860 = vsel %vm2808, %v2859, %v2858
    %v2861 = vperm.slane %v2444, %v2810
    %v2862 = vsel %vm2812, %v2861, %v2860
    %v2863 = vperm.slane %v2446, %v2814
    %v2864 = vsel %vm2816, %v2863, %v2862
    %v2865 = vperm.slane %v2448, %v2818
    %v2866 = vsel %vm2820, %v2865, %v2864
    %v2867 = vperm.slane %v2450, %v2822
    %v2868 = vsel %vm2824, %v2867, %v2866
    %v2869 = vperm.slane %v2452, %v2826
    %v2870 = vsel %vm2828, %v2869, %v2868
    %v2871 = vperm.slane %v2454, %v2830
    %v2872 = vsel %vm2832, %v2871, %v2870
    %v2873 = vperm.slane %v2456, %v2834
    %v2874 = vsel %vm2836, %v2873, %v2872
    %v2875 = vperm.slane %v2458, %v2838
    %v2876 = vsel %vm2840, %v2875, %v2874
    %v2877 = vperm.slane %v2460, %v2842
    %v2878 = vsel %vm2844, %v2877, %v2876
    %v2879 = vperm.slane %v2462, %v2846
    %v2880 = vsel %vm2848, %v2879, %v2878
    %v2881 = vperm.slane %v2464, %v2657
    %v2882 = vperm.slane %v2466, %v2790
    %v2883 = vsel %vm2792, %v2882, %v2881
    %v2884 = vperm.slane %v2468, %v2794
    %v2885 = vsel %vm2796, %v2884, %v2883
    %v2886 = vperm.slane %v2470, %v2798
    %v2887 = vsel %vm2800, %v2886, %v2885
    %v2888 = vperm.slane %v2472, %v2802
    %v2889 = vsel %vm2804, %v2888, %v2887
    %v2890 = vperm.slane %v2474, %v2806
    %v2891 = vsel %vm2808, %v2890, %v2889
    %v2892 = vperm.slane %v2476, %v2810
    %v2893 = vsel %vm2812, %v2892, %v2891
    %v2894 = vperm.slane %v2478, %v2814
    %v2895 = vsel %vm2816, %v2894, %v2893
    %v2896 = vperm.slane %v2480, %v2818
    %v2897 = vsel %vm2820, %v2896, %v2895
    %v2898 = vperm.slane %v2482, %v2822
    %v2899 = vsel %vm2824, %v2898, %v2897
    %v2900 = vperm.slane %v2484, %v2826
    %v2901 = vsel %vm2828, %v2900, %v2899
    %v2902 = vperm.slane %v2486, %v2830
    %v2903 = vsel %vm2832, %v2902, %v2901
    %v2904 = vperm.slane %v2488, %v2834
    %v2905 = vsel %vm2836, %v2904, %v2903
    %v2906 = vperm.slane %v2490, %v2838
    %v2907 = vsel %vm2840, %v2906, %v2905
    %v2908 = vperm.slane %v2492, %v2842
    %v2909 = vsel %vm2844, %v2908, %v2907
    %v2910 = vperm.slane %v2494, %v2846
    %v2911 = vsel %vm2848, %v2910, %v2909
    %v2912 = vperm.slane %v2496, %v2657
    %v2913 = vperm.slane %v2498, %v2790
    %v2914 = vsel %vm2792, %v2913, %v2912
    %v2915 = vperm.slane %v2500, %v2794
    %v2916 = vsel %vm2796, %v2915, %v2914
    %v2917 = vperm.slane %v2502, %v2798
    %v2918 = vsel %vm2800, %v2917, %v2916
    %v2919 = vperm.slane %v2504, %v2802
    %v2920 = vsel %vm2804, %v2919, %v2918
    %v2921 = vperm.slane %v2506, %v2806
    %v2922 = vsel %vm2808, %v2921, %v2920
    %v2923 = vperm.slane %v2508, %v2810
    %v2924 = vsel %vm2812, %v2923, %v2922
    %v2925 = vperm.slane %v2510, %v2814
    %v2926 = vsel %vm2816, %v2925, %v2924
    %v2927 = vperm.slane %v2512, %v2818
    %v2928 = vsel %vm2820, %v2927, %v2926
    %v2929 = vperm.slane %v2514, %v2822
    %v2930 = vsel %vm2824, %v2929, %v2928
    %v2931 = vperm.slane %v2516, %v2826
    %v2932 = vsel %vm2828, %v2931, %v2930
    %v2933 = vperm.slane %v2518, %v2830
    %v2934 = vsel %vm2832, %v2933, %v2932
    %v2935 = vperm.slane %v2520, %v2834
    %v2936 = vsel %vm2836, %v2935, %v2934
    %v2937 = vperm.slane %v2522, %v2838
    %v2938 = vsel %vm2840, %v2937, %v2936
    %v2939 = vperm.slane %v2524, %v2842
    %v2940 = vsel %vm2844, %v2939, %v2938
    %v2941 = vperm.slane %v2526, %v2846
    %v2942 = vsel %vm2848, %v2941, %v2940
    %v2943 = vperm.slane %v2528, %v2657
    %v2944 = vperm.slane %v2530, %v2790
    %v2945 = vsel %vm2792, %v2944, %v2943
    %v2946 = vperm.slane %v2532, %v2794
    %v2947 = vsel %vm2796, %v2946, %v2945
    %v2948 = vperm.slane %v2534, %v2798
    %v2949 = vsel %vm2800, %v2948, %v2947
    %v2950 = vperm.slane %v2536, %v2802
    %v2951 = vsel %vm2804, %v2950, %v2949
    %v2952 = vperm.slane %v2538, %v2806
    %v2953 = vsel %vm2808, %v2952, %v2951
    %v2954 = vperm.slane %v2540, %v2810
    %v2955 = vsel %vm2812, %v2954, %v2953
    %v2956 = vperm.slane %v2542, %v2814
    %v2957 = vsel %vm2816, %v2956, %v2955
    %v2958 = vperm.slane %v2544, %v2818
    %v2959 = vsel %vm2820, %v2958, %v2957
    %v2960 = vperm.slane %v2546, %v2822
    %v2961 = vsel %vm2824, %v2960, %v2959
    %v2962 = vperm.slane %v2548, %v2826
    %v2963 = vsel %vm2828, %v2962, %v2961
    %v2964 = vperm.slane %v2550, %v2830
    %v2965 = vsel %vm2832, %v2964, %v2963
    %v2966 = vperm.slane %v2552, %v2834
    %v2967 = vsel %vm2836, %v2966, %v2965
    %v2968 = vperm.slane %v2554, %v2838
    %v2969 = vsel %vm2840, %v2968, %v2967
    %v2970 = vperm.slane %v2556, %v2842
    %v2971 = vsel %vm2844, %v2970, %v2969
    %v2972 = vperm.slane %v2558, %v2846
    %v2973 = vsel %vm2848, %v2972, %v2971
    %v2974 = vperm.slane %v2560, %v2657
    %v2975 = vperm.slane %v2562, %v2790
    %v2976 = vsel %vm2792, %v2975, %v2974
    %v2977 = vperm.slane %v2564, %v2794
    %v2978 = vsel %vm2796, %v2977, %v2976
    %v2979 = vperm.slane %v2566, %v2798
    %v2980 = vsel %vm2800, %v2979, %v2978
    %v2981 = vperm.slane %v2568, %v2802
    %v2982 = vsel %vm2804, %v2981, %v2980
    %v2983 = vperm.slane %v2570, %v2806
    %v2984 = vsel %vm2808, %v2983, %v2982
    %v2985 = vperm.slane %v2572, %v2810
    %v2986 = vsel %vm2812, %v2985, %v2984
    %v2987 = vperm.slane %v2574, %v2814
    %v2988 = vsel %vm2816, %v2987, %v2986
    %v2989 = vperm.slane %v2576, %v2818
    %v2990 = vsel %vm2820, %v2989, %v2988
    %v2991 = vperm.slane %v2578, %v2822
    %v2992 = vsel %vm2824, %v2991, %v2990
    %v2993 = vperm.slane %v2580, %v2826
    %v2994 = vsel %vm2828, %v2993, %v2992
    %v2995 = vperm.slane %v2582, %v2830
    %v2996 = vsel %vm2832, %v2995, %v2994
    %v2997 = vperm.slane %v2584, %v2834
    %v2998 = vsel %vm2836, %v2997, %v2996
    %v2999 = vperm.slane %v2586, %v2838
    %v3000 = vsel %vm2840, %v2999, %v2998
    %v3001 = vperm.slane %v2588, %v2842
    %v3002 = vsel %vm2844, %v3001, %v3000
    %v3003 = vperm.slane %v2590, %v2846
    %v3004 = vsel %vm2848, %v3003, %v3002
    %v3005 = vperm.slane %v2592, %v2657
    %v3006 = vperm.slane %v2594, %v2790
    %v3007 = vsel %vm2792, %v3006, %v3005
    %v3008 = vperm.slane %v2596, %v2794
    %v3009 = vsel %vm2796, %v3008, %v3007
    %v3010 = vperm.slane %v2598, %v2798
    %v3011 = vsel %vm2800, %v3010, %v3009
    %v3012 = vperm.slane %v2600, %v2802
    %v3013 = vsel %vm2804, %v3012, %v3011
    %v3014 = vperm.slane %v2602, %v2806
    %v3015 = vsel %vm2808, %v3014, %v3013
    %v3016 = vperm.slane %v2604, %v2810
    %v3017 = vsel %vm2812, %v3016, %v3015
    %v3018 = vperm.slane %v2606, %v2814
    %v3019 = vsel %vm2816, %v3018, %v3017
    %v3020 = vperm.slane %v2608, %v2818
    %v3021 = vsel %vm2820, %v3020, %v3019
    %v3022 = vperm.slane %v2610, %v2822
    %v3023 = vsel %vm2824, %v3022, %v3021
    %v3024 = vperm.slane %v2612, %v2826
    %v3025 = vsel %vm2828, %v3024, %v3023
    %v3026 = vperm.slane %v2614, %v2830
    %v3027 = vsel %vm2832, %v3026, %v3025
    %v3028 = vperm.slane %v2616, %v2834
    %v3029 = vsel %vm2836, %v3028, %v3027
    %v3030 = vperm.slane %v2618, %v2838
    %v3031 = vsel %vm2840, %v3030, %v3029
    %v3032 = vperm.slane %v2620, %v2842
    %v3033 = vsel %vm2844, %v3032, %v3031
    %v3034 = vperm.slane %v2622, %v2846
    %v3035 = vsel %vm2848, %v3034, %v3033
    %v3036 = vperm.slane %v2624, %v2657
    %v3037 = vperm.slane %v2626, %v2790
    %v3038 = vsel %vm2792, %v3037, %v3036
    %v3039 = vperm.slane %v2628, %v2794
    %v3040 = vsel %vm2796, %v3039, %v3038
    %v3041 = vperm.slane %v2630, %v2798
    %v3042 = vsel %vm2800, %v3041, %v3040
    %v3043 = vperm.slane %v2632, %v2802
    %v3044 = vsel %vm2804, %v3043, %v3042
    %v3045 = vperm.slane %v2634, %v2806
    %v3046 = vsel %vm2808, %v3045, %v3044
    %v3047 = vperm.slane %v2636, %v2810
    %v3048 = vsel %vm2812, %v3047, %v3046
    %v3049 = vperm.slane %v2638, %v2814
    %v3050 = vsel %vm2816, %v3049, %v3048
    %v3051 = vperm.slane %v2640, %v2818
    %v3052 = vsel %vm2820, %v3051, %v3050
    %v3053 = vperm.slane %v2642, %v2822
    %v3054 = vsel %vm2824, %v3053, %v3052
    %v3055 = vperm.slane %v2644, %v2826
    %v3056 = vsel %vm2828, %v3055, %v3054
    %v3057 = vperm.slane %v2646, %v2830
    %v3058 = vsel %vm2832, %v3057, %v3056
    %v3059 = vperm.slane %v2648, %v2834
    %v3060 = vsel %vm2836, %v3059, %v3058
    %v3061 = vperm.slane %v2650, %v2838
    %v3062 = vsel %vm2840, %v3061, %v3060
    %v3063 = vperm.slane %v2652, %v2842
    %v3064 = vsel %vm2844, %v3063, %v3062
    %v3065 = vperm.slane %v2654, %v2846
    %v3066 = vsel %vm2848, %v3065, %v3064
    %vm3067 = vcmask 1041409
    %v3068 = vsel %vm3067, %v2880, %v2849
    %vm3069 = vcmask 1042434
    %v3070 = vsel %vm3069, %v2911, %v3068
    %vm3071 = vcmask 1043459
    %v3072 = vsel %vm3071, %v2942, %v3070
    %vm3073 = vcmask 1044484
    %v3074 = vsel %vm3073, %v2973, %v3072
    %vm3075 = vcmask 1045509
    %v3076 = vsel %vm3075, %v3004, %v3074
    %vm3077 = vcmask 1046534
    %v3078 = vsel %vm3077, %v3035, %v3076
    %vm3079 = vcmask 1047559
    %v3080 = vsel %vm3079, %v3066, %v3078
    %v3082 = vsel %vm2660, %v3080, -1e+30
    %s3083 = sshra.s32 %s2655, 7
    %s3084 = sand.u32 %s2655, 127
    %s3085 = scalar_lea.vmem [#allocation6], %s3083
    %3086 = vst [vmem:[%s3085] sm:$0xff] %v3082
    %v3087 = vld [vmem:[#allocation3] sm:$0xff]
    %3088 = vmax.xlane.f32.xlu0 %v3082
    %v3089 = vpop.xlane.xlu0 %3088
    %v3090 = vmax.f32 %v3087, %v3089
    %v3091 = vsub.f32 %v3087, %v3090
    %v3092 = vmul.f32 %v3091, 1.442695
    %v3093 = vpow.pop %v3092
    %3095 = vset.pattern.permute.xlu0 0
    %3096 = vperm.xlu0 %3095, %v3090
    %v3097 = vpop.permute.xlu0 %3096
    %v3099 = vsub.f32 %v3082, %v3097
    %v3100 = vmul.f32 %v3099, 1.442695
    %v3101 = vpow.pop %v3100
    %v3102 = vld [vmem:[#allocation4] sm:$0xff]
    %v3103 = vmul.f32 %v3093, %v3102
    %3104 = vadd.xlane.f32.xlu0 %v3101
    %v3105 = vpop.xlane.xlu0 %3104
    %v3106 = vadd.f32 %v3103, %v3105
    %vm3107 = vcmask 7168
    %3108 = vst.msk [vmem:[#allocation4] sm:$0xff] %vm3107, %v3106
    %v3109 = vperm.slane %v3101, 0
    %v3110 = vlaneseq
    %v3111 = vshrl.u32 %v3110, 7
    %3113 = vset.pattern.permute.xlu0 %v3111
    %3114 = vperm.xlu0 %3113, %v3109
    %v3115 = vpop.permute.xlu0 %3114
    %v3116 = vlaneseq
    %v3117 = vshrl.u32 %v3116, 7
    %v3118 = vadd.s32 %v3117, 8
    %3119 = vset.pattern.permute.xlu0 %v3118
    %3120 = vperm.xlu0 %3119, %v3109
    %v3121 = vpop.permute.xlu0 %3120
    %v3122 = vlaneseq
    %v3123 = vshrl.u32 %v3122, 7
    %v3124 = vadd.s32 %v3123, 16
    %3125 = vset.pattern.permute.xlu0 %v3124
    %3126 = vperm.xlu0 %3125, %v3109
    %v3127 = vpop.permute.xlu0 %3126
    %v3128 = vlaneseq
    %v3129 = vshrl.u32 %v3128, 7
    %v3130 = vadd.s32 %v3129, 24
    %3131 = vset.pattern.permute.xlu0 %v3130
    %3132 = vperm.xlu0 %3131, %v3109
    %v3133 = vpop.permute.xlu0 %3132
    %v3134 = vlaneseq
    %v3135 = vshrl.u32 %v3134, 7
    %v3136 = vadd.s32 %v3135, 32
    %3137 = vset.pattern.permute.xlu0 %v3136
    %3138 = vperm.xlu0 %3137, %v3109
    %v3139 = vpop.permute.xlu0 %3138
    %v3140 = vlaneseq
    %v3141 = vshrl.u32 %v3140, 7
    %v3142 = vadd.s32 %v3141, 40
    %3143 = vset.pattern.permute.xlu0 %v3142
    %3144 = vperm.xlu0 %3143, %v3109
    %v3145 = vpop.permute.xlu0 %3144
    %v3146 = vlaneseq
    %v3147 = vshrl.u32 %v3146, 7
    %v3148 = vadd.s32 %v3147, 48
    %3149 = vset.pattern.permute.xlu0 %v3148
    %3150 = vperm.xlu0 %3149, %v3109
    %v3151 = vpop.permute.xlu0 %3150
    %v3152 = vlaneseq
    %v3153 = vshrl.u32 %v3152, 7
    %v3154 = vadd.s32 %v3153, 56
    %3155 = vset.pattern.permute.xlu0 %v3154
    %3156 = vperm.xlu0 %3155, %v3109
    %v3157 = vpop.permute.xlu0 %3156
    %v3158 = vlaneseq
    %v3159 = vshrl.u32 %v3158, 7
    %v3160 = vadd.s32 %v3159, 64
    %3161 = vset.pattern.permute.xlu0 %v3160
    %3162 = vperm.xlu0 %3161, %v3109
    %v3163 = vpop.permute.xlu0 %3162
    %v3164 = vlaneseq
    %v3165 = vshrl.u32 %v3164, 7
    %v3166 = vadd.s32 %v3165, 72
    %3167 = vset.pattern.permute.xlu0 %v3166
    %3168 = vperm.xlu0 %3167, %v3109
    %v3169 = vpop.permute.xlu0 %3168
    %v3170 = vlaneseq
    %v3171 = vshrl.u32 %v3170, 7
    %v3172 = vadd.s32 %v3171, 80
    %3173 = vset.pattern.permute.xlu0 %v3172
    %3174 = vperm.xlu0 %3173, %v3109
    %v3175 = vpop.permute.xlu0 %3174
    %v3176 = vlaneseq
    %v3177 = vshrl.u32 %v3176, 7
    %v3178 = vadd.s32 %v3177, 88
    %3179 = vset.pattern.permute.xlu0 %v3178
    %3180 = vperm.xlu0 %3179, %v3109
    %v3181 = vpop.permute.xlu0 %3180
    %v3182 = vlaneseq
    %v3183 = vshrl.u32 %v3182, 7
    %v3184 = vadd.s32 %v3183, 96
    %3185 = vset.pattern.permute.xlu0 %v3184
    %3186 = vperm.xlu0 %3185, %v3109
    %v3187 = vpop.permute.xlu0 %3186
    %v3188 = vlaneseq
    %v3189 = vshrl.u32 %v3188, 7
    %v3190 = vadd.s32 %v3189, 104
    %3191 = vset.pattern.permute.xlu0 %v3190
    %3192 = vperm.xlu0 %3191, %v3109
    %v3193 = vpop.permute.xlu0 %3192
    %v3194 = vlaneseq
    %v3195 = vshrl.u32 %v3194, 7
    %v3196 = vadd.s32 %v3195, 112
    %3197 = vset.pattern.permute.xlu0 %v3196
    %3198 = vperm.xlu0 %3197, %v3109
    %v3199 = vpop.permute.xlu0 %3198
    %v3200 = vlaneseq
    %v3201 = vshrl.u32 %v3200, 7
    %v3202 = vadd.s32 %v3201, 120
    %3203 = vset.pattern.permute.xlu0 %v3202
    %3204 = vperm.xlu0 %3203, %v3109
    %v3205 = vpop.permute.xlu0 %3204
    %v3206 = vperm.slane %v3101, 1
    %v3207 = vlaneseq
    %v3208 = vshrl.u32 %v3207, 7
    %3210 = vset.pattern.permute.xlu0 %v3208
    %3211 = vperm.xlu0 %3210, %v3206
    %v3212 = vpop.permute.xlu0 %3211
    %v3213 = vlaneseq
    %v3214 = vshrl.u32 %v3213, 7
    %v3215 = vadd.s32 %v3214, 8
    %3216 = vset.pattern.permute.xlu0 %v3215
    %3217 = vperm.xlu0 %3216, %v3206
    %v3218 = vpop.permute.xlu0 %3217
    %v3219 = vlaneseq
    %v3220 = vshrl.u32 %v3219, 7
    %v3221 = vadd.s32 %v3220, 16
    %3222 = vset.pattern.permute.xlu0 %v3221
    %3223 = vperm.xlu0 %3222, %v3206
    %v3224 = vpop.permute.xlu0 %3223
    %v3225 = vlaneseq
    %v3226 = vshrl.u32 %v3225, 7
    %v3227 = vadd.s32 %v3226, 24
    %3228 = vset.pattern.permute.xlu0 %v3227
    %3229 = vperm.xlu0 %3228, %v3206
    %v3230 = vpop.permute.xlu0 %3229
    %v3231 = vlaneseq
    %v3232 = vshrl.u32 %v3231, 7
    %v3233 = vadd.s32 %v3232, 32
    %3234 = vset.pattern.permute.xlu0 %v3233
    %3235 = vperm.xlu0 %3234, %v3206
    %v3236 = vpop.permute.xlu0 %3235
    %v3237 = vlaneseq
    %v3238 = vshrl.u32 %v3237, 7
    %v3239 = vadd.s32 %v3238, 40
    %3240 = vset.pattern.permute.xlu0 %v3239
    %3241 = vperm.xlu0 %3240, %v3206
    %v3242 = vpop.permute.xlu0 %3241
    %v3243 = vlaneseq
    %v3244 = vshrl.u32 %v3243, 7
    %v3245 = vadd.s32 %v3244, 48
    %3246 = vset.pattern.permute.xlu0 %v3245
    %3247 = vperm.xlu0 %3246, %v3206
    %v3248 = vpop.permute.xlu0 %3247
    %v3249 = vlaneseq
    %v3250 = vshrl.u32 %v3249, 7
    %v3251 = vadd.s32 %v3250, 56
    %3252 = vset.pattern.permute.xlu0 %v3251
    %3253 = vperm.xlu0 %3252, %v3206
    %v3254 = vpop.permute.xlu0 %3253
    %v3255 = vlaneseq
    %v3256 = vshrl.u32 %v3255, 7
    %v3257 = vadd.s32 %v3256, 64
    %3258 = vset.pattern.permute.xlu0 %v3257
    %3259 = vperm.xlu0 %3258, %v3206
    %v3260 = vpop.permute.xlu0 %3259
    %v3261 = vlaneseq
    %v3262 = vshrl.u32 %v3261, 7
    %v3263 = vadd.s32 %v3262, 72
    %3264 = vset.pattern.permute.xlu0 %v3263
    %3265 = vperm.xlu0 %3264, %v3206
    %v3266 = vpop.permute.xlu0 %3265
    %v3267 = vlaneseq
    %v3268 = vshrl.u32 %v3267, 7
    %v3269 = vadd.s32 %v3268, 80
    %3270 = vset.pattern.permute.xlu0 %v3269
    %3271 = vperm.xlu0 %3270, %v3206
    %v3272 = vpop.permute.xlu0 %3271
    %v3273 = vlaneseq
    %v3274 = vshrl.u32 %v3273, 7
    %v3275 = vadd.s32 %v3274, 88
    %3276 = vset.pattern.permute.xlu0 %v3275
    %3277 = vperm.xlu0 %3276, %v3206
    %v3278 = vpop.permute.xlu0 %3277
    %v3279 = vlaneseq
    %v3280 = vshrl.u32 %v3279, 7
    %v3281 = vadd.s32 %v3280, 96
    %3282 = vset.pattern.permute.xlu0 %v3281
    %3283 = vperm.xlu0 %3282, %v3206
    %v3284 = vpop.permute.xlu0 %3283
    %v3285 = vlaneseq
    %v3286 = vshrl.u32 %v3285, 7
    %v3287 = vadd.s32 %v3286, 104
    %3288 = vset.pattern.permute.xlu0 %v3287
    %3289 = vperm.xlu0 %3288, %v3206
    %v3290 = vpop.permute.xlu0 %3289
    %v3291 = vlaneseq
    %v3292 = vshrl.u32 %v3291, 7
    %v3293 = vadd.s32 %v3292, 112
    %3294 = vset.pattern.permute.xlu0 %v3293
    %3295 = vperm.xlu0 %3294, %v3206
    %v3296 = vpop.permute.xlu0 %3295
    %v3297 = vlaneseq
    %v3298 = vshrl.u32 %v3297, 7
    %v3299 = vadd.s32 %v3298, 120
    %3300 = vset.pattern.permute.xlu0 %v3299
    %3301 = vperm.xlu0 %3300, %v3206
    %v3302 = vpop.permute.xlu0 %3301
    %v3303 = vperm.slane %v3101, 2
    %v3304 = vlaneseq
    %v3305 = vshrl.u32 %v3304, 7
    %3307 = vset.pattern.permute.xlu0 %v3305
    %3308 = vperm.xlu0 %3307, %v3303
    %v3309 = vpop.permute.xlu0 %3308
    %v3310 = vlaneseq
    %v3311 = vshrl.u32 %v3310, 7
    %v3312 = vadd.s32 %v3311, 8
    %3313 = vset.pattern.permute.xlu0 %v3312
    %3314 = vperm.xlu0 %3313, %v3303
    %v3315 = vpop.permute.xlu0 %3314
    %v3316 = vlaneseq
    %v3317 = vshrl.u32 %v3316, 7
    %v3318 = vadd.s32 %v3317, 16
    %3319 = vset.pattern.permute.xlu0 %v3318
    %3320 = vperm.xlu0 %3319, %v3303
    %v3321 = vpop.permute.xlu0 %3320
    %v3322 = vlaneseq
    %v3323 = vshrl.u32 %v3322, 7
    %v3324 = vadd.s32 %v3323, 24
    %3325 = vset.pattern.permute.xlu0 %v3324
    %3326 = vperm.xlu0 %3325, %v3303
    %v3327 = vpop.permute.xlu0 %3326
    %v3328 = vlaneseq
    %v3329 = vshrl.u32 %v3328, 7
    %v3330 = vadd.s32 %v3329, 32
    %3331 = vset.pattern.permute.xlu0 %v3330
    %3332 = vperm.xlu0 %3331, %v3303
    %v3333 = vpop.permute.xlu0 %3332
    %v3334 = vlaneseq
    %v3335 = vshrl.u32 %v3334, 7
    %v3336 = vadd.s32 %v3335, 40
    %3337 = vset.pattern.permute.xlu0 %v3336
    %3338 = vperm.xlu0 %3337, %v3303
    %v3339 = vpop.permute.xlu0 %3338
    %v3340 = vlaneseq
    %v3341 = vshrl.u32 %v3340, 7
    %v3342 = vadd.s32 %v3341, 48
    %3343 = vset.pattern.permute.xlu0 %v3342
    %3344 = vperm.xlu0 %3343, %v3303
    %v3345 = vpop.permute.xlu0 %3344
    %v3346 = vlaneseq
    %v3347 = vshrl.u32 %v3346, 7
    %v3348 = vadd.s32 %v3347, 56
    %3349 = vset.pattern.permute.xlu0 %v3348
    %3350 = vperm.xlu0 %3349, %v3303
    %v3351 = vpop.permute.xlu0 %3350
    %v3352 = vlaneseq
    %v3353 = vshrl.u32 %v3352, 7
    %v3354 = vadd.s32 %v3353, 64
    %3355 = vset.pattern.permute.xlu0 %v3354
    %3356 = vperm.xlu0 %3355, %v3303
    %v3357 = vpop.permute.xlu0 %3356
    %v3358 = vlaneseq
    %v3359 = vshrl.u32 %v3358, 7
    %v3360 = vadd.s32 %v3359, 72
    %3361 = vset.pattern.permute.xlu0 %v3360
    %3362 = vperm.xlu0 %3361, %v3303
    %v3363 = vpop.permute.xlu0 %3362
    %v3364 = vlaneseq
    %v3365 = vshrl.u32 %v3364, 7
    %v3366 = vadd.s32 %v3365, 80
    %3367 = vset.pattern.permute.xlu0 %v3366
    %3368 = vperm.xlu0 %3367, %v3303
    %v3369 = vpop.permute.xlu0 %3368
    %v3370 = vlaneseq
    %v3371 = vshrl.u32 %v3370, 7
    %v3372 = vadd.s32 %v3371, 88
    %3373 = vset.pattern.permute.xlu0 %v3372
    %3374 = vperm.xlu0 %3373, %v3303
    %v3375 = vpop.permute.xlu0 %3374
    %v3376 = vlaneseq
    %v3377 = vshrl.u32 %v3376, 7
    %v3378 = vadd.s32 %v3377, 96
    %3379 = vset.pattern.permute.xlu0 %v3378
    %3380 = vperm.xlu0 %3379, %v3303
    %v3381 = vpop.permute.xlu0 %3380
    %v3382 = vlaneseq
    %v3383 = vshrl.u32 %v3382, 7
    %v3384 = vadd.s32 %v3383, 104
    %3385 = vset.pattern.permute.xlu0 %v3384
    %3386 = vperm.xlu0 %3385, %v3303
    %v3387 = vpop.permute.xlu0 %3386
    %v3388 = vlaneseq
    %v3389 = vshrl.u32 %v3388, 7
    %v3390 = vadd.s32 %v3389, 112
    %3391 = vset.pattern.permute.xlu0 %v3390
    %3392 = vperm.xlu0 %3391, %v3303
    %v3393 = vpop.permute.xlu0 %3392
    %v3394 = vlaneseq
    %v3395 = vshrl.u32 %v3394, 7
    %v3396 = vadd.s32 %v3395, 120
    %3397 = vset.pattern.permute.xlu0 %v3396
    %3398 = vperm.xlu0 %3397, %v3303
    %v3399 = vpop.permute.xlu0 %3398
    %v3400 = vperm.slane %v3101, 3
    %v3401 = vlaneseq
    %v3402 = vshrl.u32 %v3401, 7
    %3404 = vset.pattern.permute.xlu0 %v3402
    %3405 = vperm.xlu0 %3404, %v3400
    %v3406 = vpop.permute.xlu0 %3405
    %v3407 = vlaneseq
    %v3408 = vshrl.u32 %v3407, 7
    %v3409 = vadd.s32 %v3408, 8
    %3410 = vset.pattern.permute.xlu0 %v3409
    %3411 = vperm.xlu0 %3410, %v3400
    %v3412 = vpop.permute.xlu0 %3411
    %v3413 = vlaneseq
    %v3414 = vshrl.u32 %v3413, 7
    %v3415 = vadd.s32 %v3414, 16
    %3416 = vset.pattern.permute.xlu0 %v3415
    %3417 = vperm.xlu0 %3416, %v3400
    %v3418 = vpop.permute.xlu0 %3417
    %v3419 = vlaneseq
    %v3420 = vshrl.u32 %v3419, 7
    %v3421 = vadd.s32 %v3420, 24
    %3422 = vset.pattern.permute.xlu0 %v3421
    %3423 = vperm.xlu0 %3422, %v3400
    %v3424 = vpop.permute.xlu0 %3423
    %v3425 = vlaneseq
    %v3426 = vshrl.u32 %v3425, 7
    %v3427 = vadd.s32 %v3426, 32
    %3428 = vset.pattern.permute.xlu0 %v3427
    %3429 = vperm.xlu0 %3428, %v3400
    %v3430 = vpop.permute.xlu0 %3429
    %v3431 = vlaneseq
    %v3432 = vshrl.u32 %v3431, 7
    %v3433 = vadd.s32 %v3432, 40
    %3434 = vset.pattern.permute.xlu0 %v3433
    %3435 = vperm.xlu0 %3434, %v3400
    %v3436 = vpop.permute.xlu0 %3435
    %v3437 = vlaneseq
    %v3438 = vshrl.u32 %v3437, 7
    %v3439 = vadd.s32 %v3438, 48
    %3440 = vset.pattern.permute.xlu0 %v3439
    %3441 = vperm.xlu0 %3440, %v3400
    %v3442 = vpop.permute.xlu0 %3441
    %v3443 = vlaneseq
    %v3444 = vshrl.u32 %v3443, 7
    %v3445 = vadd.s32 %v3444, 56
    %3446 = vset.pattern.permute.xlu0 %v3445
    %3447 = vperm.xlu0 %3446, %v3400
    %v3448 = vpop.permute.xlu0 %3447
    %v3449 = vlaneseq
    %v3450 = vshrl.u32 %v3449, 7
    %v3451 = vadd.s32 %v3450, 64
    %3452 = vset.pattern.permute.xlu0 %v3451
    %3453 = vperm.xlu0 %3452, %v3400
    %v3454 = vpop.permute.xlu0 %3453
    %v3455 = vlaneseq
    %v3456 = vshrl.u32 %v3455, 7
    %v3457 = vadd.s32 %v3456, 72
    %3458 = vset.pattern.permute.xlu0 %v3457
    %3459 = vperm.xlu0 %3458, %v3400
    %v3460 = vpop.permute.xlu0 %3459
    %v3461 = vlaneseq
    %v3462 = vshrl.u32 %v3461, 7
    %v3463 = vadd.s32 %v3462, 80
    %3464 = vset.pattern.permute.xlu0 %v3463
    %3465 = vperm.xlu0 %3464, %v3400
    %v3466 = vpop.permute.xlu0 %3465
    %v3467 = vlaneseq
    %v3468 = vshrl.u32 %v3467, 7
    %v3469 = vadd.s32 %v3468, 88
    %3470 = vset.pattern.permute.xlu0 %v3469
    %3471 = vperm.xlu0 %3470, %v3400
    %v3472 = vpop.permute.xlu0 %3471
    %v3473 = vlaneseq
    %v3474 = vshrl.u32 %v3473, 7
    %v3475 = vadd.s32 %v3474, 96
    %3476 = vset.pattern.permute.xlu0 %v3475
    %3477 = vperm.xlu0 %3476, %v3400
    %v3478 = vpop.permute.xlu0 %3477
    %v3479 = vlaneseq
    %v3480 = vshrl.u32 %v3479, 7
    %v3481 = vadd.s32 %v3480, 104
    %3482 = vset.pattern.permute.xlu0 %v3481
    %3483 = vperm.xlu0 %3482, %v3400
    %v3484 = vpop.permute.xlu0 %3483
    %v3485 = vlaneseq
    %v3486 = vshrl.u32 %v3485, 7
    %v3487 = vadd.s32 %v3486, 112
    %3488 = vset.pattern.permute.xlu0 %v3487
    %3489 = vperm.xlu0 %3488, %v3400
    %v3490 = vpop.permute.xlu0 %3489
    %v3491 = vlaneseq
    %v3492 = vshrl.u32 %v3491, 7
    %v3493 = vadd.s32 %v3492, 120
    %3494 = vset.pattern.permute.xlu0 %v3493
    %3495 = vperm.xlu0 %3494, %v3400
    %v3496 = vpop.permute.xlu0 %3495
    %v3497 = vperm.slane %v3101, 4
    %v3498 = vlaneseq
    %v3499 = vshrl.u32 %v3498, 7
    %3501 = vset.pattern.permute.xlu0 %v3499
    %3502 = vperm.xlu0 %3501, %v3497
    %v3503 = vpop.permute.xlu0 %3502
    %v3504 = vlaneseq
    %v3505 = vshrl.u32 %v3504, 7
    %v3506 = vadd.s32 %v3505, 8
    %3507 = vset.pattern.permute.xlu0 %v3506
    %3508 = vperm.xlu0 %3507, %v3497
    %v3509 = vpop.permute.xlu0 %3508
    %v3510 = vlaneseq
    %v3511 = vshrl.u32 %v3510, 7
    %v3512 = vadd.s32 %v3511, 16
    %3513 = vset.pattern.permute.xlu0 %v3512
    %3514 = vperm.xlu0 %3513, %v3497
    %v3515 = vpop.permute.xlu0 %3514
    %v3516 = vlaneseq
    %v3517 = vshrl.u32 %v3516, 7
    %v3518 = vadd.s32 %v3517, 24
    %3519 = vset.pattern.permute.xlu0 %v3518
    %3520 = vperm.xlu0 %3519, %v3497
    %v3521 = vpop.permute.xlu0 %3520
    %v3522 = vlaneseq
    %v3523 = vshrl.u32 %v3522, 7
    %v3524 = vadd.s32 %v3523, 32
    %3525 = vset.pattern.permute.xlu0 %v3524
    %3526 = vperm.xlu0 %3525, %v3497
    %v3527 = vpop.permute.xlu0 %3526
    %v3528 = vlaneseq
    %v3529 = vshrl.u32 %v3528, 7
    %v3530 = vadd.s32 %v3529, 40
    %3531 = vset.pattern.permute.xlu0 %v3530
    %3532 = vperm.xlu0 %3531, %v3497
    %v3533 = vpop.permute.xlu0 %3532
    %v3534 = vlaneseq
    %v3535 = vshrl.u32 %v3534, 7
    %v3536 = vadd.s32 %v3535, 48
    %3537 = vset.pattern.permute.xlu0 %v3536
    %3538 = vperm.xlu0 %3537, %v3497
    %v3539 = vpop.permute.xlu0 %3538
    %v3540 = vlaneseq
    %v3541 = vshrl.u32 %v3540, 7
    %v3542 = vadd.s32 %v3541, 56
    %3543 = vset.pattern.permute.xlu0 %v3542
    %3544 = vperm.xlu0 %3543, %v3497
    %v3545 = vpop.permute.xlu0 %3544
    %v3546 = vlaneseq
    %v3547 = vshrl.u32 %v3546, 7
    %v3548 = vadd.s32 %v3547, 64
    %3549 = vset.pattern.permute.xlu0 %v3548
    %3550 = vperm.xlu0 %3549, %v3497
    %v3551 = vpop.permute.xlu0 %3550
    %v3552 = vlaneseq
    %v3553 = vshrl.u32 %v3552, 7
    %v3554 = vadd.s32 %v3553, 72
    %3555 = vset.pattern.permute.xlu0 %v3554
    %3556 = vperm.xlu0 %3555, %v3497
    %v3557 = vpop.permute.xlu0 %3556
    %v3558 = vlaneseq
    %v3559 = vshrl.u32 %v3558, 7
    %v3560 = vadd.s32 %v3559, 80
    %3561 = vset.pattern.permute.xlu0 %v3560
    %3562 = vperm.xlu0 %3561, %v3497
    %v3563 = vpop.permute.xlu0 %3562
    %v3564 = vlaneseq
    %v3565 = vshrl.u32 %v3564, 7
    %v3566 = vadd.s32 %v3565, 88
    %3567 = vset.pattern.permute.xlu0 %v3566
    %3568 = vperm.xlu0 %3567, %v3497
    %v3569 = vpop.permute.xlu0 %3568
    %v3570 = vlaneseq
    %v3571 = vshrl.u32 %v3570, 7
    %v3572 = vadd.s32 %v3571, 96
    %3573 = vset.pattern.permute.xlu0 %v3572
    %3574 = vperm.xlu0 %3573, %v3497
    %v3575 = vpop.permute.xlu0 %3574
    %v3576 = vlaneseq
    %v3577 = vshrl.u32 %v3576, 7
    %v3578 = vadd.s32 %v3577, 104
    %3579 = vset.pattern.permute.xlu0 %v3578
    %3580 = vperm.xlu0 %3579, %v3497
    %v3581 = vpop.permute.xlu0 %3580
    %v3582 = vlaneseq
    %v3583 = vshrl.u32 %v3582, 7
    %v3584 = vadd.s32 %v3583, 112
    %3585 = vset.pattern.permute.xlu0 %v3584
    %3586 = vperm.xlu0 %3585, %v3497
    %v3587 = vpop.permute.xlu0 %3586
    %v3588 = vlaneseq
    %v3589 = vshrl.u32 %v3588, 7
    %v3590 = vadd.s32 %v3589, 120
    %3591 = vset.pattern.permute.xlu0 %v3590
    %3592 = vperm.xlu0 %3591, %v3497
    %v3593 = vpop.permute.xlu0 %3592
    %v3594 = vperm.slane %v3101, 5
    %v3595 = vlaneseq
    %v3596 = vshrl.u32 %v3595, 7
    %3598 = vset.pattern.permute.xlu0 %v3596
    %3599 = vperm.xlu0 %3598, %v3594
    %v3600 = vpop.permute.xlu0 %3599
    %v3601 = vlaneseq
    %v3602 = vshrl.u32 %v3601, 7
    %v3603 = vadd.s32 %v3602, 8
    %3604 = vset.pattern.permute.xlu0 %v3603
    %3605 = vperm.xlu0 %3604, %v3594
    %v3606 = vpop.permute.xlu0 %3605
    %v3607 = vlaneseq
    %v3608 = vshrl.u32 %v3607, 7
    %v3609 = vadd.s32 %v3608, 16
    %3610 = vset.pattern.permute.xlu0 %v3609
    %3611 = vperm.xlu0 %3610, %v3594
    %v3612 = vpop.permute.xlu0 %3611
    %v3613 = vlaneseq
    %v3614 = vshrl.u32 %v3613, 7
    %v3615 = vadd.s32 %v3614, 24
    %3616 = vset.pattern.permute.xlu0 %v3615
    %3617 = vperm.xlu0 %3616, %v3594
    %v3618 = vpop.permute.xlu0 %3617
    %v3619 = vlaneseq
    %v3620 = vshrl.u32 %v3619, 7
    %v3621 = vadd.s32 %v3620, 32
    %3622 = vset.pattern.permute.xlu0 %v3621
    %3623 = vperm.xlu0 %3622, %v3594
    %v3624 = vpop.permute.xlu0 %3623
    %v3625 = vlaneseq
    %v3626 = vshrl.u32 %v3625, 7
    %v3627 = vadd.s32 %v3626, 40
    %3628 = vset.pattern.permute.xlu0 %v3627
    %3629 = vperm.xlu0 %3628, %v3594
    %v3630 = vpop.permute.xlu0 %3629
    %v3631 = vlaneseq
    %v3632 = vshrl.u32 %v3631, 7
    %v3633 = vadd.s32 %v3632, 48
    %3634 = vset.pattern.permute.xlu0 %v3633
    %3635 = vperm.xlu0 %3634, %v3594
    %v3636 = vpop.permute.xlu0 %3635
    %v3637 = vlaneseq
    %v3638 = vshrl.u32 %v3637, 7
    %v3639 = vadd.s32 %v3638, 56
    %3640 = vset.pattern.permute.xlu0 %v3639
    %3641 = vperm.xlu0 %3640, %v3594
    %v3642 = vpop.permute.xlu0 %3641
    %v3643 = vlaneseq
    %v3644 = vshrl.u32 %v3643, 7
    %v3645 = vadd.s32 %v3644, 64
    %3646 = vset.pattern.permute.xlu0 %v3645
    %3647 = vperm.xlu0 %3646, %v3594
    %v3648 = vpop.permute.xlu0 %3647
    %v3649 = vlaneseq
    %v3650 = vshrl.u32 %v3649, 7
    %v3651 = vadd.s32 %v3650, 72
    %3652 = vset.pattern.permute.xlu0 %v3651
    %3653 = vperm.xlu0 %3652, %v3594
    %v3654 = vpop.permute.xlu0 %3653
    %v3655 = vlaneseq
    %v3656 = vshrl.u32 %v3655, 7
    %v3657 = vadd.s32 %v3656, 80
    %3658 = vset.pattern.permute.xlu0 %v3657
    %3659 = vperm.xlu0 %3658, %v3594
    %v3660 = vpop.permute.xlu0 %3659
    %v3661 = vlaneseq
    %v3662 = vshrl.u32 %v3661, 7
    %v3663 = vadd.s32 %v3662, 88
    %3664 = vset.pattern.permute.xlu0 %v3663
    %3665 = vperm.xlu0 %3664, %v3594
    %v3666 = vpop.permute.xlu0 %3665
    %v3667 = vlaneseq
    %v3668 = vshrl.u32 %v3667, 7
    %v3669 = vadd.s32 %v3668, 96
    %3670 = vset.pattern.permute.xlu0 %v3669
    %3671 = vperm.xlu0 %3670, %v3594
    %v3672 = vpop.permute.xlu0 %3671
    %v3673 = vlaneseq
    %v3674 = vshrl.u32 %v3673, 7
    %v3675 = vadd.s32 %v3674, 104
    %3676 = vset.pattern.permute.xlu0 %v3675
    %3677 = vperm.xlu0 %3676, %v3594
    %v3678 = vpop.permute.xlu0 %3677
    %v3679 = vlaneseq
    %v3680 = vshrl.u32 %v3679, 7
    %v3681 = vadd.s32 %v3680, 112
    %3682 = vset.pattern.permute.xlu0 %v3681
    %3683 = vperm.xlu0 %3682, %v3594
    %v3684 = vpop.permute.xlu0 %3683
    %v3685 = vlaneseq
    %v3686 = vshrl.u32 %v3685, 7
    %v3687 = vadd.s32 %v3686, 120
    %3688 = vset.pattern.permute.xlu0 %v3687
    %3689 = vperm.xlu0 %3688, %v3594
    %v3690 = vpop.permute.xlu0 %3689
    %v3691 = vperm.slane %v3101, 6
    %v3692 = vlaneseq
    %v3693 = vshrl.u32 %v3692, 7
    %3695 = vset.pattern.permute.xlu0 %v3693
    %3696 = vperm.xlu0 %3695, %v3691
    %v3697 = vpop.permute.xlu0 %3696
    %v3698 = vlaneseq
    %v3699 = vshrl.u32 %v3698, 7
    %v3700 = vadd.s32 %v3699, 8
    %3701 = vset.pattern.permute.xlu0 %v3700
    %3702 = vperm.xlu0 %3701, %v3691
    %v3703 = vpop.permute.xlu0 %3702
    %v3704 = vlaneseq
    %v3705 = vshrl.u32 %v3704, 7
    %v3706 = vadd.s32 %v3705, 16
    %3707 = vset.pattern.permute.xlu0 %v3706
    %3708 = vperm.xlu0 %3707, %v3691
    %v3709 = vpop.permute.xlu0 %3708
    %v3710 = vlaneseq
    %v3711 = vshrl.u32 %v3710, 7
    %v3712 = vadd.s32 %v3711, 24
    %3713 = vset.pattern.permute.xlu0 %v3712
    %3714 = vperm.xlu0 %3713, %v3691
    %v3715 = vpop.permute.xlu0 %3714
    %v3716 = vlaneseq
    %v3717 = vshrl.u32 %v3716, 7
    %v3718 = vadd.s32 %v3717, 32
    %3719 = vset.pattern.permute.xlu0 %v3718
    %3720 = vperm.xlu0 %3719, %v3691
    %v3721 = vpop.permute.xlu0 %3720
    %v3722 = vlaneseq
    %v3723 = vshrl.u32 %v3722, 7
    %v3724 = vadd.s32 %v3723, 40
    %3725 = vset.pattern.permute.xlu0 %v3724
    %3726 = vperm.xlu0 %3725, %v3691
    %v3727 = vpop.permute.xlu0 %3726
    %v3728 = vlaneseq
    %v3729 = vshrl.u32 %v3728, 7
    %v3730 = vadd.s32 %v3729, 48
    %3731 = vset.pattern.permute.xlu0 %v3730
    %3732 = vperm.xlu0 %3731, %v3691
    %v3733 = vpop.permute.xlu0 %3732
    %v3734 = vlaneseq
    %v3735 = vshrl.u32 %v3734, 7
    %v3736 = vadd.s32 %v3735, 56
    %3737 = vset.pattern.permute.xlu0 %v3736
    %3738 = vperm.xlu0 %3737, %v3691
    %v3739 = vpop.permute.xlu0 %3738
    %v3740 = vlaneseq
    %v3741 = vshrl.u32 %v3740, 7
    %v3742 = vadd.s32 %v3741, 64
    %3743 = vset.pattern.permute.xlu0 %v3742
    %3744 = vperm.xlu0 %3743, %v3691
    %v3745 = vpop.permute.xlu0 %3744
    %v3746 = vlaneseq
    %v3747 = vshrl.u32 %v3746, 7
    %v3748 = vadd.s32 %v3747, 72
    %3749 = vset.pattern.permute.xlu0 %v3748
    %3750 = vperm.xlu0 %3749, %v3691
    %v3751 = vpop.permute.xlu0 %3750
    %v3752 = vlaneseq
    %v3753 = vshrl.u32 %v3752, 7
    %v3754 = vadd.s32 %v3753, 80
    %3755 = vset.pattern.permute.xlu0 %v3754
    %3756 = vperm.xlu0 %3755, %v3691
    %v3757 = vpop.permute.xlu0 %3756
    %v3758 = vlaneseq
    %v3759 = vshrl.u32 %v3758, 7
    %v3760 = vadd.s32 %v3759, 88
    %3761 = vset.pattern.permute.xlu0 %v3760
    %3762 = vperm.xlu0 %3761, %v3691
    %v3763 = vpop.permute.xlu0 %3762
    %v3764 = vlaneseq
    %v3765 = vshrl.u32 %v3764, 7
    %v3766 = vadd.s32 %v3765, 96
    %3767 = vset.pattern.permute.xlu0 %v3766
    %3768 = vperm.xlu0 %3767, %v3691
    %v3769 = vpop.permute.xlu0 %3768
    %v3770 = vlaneseq
    %v3771 = vshrl.u32 %v3770, 7
    %v3772 = vadd.s32 %v3771, 104
    %3773 = vset.pattern.permute.xlu0 %v3772
    %3774 = vperm.xlu0 %3773, %v3691
    %v3775 = vpop.permute.xlu0 %3774
    %v3776 = vlaneseq
    %v3777 = vshrl.u32 %v3776, 7
    %v3778 = vadd.s32 %v3777, 112
    %3779 = vset.pattern.permute.xlu0 %v3778
    %3780 = vperm.xlu0 %3779, %v3691
    %v3781 = vpop.permute.xlu0 %3780
    %v3782 = vlaneseq
    %v3783 = vshrl.u32 %v3782, 7
    %v3784 = vadd.s32 %v3783, 120
    %3785 = vset.pattern.permute.xlu0 %v3784
    %3786 = vperm.xlu0 %3785, %v3691
    %v3787 = vpop.permute.xlu0 %3786
    %v3788 = vperm.slane %v3101, 7
    %v3789 = vlaneseq
    %v3790 = vshrl.u32 %v3789, 7
    %3792 = vset.pattern.permute.xlu0 %v3790
    %3793 = vperm.xlu0 %3792, %v3788
    %v3794 = vpop.permute.xlu0 %3793
    %v3795 = vlaneseq
    %v3796 = vshrl.u32 %v3795, 7
    %v3797 = vadd.s32 %v3796, 8
    %3798 = vset.pattern.permute.xlu0 %v3797
    %3799 = vperm.xlu0 %3798, %v3788
    %v3800 = vpop.permute.xlu0 %3799
    %v3801 = vlaneseq
    %v3802 = vshrl.u32 %v3801, 7
    %v3803 = vadd.s32 %v3802, 16
    %3804 = vset.pattern.permute.xlu0 %v3803
    %3805 = vperm.xlu0 %3804, %v3788
    %v3806 = vpop.permute.xlu0 %3805
    %v3807 = vlaneseq
    %v3808 = vshrl.u32 %v3807, 7
    %v3809 = vadd.s32 %v3808, 24
    %3810 = vset.pattern.permute.xlu0 %v3809
    %3811 = vperm.xlu0 %3810, %v3788
    %v3812 = vpop.permute.xlu0 %3811
    %v3813 = vlaneseq
    %v3814 = vshrl.u32 %v3813, 7
    %v3815 = vadd.s32 %v3814, 32
    %3816 = vset.pattern.permute.xlu0 %v3815
    %3817 = vperm.xlu0 %3816, %v3788
    %v3818 = vpop.permute.xlu0 %3817
    %v3819 = vlaneseq
    %v3820 = vshrl.u32 %v3819, 7
    %v3821 = vadd.s32 %v3820, 40
    %3822 = vset.pattern.permute.xlu0 %v3821
    %3823 = vperm.xlu0 %3822, %v3788
    %v3824 = vpop.permute.xlu0 %3823
    %v3825 = vlaneseq
    %v3826 = vshrl.u32 %v3825, 7
    %v3827 = vadd.s32 %v3826, 48
    %3828 = vset.pattern.permute.xlu0 %v3827
    %3829 = vperm.xlu0 %3828, %v3788
    %v3830 = vpop.permute.xlu0 %3829
    %v3831 = vlaneseq
    %v3832 = vshrl.u32 %v3831, 7
    %v3833 = vadd.s32 %v3832, 56
    %3834 = vset.pattern.permute.xlu0 %v3833
    %3835 = vperm.xlu0 %3834, %v3788
    %v3836 = vpop.permute.xlu0 %3835
    %v3837 = vlaneseq
    %v3838 = vshrl.u32 %v3837, 7
    %v3839 = vadd.s32 %v3838, 64
    %3840 = vset.pattern.permute.xlu0 %v3839
    %3841 = vperm.xlu0 %3840, %v3788
    %v3842 = vpop.permute.xlu0 %3841
    %v3843 = vlaneseq
    %v3844 = vshrl.u32 %v3843, 7
    %v3845 = vadd.s32 %v3844, 72
    %3846 = vset.pattern.permute.xlu0 %v3845
    %3847 = vperm.xlu0 %3846, %v3788
    %v3848 = vpop.permute.xlu0 %3847
    %v3849 = vlaneseq
    %v3850 = vshrl.u32 %v3849, 7
    %v3851 = vadd.s32 %v3850, 80
    %3852 = vset.pattern.permute.xlu0 %v3851
    %3853 = vperm.xlu0 %3852, %v3788
    %v3854 = vpop.permute.xlu0 %3853
    %v3855 = vlaneseq
    %v3856 = vshrl.u32 %v3855, 7
    %v3857 = vadd.s32 %v3856, 88
    %3858 = vset.pattern.permute.xlu0 %v3857
    %3859 = vperm.xlu0 %3858, %v3788
    %v3860 = vpop.permute.xlu0 %3859
    %v3861 = vlaneseq
    %v3862 = vshrl.u32 %v3861, 7
    %v3863 = vadd.s32 %v3862, 96
    %3864 = vset.pattern.permute.xlu0 %v3863
    %3865 = vperm.xlu0 %3864, %v3788
    %v3866 = vpop.permute.xlu0 %3865
    %v3867 = vlaneseq
    %v3868 = vshrl.u32 %v3867, 7
    %v3869 = vadd.s32 %v3868, 104
    %3870 = vset.pattern.permute.xlu0 %v3869
    %3871 = vperm.xlu0 %3870, %v3788
    %v3872 = vpop.permute.xlu0 %3871
    %v3873 = vlaneseq
    %v3874 = vshrl.u32 %v3873, 7
    %v3875 = vadd.s32 %v3874, 112
    %3876 = vset.pattern.permute.xlu0 %v3875
    %3877 = vperm.xlu0 %3876, %v3788
    %v3878 = vpop.permute.xlu0 %3877
    %v3879 = vlaneseq
    %v3880 = vshrl.u32 %v3879, 7
    %v3881 = vadd.s32 %v3880, 120
    %3882 = vset.pattern.permute.xlu0 %v3881
    %3883 = vperm.xlu0 %3882, %v3788
    %v3884 = vpop.permute.xlu0 %3883
    %v3885 = vunpack.c.l.bf16 %v1081
    %v3886 = vunpack.c.l.bf16 %v1082
    %v3887 = vunpack.c.l.bf16 %v1083
    %v3888 = vunpack.c.l.bf16 %v1084
    %v3889 = vunpack.c.l.bf16 %v1085
    %v3890 = vunpack.c.l.bf16 %v1086
    %v3891 = vunpack.c.l.bf16 %v1087
    %v3892 = vunpack.c.l.bf16 %v1088
    %v3893 = vunpack.c.l.bf16 %v1089
    %v3894 = vunpack.c.l.bf16 %v1090
    %v3895 = vunpack.c.l.bf16 %v1091
    %v3896 = vunpack.c.l.bf16 %v1092
    %v3897 = vunpack.c.l.bf16 %v1093
    %v3898 = vunpack.c.l.bf16 %v1094
    %v3899 = vunpack.c.l.bf16 %v1095
    %v3900 = vunpack.c.l.bf16 %v1096
    %v3901 = vunpack.c.l.bf16 %v1097
    %v3902 = vunpack.c.l.bf16 %v1098
    %v3903 = vunpack.c.l.bf16 %v1099
    %v3904 = vunpack.c.l.bf16 %v1100
    %v3905 = vunpack.c.l.bf16 %v1101
    %v3906 = vunpack.c.l.bf16 %v1102
    %v3907 = vunpack.c.l.bf16 %v1103
    %v3908 = vunpack.c.l.bf16 %v1104
    %v3909 = vunpack.c.l.bf16 %v1105
    %v3910 = vunpack.c.l.bf16 %v1106
    %v3911 = vunpack.c.l.bf16 %v1107
    %v3912 = vunpack.c.l.bf16 %v1108
    %v3913 = vunpack.c.l.bf16 %v1109
    %v3914 = vunpack.c.l.bf16 %v1110
    %v3915 = vunpack.c.l.bf16 %v1111
    %v3916 = vunpack.c.l.bf16 %v1112
    %v3917 = vunpack.c.l.bf16 %v1113
    %v3918 = vunpack.c.l.bf16 %v1114
    %v3919 = vunpack.c.l.bf16 %v1115
    %v3920 = vunpack.c.l.bf16 %v1116
    %v3921 = vunpack.c.l.bf16 %v1117
    %v3922 = vunpack.c.l.bf16 %v1118
    %v3923 = vunpack.c.l.bf16 %v1119
    %v3924 = vunpack.c.l.bf16 %v1120
    %v3925 = vunpack.c.l.bf16 %v1121
    %v3926 = vunpack.c.l.bf16 %v1122
    %v3927 = vunpack.c.l.bf16 %v1123
    %v3928 = vunpack.c.l.bf16 %v1124
    %v3929 = vunpack.c.l.bf16 %v1125
    %v3930 = vunpack.c.l.bf16 %v1126
    %v3931 = vunpack.c.l.bf16 %v1127
    %v3932 = vunpack.c.l.bf16 %v1128
    %v3933 = vunpack.c.l.bf16 %v1129
    %v3934 = vunpack.c.l.bf16 %v1130
    %v3935 = vunpack.c.l.bf16 %v1131
    %v3936 = vunpack.c.l.bf16 %v1132
    %v3937 = vunpack.c.l.bf16 %v1133
    %v3938 = vunpack.c.l.bf16 %v1134
    %v3939 = vunpack.c.l.bf16 %v1135
    %v3940 = vunpack.c.l.bf16 %v1136
    %v3941 = vunpack.c.l.bf16 %v1137
    %v3942 = vunpack.c.l.bf16 %v1138
    %v3943 = vunpack.c.l.bf16 %v1139
    %v3944 = vunpack.c.l.bf16 %v1140
    %v3945 = vunpack.c.l.bf16 %v1141
    %v3946 = vunpack.c.l.bf16 %v1142
    %v3947 = vunpack.c.l.bf16 %v1143
    %v3948 = vunpack.c.l.bf16 %v1144
    %v3949 = vunpack.c.l.bf16 %v1145
    %v3950 = vunpack.c.l.bf16 %v1146
    %v3951 = vunpack.c.l.bf16 %v1147
    %v3952 = vunpack.c.l.bf16 %v1148
    %v3953 = vunpack.c.l.bf16 %v1149
    %v3954 = vunpack.c.l.bf16 %v1150
    %v3955 = vunpack.c.l.bf16 %v1151
    %v3956 = vunpack.c.l.bf16 %v1152
    %v3957 = vunpack.c.l.bf16 %v1153
    %v3958 = vunpack.c.l.bf16 %v1154
    %v3959 = vunpack.c.l.bf16 %v1155
    %v3960 = vunpack.c.l.bf16 %v1156
    %v3961 = vunpack.c.l.bf16 %v1157
    %v3962 = vunpack.c.l.bf16 %v1158
    %v3963 = vunpack.c.l.bf16 %v1159
    %v3964 = vunpack.c.l.bf16 %v1160
    %v3965 = vunpack.c.l.bf16 %v1161
    %v3966 = vunpack.c.l.bf16 %v1162
    %v3967 = vunpack.c.l.bf16 %v1163
    %v3968 = vunpack.c.l.bf16 %v1164
    %v3969 = vunpack.c.l.bf16 %v1165
    %v3970 = vunpack.c.l.bf16 %v1166
    %v3971 = vunpack.c.l.bf16 %v1167
    %v3972 = vunpack.c.l.bf16 %v1168
    %v3973 = vunpack.c.l.bf16 %v1169
    %v3974 = vunpack.c.l.bf16 %v1170
    %v3975 = vunpack.c.l.bf16 %v1171
    %v3976 = vunpack.c.l.bf16 %v1172
    %v3977 = vunpack.c.l.bf16 %v1173
    %v3978 = vunpack.c.l.bf16 %v1174
    %v3979 = vunpack.c.l.bf16 %v1175
    %v3980 = vunpack.c.l.bf16 %v1176
    %v3981 = vunpack.c.l.bf16 %v1177
    %v3982 = vunpack.c.l.bf16 %v1178
    %v3983 = vunpack.c.l.bf16 %v1179
    %v3984 = vunpack.c.l.bf16 %v1180
    %v3985 = vunpack.c.l.bf16 %v1181
    %v3986 = vunpack.c.l.bf16 %v1182
    %v3987 = vunpack.c.l.bf16 %v1183
    %v3988 = vunpack.c.l.bf16 %v1184
    %v3989 = vunpack.c.l.bf16 %v1185
    %v3990 = vunpack.c.l.bf16 %v1186
    %v3991 = vunpack.c.l.bf16 %v1187
    %v3992 = vunpack.c.l.bf16 %v1188
    %v3993 = vunpack.c.l.bf16 %v1189
    %v3994 = vunpack.c.l.bf16 %v1190
    %v3995 = vunpack.c.l.bf16 %v1191
    %v3996 = vunpack.c.l.bf16 %v1192
    %v3997 = vunpack.c.l.bf16 %v1193
    %v3998 = vunpack.c.l.bf16 %v1194
    %v3999 = vunpack.c.l.bf16 %v1195
    %v4000 = vunpack.c.l.bf16 %v1196
    %v4001 = vunpack.c.l.bf16 %v1197
    %v4002 = vunpack.c.l.bf16 %v1198
    %v4003 = vunpack.c.l.bf16 %v1199
    %v4004 = vunpack.c.l.bf16 %v1200
    %v4005 = vunpack.c.l.bf16 %v1201
    %v4006 = vunpack.c.l.bf16 %v1202
    %v4007 = vunpack.c.l.bf16 %v1203
    %v4008 = vunpack.c.l.bf16 %v1204
    %v4009 = vunpack.c.l.bf16 %v1205
    %v4010 = vunpack.c.l.bf16 %v1206
    %v4011 = vunpack.c.l.bf16 %v1207
    %v4012 = vunpack.c.l.bf16 %v1208
    %v4013 = vmul.f32 %v3115, %v3885
    %v4014 = vmul.f32 %v3121, %v3886
    %v4015 = vmul.f32 %v3127, %v3887
    %v4016 = vmul.f32 %v3133, %v3888
    %v4017 = vmul.f32 %v3139, %v3889
    %v4018 = vmul.f32 %v3145, %v3890
    %v4019 = vmul.f32 %v3151, %v3891
    %v4020 = vmul.f32 %v3157, %v3892
    %v4021 = vmul.f32 %v3163, %v3893
    %v4022 = vmul.f32 %v3169, %v3894
    %v4023 = vmul.f32 %v3175, %v3895
    %v4024 = vmul.f32 %v3181, %v3896
    %v4025 = vmul.f32 %v3187, %v3897
    %v4026 = vmul.f32 %v3193, %v3898
    %v4027 = vmul.f32 %v3199, %v3899
    %v4028 = vmul.f32 %v3205, %v3900
    %v4029 = vmul.f32 %v3212, %v3901
    %v4030 = vmul.f32 %v3218, %v3902
    %v4031 = vmul.f32 %v3224, %v3903
    %v4032 = vmul.f32 %v3230, %v3904
    %v4033 = vmul.f32 %v3236, %v3905
    %v4034 = vmul.f32 %v3242, %v3906
    %v4035 = vmul.f32 %v3248, %v3907
    %v4036 = vmul.f32 %v3254, %v3908
    %v4037 = vmul.f32 %v3260, %v3909
    %v4038 = vmul.f32 %v3266, %v3910
    %v4039 = vmul.f32 %v3272, %v3911
    %v4040 = vmul.f32 %v3278, %v3912
    %v4041 = vmul.f32 %v3284, %v3913
    %v4042 = vmul.f32 %v3290, %v3914
    %v4043 = vmul.f32 %v3296, %v3915
    %v4044 = vmul.f32 %v3302, %v3916
    %v4045 = vmul.f32 %v3309, %v3917
    %v4046 = vmul.f32 %v3315, %v3918
    %v4047 = vmul.f32 %v3321, %v3919
    %v4048 = vmul.f32 %v3327, %v3920
    %v4049 = vmul.f32 %v3333, %v3921
    %v4050 = vmul.f32 %v3339, %v3922
    %v4051 = vmul.f32 %v3345, %v3923
    %v4052 = vmul.f32 %v3351, %v3924
    %v4053 = vmul.f32 %v3357, %v3925
    %v4054 = vmul.f32 %v3363, %v3926
    %v4055 = vmul.f32 %v3369, %v3927
    %v4056 = vmul.f32 %v3375, %v3928
    %v4057 = vmul.f32 %v3381, %v3929
    %v4058 = vmul.f32 %v3387, %v3930
    %v4059 = vmul.f32 %v3393, %v3931
    %v4060 = vmul.f32 %v3399, %v3932
    %v4061 = vmul.f32 %v3406, %v3933
    %v4062 = vmul.f32 %v3412, %v3934
    %v4063 = vmul.f32 %v3418, %v3935
    %v4064 = vmul.f32 %v3424, %v3936
    %v4065 = vmul.f32 %v3430, %v3937
    %v4066 = vmul.f32 %v3436, %v3938
    %v4067 = vmul.f32 %v3442, %v3939
    %v4068 = vmul.f32 %v3448, %v3940
    %v4069 = vmul.f32 %v3454, %v3941
    %v4070 = vmul.f32 %v3460, %v3942
    %v4071 = vmul.f32 %v3466, %v3943
    %v4072 = vmul.f32 %v3472, %v3944
    %v4073 = vmul.f32 %v3478, %v3945
    %v4074 = vmul.f32 %v3484, %v3946
    %v4075 = vmul.f32 %v3490, %v3947
    %v4076 = vmul.f32 %v3496, %v3948
    %v4077 = vmul.f32 %v3503, %v3949
    %v4078 = vmul.f32 %v3509, %v3950
    %v4079 = vmul.f32 %v3515, %v3951
    %v4080 = vmul.f32 %v3521, %v3952
    %v4081 = vmul.f32 %v3527, %v3953
    %v4082 = vmul.f32 %v3533, %v3954
    %v4083 = vmul.f32 %v3539, %v3955
    %v4084 = vmul.f32 %v3545, %v3956
    %v4085 = vmul.f32 %v3551, %v3957
    %v4086 = vmul.f32 %v3557, %v3958
    %v4087 = vmul.f32 %v3563, %v3959
    %v4088 = vmul.f32 %v3569, %v3960
    %v4089 = vmul.f32 %v3575, %v3961
    %v4090 = vmul.f32 %v3581, %v3962
    %v4091 = vmul.f32 %v3587, %v3963
    %v4092 = vmul.f32 %v3593, %v3964
    %v4093 = vmul.f32 %v3600, %v3965
    %v4094 = vmul.f32 %v3606, %v3966
    %v4095 = vmul.f32 %v3612, %v3967
    %v4096 = vmul.f32 %v3618, %v3968
    %v4097 = vmul.f32 %v3624, %v3969
    %v4098 = vmul.f32 %v3630, %v3970
    %v4099 = vmul.f32 %v3636, %v3971
    %v4100 = vmul.f32 %v3642, %v3972
    %v4101 = vmul.f32 %v3648, %v3973
    %v4102 = vmul.f32 %v3654, %v3974
    %v4103 = vmul.f32 %v3660, %v3975
    %v4104 = vmul.f32 %v3666, %v3976
    %v4105 = vmul.f32 %v3672, %v3977
    %v4106 = vmul.f32 %v3678, %v3978
    %v4107 = vmul.f32 %v3684, %v3979
    %v4108 = vmul.f32 %v3690, %v3980
    %v4109 = vmul.f32 %v3697, %v3981
    %v4110 = vmul.f32 %v3703, %v3982
    %v4111 = vmul.f32 %v3709, %v3983
    %v4112 = vmul.f32 %v3715, %v3984
    %v4113 = vmul.f32 %v3721, %v3985
    %v4114 = vmul.f32 %v3727, %v3986
    %v4115 = vmul.f32 %v3733, %v3987
    %v4116 = vmul.f32 %v3739, %v3988
    %v4117 = vmul.f32 %v3745, %v3989
    %v4118 = vmul.f32 %v3751, %v3990
    %v4119 = vmul.f32 %v3757, %v3991
    %v4120 = vmul.f32 %v3763, %v3992
    %v4121 = vmul.f32 %v3769, %v3993
    %v4122 = vmul.f32 %v3775, %v3994
    %v4123 = vmul.f32 %v3781, %v3995
    %v4124 = vmul.f32 %v3787, %v3996
    %v4125 = vmul.f32 %v3794, %v3997
    %v4126 = vmul.f32 %v3800, %v3998
    %v4127 = vmul.f32 %v3806, %v3999
    %v4128 = vmul.f32 %v3812, %v4000
    %v4129 = vmul.f32 %v3818, %v4001
    %v4130 = vmul.f32 %v3824, %v4002
    %v4131 = vmul.f32 %v3830, %v4003
    %v4132 = vmul.f32 %v3836, %v4004
    %v4133 = vmul.f32 %v3842, %v4005
    %v4134 = vmul.f32 %v3848, %v4006
    %v4135 = vmul.f32 %v3854, %v4007
    %v4136 = vmul.f32 %v3860, %v4008
    %v4137 = vmul.f32 %v3866, %v4009
    %v4138 = vmul.f32 %v3872, %v4010
    %v4139 = vmul.f32 %v3878, %v4011
    %v4140 = vmul.f32 %v3884, %v4012
    %v4141 = vadd.f32 %v4013, %v4014
    %v4142 = vadd.f32 %v4141, %v4015
    %v4143 = vadd.f32 %v4142, %v4016
    %v4144 = vadd.f32 %v4143, %v4017
    %v4145 = vadd.f32 %v4144, %v4018
    %v4146 = vadd.f32 %v4145, %v4019
    %v4147 = vadd.f32 %v4146, %v4020
    %v4148 = vadd.f32 %v4147, %v4021
    %v4149 = vadd.f32 %v4148, %v4022
    %v4150 = vadd.f32 %v4149, %v4023
    %v4151 = vadd.f32 %v4150, %v4024
    %v4152 = vadd.f32 %v4151, %v4025
    %v4153 = vadd.f32 %v4152, %v4026
    %v4154 = vadd.f32 %v4153, %v4027
    %v4155 = vadd.f32 %v4154, %v4028
    %v4156 = vrot.slane %v4155, 4
    %v4157 = vadd.f32 %v4155, %v4156
    %v4158 = vrot.slane %v4157, 2
    %v4159 = vadd.f32 %v4157, %v4158
    %v4160 = vrot.slane %v4159, 1
    %v4161 = vadd.f32 %v4159, %v4160
    %v4162 = vadd.f32 %v4029, %v4030
    %v4163 = vadd.f32 %v4162, %v4031
    %v4164 = vadd.f32 %v4163, %v4032
    %v4165 = vadd.f32 %v4164, %v4033
    %v4166 = vadd.f32 %v4165, %v4034
    %v4167 = vadd.f32 %v4166, %v4035
    %v4168 = vadd.f32 %v4167, %v4036
    %v4169 = vadd.f32 %v4168, %v4037
    %v4170 = vadd.f32 %v4169, %v4038
    %v4171 = vadd.f32 %v4170, %v4039
    %v4172 = vadd.f32 %v4171, %v4040
    %v4173 = vadd.f32 %v4172, %v4041
    %v4174 = vadd.f32 %v4173, %v4042
    %v4175 = vadd.f32 %v4174, %v4043
    %v4176 = vadd.f32 %v4175, %v4044
    %v4177 = vrot.slane %v4176, 4
    %v4178 = vadd.f32 %v4176, %v4177
    %v4179 = vrot.slane %v4178, 2
    %v4180 = vadd.f32 %v4178, %v4179
    %v4181 = vrot.slane %v4180, 1
    %v4182 = vadd.f32 %v4180, %v4181
    %v4183 = vadd.f32 %v4045, %v4046
    %v4184 = vadd.f32 %v4183, %v4047
    %v4185 = vadd.f32 %v4184, %v4048
    %v4186 = vadd.f32 %v4185, %v4049
    %v4187 = vadd.f32 %v4186, %v4050
    %v4188 = vadd.f32 %v4187, %v4051
    %v4189 = vadd.f32 %v4188, %v4052
    %v4190 = vadd.f32 %v4189, %v4053
    %v4191 = vadd.f32 %v4190, %v4054
    %v4192 = vadd.f32 %v4191, %v4055
    %v4193 = vadd.f32 %v4192, %v4056
    %v4194 = vadd.f32 %v4193, %v4057
    %v4195 = vadd.f32 %v4194, %v4058
    %v4196 = vadd.f32 %v4195, %v4059
    %v4197 = vadd.f32 %v4196, %v4060
    %v4198 = vrot.slane %v4197, 4
    %v4199 = vadd.f32 %v4197, %v4198
    %v4200 = vrot.slane %v4199, 2
    %v4201 = vadd.f32 %v4199, %v4200
    %v4202 = vrot.slane %v4201, 1
    %v4203 = vadd.f32 %v4201, %v4202
    %v4204 = vadd.f32 %v4061, %v4062
    %v4205 = vadd.f32 %v4204, %v4063
    %v4206 = vadd.f32 %v4205, %v4064
    %v4207 = vadd.f32 %v4206, %v4065
    %v4208 = vadd.f32 %v4207, %v4066
    %v4209 = vadd.f32 %v4208, %v4067
    %v4210 = vadd.f32 %v4209, %v4068
    %v4211 = vadd.f32 %v4210, %v4069
    %v4212 = vadd.f32 %v4211, %v4070
    %v4213 = vadd.f32 %v4212, %v4071
    %v4214 = vadd.f32 %v4213, %v4072
    %v4215 = vadd.f32 %v4214, %v4073
    %v4216 = vadd.f32 %v4215, %v4074
    %v4217 = vadd.f32 %v4216, %v4075
    %v4218 = vadd.f32 %v4217, %v4076
    %v4219 = vrot.slane %v4218, 4
    %v4220 = vadd.f32 %v4218, %v4219
    %v4221 = vrot.slane %v4220, 2
    %v4222 = vadd.f32 %v4220, %v4221
    %v4223 = vrot.slane %v4222, 1
    %v4224 = vadd.f32 %v4222, %v4223
    %v4225 = vadd.f32 %v4077, %v4078
    %v4226 = vadd.f32 %v4225, %v4079
    %v4227 = vadd.f32 %v4226, %v4080
    %v4228 = vadd.f32 %v4227, %v4081
    %v4229 = vadd.f32 %v4228, %v4082
    %v4230 = vadd.f32 %v4229, %v4083
    %v4231 = vadd.f32 %v4230, %v4084
    %v4232 = vadd.f32 %v4231, %v4085
    %v4233 = vadd.f32 %v4232, %v4086
    %v4234 = vadd.f32 %v4233, %v4087
    %v4235 = vadd.f32 %v4234, %v4088
    %v4236 = vadd.f32 %v4235, %v4089
    %v4237 = vadd.f32 %v4236, %v4090
    %v4238 = vadd.f32 %v4237, %v4091
    %v4239 = vadd.f32 %v4238, %v4092
    %v4240 = vrot.slane %v4239, 4
    %v4241 = vadd.f32 %v4239, %v4240
    %v4242 = vrot.slane %v4241, 2
    %v4243 = vadd.f32 %v4241, %v4242
    %v4244 = vrot.slane %v4243, 1
    %v4245 = vadd.f32 %v4243, %v4244
    %v4246 = vadd.f32 %v4093, %v4094
    %v4247 = vadd.f32 %v4246, %v4095
    %v4248 = vadd.f32 %v4247, %v4096
    %v4249 = vadd.f32 %v4248, %v4097
    %v4250 = vadd.f32 %v4249, %v4098
    %v4251 = vadd.f32 %v4250, %v4099
    %v4252 = vadd.f32 %v4251, %v4100
    %v4253 = vadd.f32 %v4252, %v4101
    %v4254 = vadd.f32 %v4253, %v4102
    %v4255 = vadd.f32 %v4254, %v4103
    %v4256 = vadd.f32 %v4255, %v4104
    %v4257 = vadd.f32 %v4256, %v4105
    %v4258 = vadd.f32 %v4257, %v4106
    %v4259 = vadd.f32 %v4258, %v4107
    %v4260 = vadd.f32 %v4259, %v4108
    %v4261 = vrot.slane %v4260, 4
    %v4262 = vadd.f32 %v4260, %v4261
    %v4263 = vrot.slane %v4262, 2
    %v4264 = vadd.f32 %v4262, %v4263
    %v4265 = vrot.slane %v4264, 1
    %v4266 = vadd.f32 %v4264, %v4265
    %v4267 = vadd.f32 %v4109, %v4110
    %v4268 = vadd.f32 %v4267, %v4111
    %v4269 = vadd.f32 %v4268, %v4112
    %v4270 = vadd.f32 %v4269, %v4113
    %v4271 = vadd.f32 %v4270, %v4114
    %v4272 = vadd.f32 %v4271, %v4115
    %v4273 = vadd.f32 %v4272, %v4116
    %v4274 = vadd.f32 %v4273, %v4117
    %v4275 = vadd.f32 %v4274, %v4118
    %v4276 = vadd.f32 %v4275, %v4119
    %v4277 = vadd.f32 %v4276, %v4120
    %v4278 = vadd.f32 %v4277, %v4121
    %v4279 = vadd.f32 %v4278, %v4122
    %v4280 = vadd.f32 %v4279, %v4123
    %v4281 = vadd.f32 %v4280, %v4124
    %v4282 = vrot.slane %v4281, 4
    %v4283 = vadd.f32 %v4281, %v4282
    %v4284 = vrot.slane %v4283, 2
    %v4285 = vadd.f32 %v4283, %v4284
    %v4286 = vrot.slane %v4285, 1
    %v4287 = vadd.f32 %v4285, %v4286
    %v4288 = vadd.f32 %v4125, %v4126
    %v4289 = vadd.f32 %v4288, %v4127
    %v4290 = vadd.f32 %v4289, %v4128
    %v4291 = vadd.f32 %v4290, %v4129
    %v4292 = vadd.f32 %v4291, %v4130
    %v4293 = vadd.f32 %v4292, %v4131
    %v4294 = vadd.f32 %v4293, %v4132
    %v4295 = vadd.f32 %v4294, %v4133
    %v4296 = vadd.f32 %v4295, %v4134
    %v4297 = vadd.f32 %v4296, %v4135
    %v4298 = vadd.f32 %v4297, %v4136
    %v4299 = vadd.f32 %v4298, %v4137
    %v4300 = vadd.f32 %v4299, %v4138
    %v4301 = vadd.f32 %v4300, %v4139
    %v4302 = vadd.f32 %v4301, %v4140
    %v4303 = vrot.slane %v4302, 4
    %v4304 = vadd.f32 %v4302, %v4303
    %v4305 = vrot.slane %v4304, 2
    %v4306 = vadd.f32 %v4304, %v4305
    %v4307 = vrot.slane %v4306, 1
    %v4308 = vadd.f32 %v4306, %v4307
    %v4309 = vld [vmem:[#allocation5] sm:$0xff]
    %4311 = vset.pattern.permute.xlu0 0
    %4312 = vperm.xlu0 %4311, %v3093
    %v4313 = vpop.permute.xlu0 %4312
    %v4315 = vmul.f32 %v4313, %v4309
    %v4324 = vsel %vm3067, %v4182, %v4161
    %v4325 = vsel %vm3069, %v4203, %v4324
    %v4326 = vsel %vm3071, %v4224, %v4325
    %v4327 = vsel %vm3073, %v4245, %v4326
    %v4328 = vsel %vm3075, %v4266, %v4327
    %v4329 = vsel %vm3077, %v4287, %v4328
    %v4330 = vsel %vm3079, %v4308, %v4329
    %v4332 = vadd.f32 %v4315, %v4330
    %4333 = vst [vmem:[#allocation5] sm:$0xff] %v4332
    %4334 = vst.msk [vmem:[#allocation3] sm:$0xff] %vm3107, %v3090
    // Predicated region
    $region94: #{tpu_custom_call.1} parent=1 // pred_check
      %p4335 = pneg %p183
    $region95: #{tpu_custom_call.1} parent=1 // pred_check_branch
      %4337 = sbr.rel (%p4335) target = $region97
    $region96: #{tpu_custom_call.1} parent=1 // pred_region
      %v4338 = vld [vmem:[#allocation4] sm:$0xff]
      %v4339 = vrcp.pop %v4338
      %v4340 = vld [vmem:[#allocation5] sm:$0xff]
      %4342 = vset.pattern.permute.xlu0 0
      %4343 = vperm.xlu0 %4342, %v4339
      %v4344 = vpop.permute.xlu0 %4343
      %v4346 = vmul.f32 %v4340, %v4344
      %4347 = vst [vmem:[#allocation23] sm:$0xff] %v4346
      %v4348 = vld [vmem:[#allocation6] sm:$0xff]
      %v4349 = vld [vmem:[#allocation3] sm:$0xff]
      %4351 = vset.pattern.permute.xlu0 0
      %4352 = vperm.xlu0 %4351, %v4349
      %v4353 = vpop.permute.xlu0 %4352
      %v4355 = vsub.f32 %v4348, %v4353
      %v4356 = vmul.f32 %v4355, 1.442695
      %v4357 = vpow.pop %v4356
      %v4358 = vmul.f32 %v4357, %v4344
      %4359 = vst [vmem:[#allocation25] sm:$0xff] %v4358
    $region97: #{tpu_custom_call.1} parent=1 // pred_fallthru
      _
    // Predicated region
    $region98: #{tpu_custom_call.1} parent=1 // pred_check
      _
    $region99: #{tpu_custom_call.1} parent=1 // pred_check_branch
      %4361 = sbr.rel (0) target = $region101
    $region100: #{tpu_custom_call.1} parent=1 // pred_region
      %4363 = vsyncadd [#allocation9], 0
      %s4365 = sshll.u32 [#allocation22], 4
      %s4366 = int_to_ptr.vmem [resolvable:$true] %s4365
      %s4367 = sshll.u32 %s13, 4
      %s4368 = int_to_ptr.hbm [resolvable:$true] %s4367
      %4370 = dma.vmem_to_hbm [thread:$0]  %s4366, 128, %s4368, [#allocation9]
    $region101: #{tpu_custom_call.1} parent=1 // pred_fallthru
      _
    // Predicated region
    $region102: #{tpu_custom_call.1} parent=1 // pred_check
      _
    $region103: #{tpu_custom_call.1} parent=1 // pred_check_branch
      %4372 = sbr.rel (0) target = $region105
    $region104: #{tpu_custom_call.1} parent=1 // pred_region
      %4374 = vsyncadd [#allocation24], 0
      %s4376 = sshll.u32 [#allocation23], 4
      %s4377 = int_to_ptr.vmem [resolvable:$true] %s4376
      %s4378 = sshll.u32 %s14, 4
      %s4379 = int_to_ptr.hbm [resolvable:$true] %s4378
      %4381 = dma.vmem_to_hbm [thread:$0]  %s4377, 128, %s4379, [#allocation24]
    $region105: #{tpu_custom_call.1} parent=1 // pred_fallthru
      _
    // Predicated region
    $region106: #{tpu_custom_call.1} parent=1 // pred_check
      _
    $region107: #{tpu_custom_call.1} parent=1 // pred_check_branch
      %4383 = sbr.rel (0) target = $region109
    $region108: #{tpu_custom_call.1} parent=1 // pred_region
      %4385 = vsyncadd [#allocation24], 0
      %s4387 = sshll.u32 [#allocation25], 4
      %s4388 = int_to_ptr.vmem [resolvable:$true] %s4387
      %s4389 = sshll.u32 %s15, 4
      %s4390 = int_to_ptr.hbm [resolvable:$true] %s4389
      %4392 = dma.vmem_to_hbm [thread:$0]  %s4388, 128, %s4390, [#allocation24]
    $region109: #{tpu_custom_call.1} parent=1 // pred_fallthru
      _
    // Predicated region
    $region110: #{tpu_custom_call.1} parent=1 // pred_check
      _
    $region111: #{tpu_custom_call.1} parent=1 // pred_check_branch
      %4394 = sbr.rel (0) target = $region113
    $region112: #{tpu_custom_call.1} parent=1 // pred_region
      %4396 = dma.done [#allocation9], 128
    $region113: #{tpu_custom_call.1} parent=1 // pred_fallthru
      _
    // Predicated region
    $region114: #{tpu_custom_call.1} parent=1 // pred_check
      _
    $region115: #{tpu_custom_call.1} parent=1 // pred_check_branch
      %4398 = sbr.rel (0) target = $region117
    $region116: #{tpu_custom_call.1} parent=1 // pred_region
      %4400 = dma.done [#allocation24], 128
    $region117: #{tpu_custom_call.1} parent=1 // pred_fallthru
      _
    // Predicated region
    $region118: #{tpu_custom_call.1} parent=1 // pred_check
      _
    $region119: #{tpu_custom_call.1} parent=1 // pred_check_branch
      %4402 = sbr.rel (0) target = $region121
    $region120: #{tpu_custom_call.1} parent=1 // pred_region
      %4404 = dma.done [#allocation24], 128
    $region121: #{tpu_custom_call.1} parent=1 // pred_fallthru
      _
    %4405 = vsyncpa [#allocation8], 1
    %4406 = vsyncpa [#allocation11], 1
    %4407 = vsyncpa [#allocation14], 1
    %4408 = vsyncpa [#allocation17], 1
    %4409 = vsyncpa [#allocation20], 1
    %4410 = vsyncpa [#allocation9], 1
    %4411 = vsyncpa [#allocation24], 1

</llo_original>
